<compile_context>
chip_gen: v5e
topology: v5e:2x2
jax: 0.10.0
libtpu: 0.0.40
codegen_flags: <defaults>
</compile_context>

<pallas_src>
import functools

import jax
import jax.numpy as jnp
from jax import lax
from jax.experimental import pallas as pl
from jax.experimental.pallas import tpu as pltpu

LN_EPS = 1e-5


def _conv_down_ln_kernel(y_ref, w_ref, g_ref, b_ref, o_ref, acc_ref, *,
                         bt, ho, wo, p_pad, pair_k):
    # y_ref:  (2, bt*p_pad, 2C) bf16   row-parity planes, col parity folded into channels
    # w_ref:  (6, 2C, N)        bf16   w[2*kh] = [W(kh,0); W(kh,1)], w[2*kh+1] = [W(kh,2); 0]
    # g_ref, b_ref: (1, N)      f32    LayerNorm affine
    # o_ref:  (bt, Ho*Wo, N)           output (junk rows dropped at store time)
    # acc_ref: (Lacc, N)        f32    VMEM accumulator (Lacc = (bt-1)*p_pad + Ho*(Wo+1))
    lacc = acc_ref.shape[0]
    n = o_ref.shape[-1]
    c = y_ref.shape[-1] // 2
    row = wo + 1

    # --- 3x3 / stride-2 conv as accumulating MXU matmuls over contiguous flat slices ---
    taps = []
    for kh in range(3):
        p, s0 = kh % 2, (kh // 2) * row
        if pair_k:
            # two K=2C dots per kh (v6e / v7x: fills the 256-deep MXU)
            taps += [(p, s0, 2 * kh, None), (p, s0 + 1, 2 * kh + 1, None)]
        else:
            # three K=C dots per kh (v5e: native 128-deep MXU)
            taps += [(p, s0, 2 * kh, 0), (p, s0, 2 * kh, 1), (p, s0 + 1, 2 * kh + 1, 0)]

    for t, (p, s0, wi, half) in enumerate(taps):
        if half is None:
            a = y_ref[p, pl.ds(s0, lacc), :]                         # (Lacc, 2C)
            wmat = w_ref[wi]                                         # (2C, N)
        else:
            a = y_ref[p, pl.ds(s0, lacc), pl.ds(half * c, c)]        # (Lacc, C), lane-aligned
            wmat = w_ref[wi, pl.ds(half * c, c), :]                  # (C, N)
        contrib = jnp.dot(a, wmat, preferred_element_type=jnp.float32)
        if t == 0:
            acc_ref[...] = contrib
        else:
            acc_ref[...] += contrib

    # --- fused LayerNorm + junk-row drop + store, one output row-block at a time ---
    gam = g_ref[...]
    bet = b_ref[...]
    inv_n = 1.0 / n
    for bi in range(bt):
        base = bi * p_pad
        for i in range(ho):
            rows = acc_ref[pl.ds(base + i * row, wo), :]             # (Wo, N) f32, skips j==Wo junk
            mean = jnp.sum(rows, axis=-1, keepdims=True) * inv_n
            var = jnp.sum(rows * rows, axis=-1, keepdims=True) * inv_n - mean * mean
            inv = lax.rsqrt(jnp.maximum(var, 0.0) + LN_EPS)          # clamp: one-pass var can dip < 0
            o_ref[bi, pl.ds(i * wo, wo), :] = (
                (rows - mean) * inv * gam + bet).astype(o_ref.dtype)


def _pick_block_batch(batch, m_img, target_m=256):
    """Images per grid step: push M towards >=256 but keep >=2 grid steps (v7x megacore)."""
    divisors = [d for d in range(1, batch + 1) if batch % d == 0]
    cands = [d for d in divisors if batch // d >= 2] or [batch]
    for d in cands:
        if d * m_img >= target_m:
            return d
    return cands[-1]


def conv_downsampler(x, conv_w, gamma, beta, *, out_dtype=jnp.bfloat16, pair_k=None):
    """x: (B,H,W,C) f32; conv_w: (2C,C,3,3) PyTorch OIHW; gamma/beta: (2C,)."""
    B, H, W, C = x.shape
    N = 2 * C
    Ho = (H - 1) // 2 + 1
    Wo = (W - 1) // 2 + 1
    P = (Ho + 1) * (Wo + 1)                 # real rows per flattened phase plane
    M_img = Ho * (Wo + 1)                   # overcomputed output slots per image (junk col j==Wo)
    P_pad = ((P + 1 + 15) // 16) * 16       # >= M_img + Wo + 2, 16-sublane aligned (bf16)

    if pair_k is None:
        try:
            pair_k = "v5" not in jax.devices()[0].device_kind.lower()
        except Exception:
            pair_k = True

    Bt = _pick_block_batch(B, M_img)
    Lacc = (Bt - 1) * P_pad + M_img

    # --- wrapper glue (~1x bf16 traffic): pad + column-parity fold + row-parity split ---
    # TODO(synk): audit in xprof that this pad/reshape/moveaxis chain fuses into a single
    # HBM pass (read x once, write planes once); restructure if XLA does not fuse it.
    xb = x.astype(jnp.bfloat16)
    Hp, Wp = 2 * Ho + 2, 2 * Wo + 2
    x_pad = jnp.pad(xb, ((0, 0), (1, Hp - 1 - H), (1, Wp - 1 - W), (0, 0)))
    xw = x_pad.reshape(B, Hp, Wo + 1, N)            # fold column parity q into channels
    xw = xw.reshape(B, Ho + 1, 2, Wo + 1, N)        # expose row parity p
    planes = jnp.moveaxis(xw, 2, 0)                 # (2, B, Ho+1, Wo+1, 2C)
    planes = planes.reshape(2, B, P, N)
    planes = jnp.pad(planes, ((0, 0), (0, 0), (0, P_pad - P), (0, 0)))
    planes = planes.reshape(2, B * P_pad, N)        # (2, B*P_pad, 2C) bf16

    # OIHW -> (kh, kw, cin, cout); pack column pairs along cin:
    #   w6[2*kh]   = [W(kh,0); W(kh,1)]   used at flat offset (kh//2)*(Wo+1)
    #   w6[2*kh+1] = [W(kh,2); 0      ]   used at flat offset (kh//2)*(Wo+1) + 1
    w_hwio = jnp.transpose(conv_w, (2, 3, 1, 0)).astype(jnp.bfloat16)   # (3,3,C,N)
    zeros = jnp.zeros((C, N), jnp.bfloat16)
    w6 = jnp.stack(
        [jnp.concatenate([w_hwio[kh, 0], w_hwio[kh, 1]], axis=0) if t == 0
         else jnp.concatenate([w_hwio[kh, 2], zeros], axis=0)
         for kh in range(3) for t in range(2)], axis=0)                 # (6, 2C, N)

    g = gamma.reshape(1, N).astype(jnp.float32)
    b = beta.reshape(1, N).astype(jnp.float32)

    kern = functools.partial(_conv_down_ln_kernel, bt=Bt, ho=Ho, wo=Wo,
                             p_pad=P_pad, pair_k=pair_k)

    flops = 2 * B * Ho * Wo * 9 * C * N
    bytes_accessed = ((planes.size + w6.size) * 2
                      + B * Ho * Wo * N * jnp.dtype(out_dtype).itemsize + 2 * N * 4)

    out_flat = pl.pallas_call(
        kern,
        out_shape=jax.ShapeDtypeStruct((B, Ho * Wo, N), out_dtype),
        grid_spec=pltpu.PrefetchScalarGridSpec(
            num_scalar_prefetch=0,
            grid=(B // Bt,),
            in_specs=[
                # Bt images' phase planes per step; (Bt*P_pad, 2C) is (8,128)-aligned.
                pl.BlockSpec((2, Bt * P_pad, N), lambda i: (0, i, 0)),
                pl.BlockSpec((6, 2 * C, N), lambda i: (0, 0, 0)),   # resident weight
                pl.BlockSpec((1, N), lambda i: (0, 0)),             # gamma
                pl.BlockSpec((1, N), lambda i: (0, 0)),             # beta
            ],
            out_specs=pl.BlockSpec((Bt, Ho * Wo, N), lambda i: (i, 0, 0)),
            scratch_shapes=[pltpu.VMEM((Lacc, N), jnp.float32)],    # f32 accumulator
        ),
        compiler_params=pltpu.CompilerParams(
            dimension_semantics=("parallel",),                      # batch axis -> megacore
            vmem_limit_bytes=48 * 1024 * 1024,                      # safe on v5e/v6e/v7x
        ),
        cost_estimate=pl.CostEstimate(flops=flops, transcendentals=B * Ho * Wo,
                                      bytes_accessed=bytes_accessed),
    )(planes, w6, g, b)

    return out_flat.reshape(B, Ho, Wo, N)


def _reference(x, conv_w, gamma, beta):
    """Pure-JAX f32 reference matching the PyTorch forward."""
    w_hwio = jnp.transpose(conv_w, (2, 3, 1, 0))
    y = lax.conv_general_dilated(
        x, w_hwio, window_strides=(2, 2), padding=((1, 1), (1, 1)),
        dimension_numbers=("NHWC", "HWIO", "NHWC"))
    mean = jnp.mean(y, axis=-1, keepdims=True)
    var = jnp.mean((y - mean) ** 2, axis=-1, keepdims=True)
    return (y - mean) * lax.rsqrt(var + LN_EPS) * gamma + beta


if __name__ == "__main__":
    # dim=128 -> N = 2*dim = 256 (lane-dense, 128-aligned channels).
    B, H, W, dim = 2, 16, 16, 128
    key = jax.random.PRNGKey(0)
    kx, kw = jax.random.split(key)

    x = jax.random.normal(kx, (B, H, W, dim), dtype=jnp.float32)
    # Conv2d(dim, 2*dim, 3, stride=2, padding=1, bias=False) weight: (2*dim, dim, 3, 3)
    conv_w = jax.random.normal(kw, (2 * dim, dim, 3, 3), dtype=jnp.float32) * 0.1
    # LayerNorm(2*dim) default init
    gamma = jnp.ones((2 * dim,), dtype=jnp.float32)
    beta = jnp.zeros((2 * dim,), dtype=jnp.float32)

    out = jax.block_until_ready(jax.jit(conv_downsampler)(x, conv_w, gamma, beta))
    ref = _reference(x, conv_w, gamma, beta)

    assert out.shape == (B, H // 2, W // 2, 2 * dim), out.shape
    # bf16 MXU inputs + bf16 output vs f32 reference: bf16 rounding over the K=9*dim
    # contraction plus output quantization gives ~2-3e-2 worst-case abs error.
    err = float(jnp.max(jnp.abs(out.astype(jnp.float32) - ref)))
    assert err < 6e-2, err

    print("KERNEL_OK")
</pallas_src>

<mosaic_0001>
module attributes {stable_mosaic.version = 11 : i64} {
  func.func @_conv_down_ln_kernel(%arg0: i32, %arg1: memref<2x96x256xbf16, #tpu.memory_space<vmem>>, %arg2: memref<6x256x256xbf16, #tpu.memory_space<vmem>>, %arg3: memref<1x256xf32, #tpu.memory_space<vmem>>, %arg4: memref<1x256xf32, #tpu.memory_space<vmem>>, %arg5: memref<1x64x256xbf16, #tpu.memory_space<vmem>>, %arg6: memref<72x256xf32, #tpu.memory_space<vmem>>) attributes {dimension_semantics = [#tpu.dimension_semantics<parallel>], iteration_bounds = array<i64: 2>, scalar_prefetch = 0 : i64, scratch_operands = 1 : i64, tpu.core_type = #tpu.core_type<tc>, window_params = [{transform_indices = @transform_0, window_bounds = array<i64: 2, 96, 256>}, {pipeline_mode = #tpu.pipeline_mode<synchronous>, transform_indices = @transform_1, window_bounds = array<i64: 6, 256, 256>}, {pipeline_mode = #tpu.pipeline_mode<synchronous>, transform_indices = @transform_2, window_bounds = array<i64: 1, 256>}, {pipeline_mode = #tpu.pipeline_mode<synchronous>, transform_indices = @transform_3, window_bounds = array<i64: 1, 256>}, {transform_indices = @transform_4, window_bounds = array<i64: 1, 64, 256>}]} {
    %c0 = arith.constant 0 : index
    %c0_0 = arith.constant 0 : index
    %c0_1 = arith.constant 0 : index
    %0 = vector.load %arg1[%c0, %c0_0, %c0_1] : memref<2x96x256xbf16, #tpu.memory_space<vmem>>, vector<1x72x256xbf16>
    %1 = vector.shape_cast %0 : vector<1x72x256xbf16> to vector<72x256xbf16>
    %c0_2 = arith.constant 0 : index
    %c0_3 = arith.constant 0 : index
    %c0_4 = arith.constant 0 : index
    %2 = vector.load %arg2[%c0_2, %c0_3, %c0_4] : memref<6x256x256xbf16, #tpu.memory_space<vmem>>, vector<1x256x256xbf16>
    %3 = vector.shape_cast %2 : vector<1x256x256xbf16> to vector<256x256xbf16>
    %cst = arith.constant dense<0.000000e+00> : vector<72x256xf32>
    %4 = tpu.matmul %1, %3, %cst {dimension_numbers = #tpu.dot_dimension_numbers<[1], [0], [0], [1], [0, 0, 1, 1], [], []>} : vector<72x256xbf16>, vector<256x256xbf16>, vector<72x256xf32> -> vector<72x256xf32>
    %c0_5 = arith.constant 0 : index
    %c0_6 = arith.constant 0 : index
    %5 = vector.load %arg6[%c0_5, %c0_6] : memref<72x256xf32, #tpu.memory_space<vmem>>, vector<72x256xf32>
    tpu.vector_store %arg6[%c0_5, %c0_6], %4 {strides = array<i32>} : memref<72x256xf32, #tpu.memory_space<vmem>>, vector<72x256xf32>,
    %c0_7 = arith.constant 0 : index
    %c1 = arith.constant 1 : index
    %c0_8 = arith.constant 0 : index
    %6 = vector.load %arg1[%c0_7, %c1, %c0_8] : memref<2x96x256xbf16, #tpu.memory_space<vmem>>, vector<1x72x256xbf16>
    %7 = vector.shape_cast %6 : vector<1x72x256xbf16> to vector<72x256xbf16>
    %c1_9 = arith.constant 1 : index
    %c0_10 = arith.constant 0 : index
    %c0_11 = arith.constant 0 : index
    %8 = vector.load %arg2[%c1_9, %c0_10, %c0_11] : memref<6x256x256xbf16, #tpu.memory_space<vmem>>, vector<1x256x256xbf16>
    %9 = vector.shape_cast %8 : vector<1x256x256xbf16> to vector<256x256xbf16>
    %cst_12 = arith.constant dense<0.000000e+00> : vector<72x256xf32>
    %10 = tpu.matmul %7, %9, %cst_12 {dimension_numbers = #tpu.dot_dimension_numbers<[1], [0], [0], [1], [0, 0, 1, 1], [], []>} : vector<72x256xbf16>, vector<256x256xbf16>, vector<72x256xf32> -> vector<72x256xf32>
    %c0_13 = arith.constant 0 : index
    %c0_14 = arith.constant 0 : index
    %11 = vector.load %arg6[%c0_13, %c0_14] : memref<72x256xf32, #tpu.memory_space<vmem>>, vector<72x256xf32>
    %12 = arith.addf %11, %10 : vector<72x256xf32>
    %c0_15 = arith.constant 0 : index
    %c0_16 = arith.constant 0 : index
    %13 = vector.load %arg6[%c0_15, %c0_16] : memref<72x256xf32, #tpu.memory_space<vmem>>, vector<72x256xf32>
    tpu.vector_store %arg6[%c0_15, %c0_16], %12 {strides = array<i32>} : memref<72x256xf32, #tpu.memory_space<vmem>>, vector<72x256xf32>,
    %c1_17 = arith.constant 1 : index
    %c0_18 = arith.constant 0 : index
    %c0_19 = arith.constant 0 : index
    %14 = vector.load %arg1[%c1_17, %c0_18, %c0_19] : memref<2x96x256xbf16, #tpu.memory_space<vmem>>, vector<1x72x256xbf16>
    %15 = vector.shape_cast %14 : vector<1x72x256xbf16> to vector<72x256xbf16>
    %c2 = arith.constant 2 : index
    %c0_20 = arith.constant 0 : index
    %c0_21 = arith.constant 0 : index
    %16 = vector.load %arg2[%c2, %c0_20, %c0_21] : memref<6x256x256xbf16, #tpu.memory_space<vmem>>, vector<1x256x256xbf16>
    %17 = vector.shape_cast %16 : vector<1x256x256xbf16> to vector<256x256xbf16>
    %cst_22 = arith.constant dense<0.000000e+00> : vector<72x256xf32>
    %18 = tpu.matmul %15, %17, %cst_22 {dimension_numbers = #tpu.dot_dimension_numbers<[1], [0], [0], [1], [0, 0, 1, 1], [], []>} : vector<72x256xbf16>, vector<256x256xbf16>, vector<72x256xf32> -> vector<72x256xf32>
    %c0_23 = arith.constant 0 : index
    %c0_24 = arith.constant 0 : index
    %19 = vector.load %arg6[%c0_23, %c0_24] : memref<72x256xf32, #tpu.memory_space<vmem>>, vector<72x256xf32>
    %20 = arith.addf %19, %18 : vector<72x256xf32>
    %c0_25 = arith.constant 0 : index
    %c0_26 = arith.constant 0 : index
    %21 = vector.load %arg6[%c0_25, %c0_26] : memref<72x256xf32, #tpu.memory_space<vmem>>, vector<72x256xf32>
    tpu.vector_store %arg6[%c0_25, %c0_26], %20 {strides = array<i32>} : memref<72x256xf32, #tpu.memory_space<vmem>>, vector<72x256xf32>,
    %c1_27 = arith.constant 1 : index
    %c1_28 = arith.constant 1 : index
    %c0_29 = arith.constant 0 : index
    %22 = vector.load %arg1[%c1_27, %c1_28, %c0_29] : memref<2x96x256xbf16, #tpu.memory_space<vmem>>, vector<1x72x256xbf16>
    %23 = vector.shape_cast %22 : vector<1x72x256xbf16> to vector<72x256xbf16>
    %c3 = arith.constant 3 : index
    %c0_30 = arith.constant 0 : index
    %c0_31 = arith.constant 0 : index
    %24 = vector.load %arg2[%c3, %c0_30, %c0_31] : memref<6x256x256xbf16, #tpu.memory_space<vmem>>, vector<1x256x256xbf16>
    %25 = vector.shape_cast %24 : vector<1x256x256xbf16> to vector<256x256xbf16>
    %cst_32 = arith.constant dense<0.000000e+00> : vector<72x256xf32>
    %26 = tpu.matmul %23, %25, %cst_32 {dimension_numbers = #tpu.dot_dimension_numbers<[1], [0], [0], [1], [0, 0, 1, 1], [], []>} : vector<72x256xbf16>, vector<256x256xbf16>, vector<72x256xf32> -> vector<72x256xf32>
    %c0_33 = arith.constant 0 : index
    %c0_34 = arith.constant 0 : index
    %27 = vector.load %arg6[%c0_33, %c0_34] : memref<72x256xf32, #tpu.memory_space<vmem>>, vector<72x256xf32>
    %28 = arith.addf %27, %26 : vector<72x256xf32>
    %c0_35 = arith.constant 0 : index
    %c0_36 = arith.constant 0 : index
    %29 = vector.load %arg6[%c0_35, %c0_36] : memref<72x256xf32, #tpu.memory_space<vmem>>, vector<72x256xf32>
    tpu.vector_store %arg6[%c0_35, %c0_36], %28 {strides = array<i32>} : memref<72x256xf32, #tpu.memory_space<vmem>>, vector<72x256xf32>,
    %c0_37 = arith.constant 0 : index
    %c9 = arith.constant 9 : index
    %c0_38 = arith.constant 0 : index
    %30 = vector.load %arg1[%c0_37, %c9, %c0_38] : memref<2x96x256xbf16, #tpu.memory_space<vmem>>, vector<1x72x256xbf16>
    %31 = vector.shape_cast %30 : vector<1x72x256xbf16> to vector<72x256xbf16>
    %c4 = arith.constant 4 : index
    %c0_39 = arith.constant 0 : index
    %c0_40 = arith.constant 0 : index
    %32 = vector.load %arg2[%c4, %c0_39, %c0_40] : memref<6x256x256xbf16, #tpu.memory_space<vmem>>, vector<1x256x256xbf16>
    %33 = vector.shape_cast %32 : vector<1x256x256xbf16> to vector<256x256xbf16>
    %cst_41 = arith.constant dense<0.000000e+00> : vector<72x256xf32>
    %34 = tpu.matmul %31, %33, %cst_41 {dimension_numbers = #tpu.dot_dimension_numbers<[1], [0], [0], [1], [0, 0, 1, 1], [], []>} : vector<72x256xbf16>, vector<256x256xbf16>, vector<72x256xf32> -> vector<72x256xf32>
    %c0_42 = arith.constant 0 : index
    %c0_43 = arith.constant 0 : index
    %35 = vector.load %arg6[%c0_42, %c0_43] : memref<72x256xf32, #tpu.memory_space<vmem>>, vector<72x256xf32>
    %36 = arith.addf %35, %34 : vector<72x256xf32>
    %c0_44 = arith.constant 0 : index
    %c0_45 = arith.constant 0 : index
    %37 = vector.load %arg6[%c0_44, %c0_45] : memref<72x256xf32, #tpu.memory_space<vmem>>, vector<72x256xf32>
    tpu.vector_store %arg6[%c0_44, %c0_45], %36 {strides = array<i32>} : memref<72x256xf32, #tpu.memory_space<vmem>>, vector<72x256xf32>,
    %c0_46 = arith.constant 0 : index
    %c10 = arith.constant 10 : index
    %c0_47 = arith.constant 0 : index
    %38 = vector.load %arg1[%c0_46, %c10, %c0_47] : memref<2x96x256xbf16, #tpu.memory_space<vmem>>, vector<1x72x256xbf16>
    %39 = vector.shape_cast %38 : vector<1x72x256xbf16> to vector<72x256xbf16>
    %c5 = arith.constant 5 : index
    %c0_48 = arith.constant 0 : index
    %c0_49 = arith.constant 0 : index
    %40 = vector.load %arg2[%c5, %c0_48, %c0_49] : memref<6x256x256xbf16, #tpu.memory_space<vmem>>, vector<1x256x256xbf16>
    %41 = vector.shape_cast %40 : vector<1x256x256xbf16> to vector<256x256xbf16>
    %cst_50 = arith.constant dense<0.000000e+00> : vector<72x256xf32>
    %42 = tpu.matmul %39, %41, %cst_50 {dimension_numbers = #tpu.dot_dimension_numbers<[1], [0], [0], [1], [0, 0, 1, 1], [], []>} : vector<72x256xbf16>, vector<256x256xbf16>, vector<72x256xf32> -> vector<72x256xf32>
    %c0_51 = arith.constant 0 : index
    %c0_52 = arith.constant 0 : index
    %43 = vector.load %arg6[%c0_51, %c0_52] : memref<72x256xf32, #tpu.memory_space<vmem>>, vector<72x256xf32>
    %44 = arith.addf %43, %42 : vector<72x256xf32>
    %c0_53 = arith.constant 0 : index
    %c0_54 = arith.constant 0 : index
    %45 = vector.load %arg6[%c0_53, %c0_54] : memref<72x256xf32, #tpu.memory_space<vmem>>, vector<72x256xf32>
    tpu.vector_store %arg6[%c0_53, %c0_54], %44 {strides = array<i32>} : memref<72x256xf32, #tpu.memory_space<vmem>>, vector<72x256xf32>,
    %c0_55 = arith.constant 0 : index
    %c0_56 = arith.constant 0 : index
    %46 = vector.load %arg3[%c0_55, %c0_56] : memref<1x256xf32, #tpu.memory_space<vmem>>, vector<1x256xf32>
    %c0_57 = arith.constant 0 : index
    %c0_58 = arith.constant 0 : index
    %47 = vector.load %arg4[%c0_57, %c0_58] : memref<1x256xf32, #tpu.memory_space<vmem>>, vector<1x256xf32>
    %c0_59 = arith.constant 0 : index
    %c0_60 = arith.constant 0 : index
    %48 = vector.load %arg6[%c0_59, %c0_60] : memref<72x256xf32, #tpu.memory_space<vmem>>, vector<8x256xf32>
    %cst_61 = arith.constant dense<0.000000e+00> : vector<8xf32>
    %49 = vector.multi_reduction <add>, %48, %cst_61 [1] : vector<8x256xf32> to vector<8xf32>
    %50 = vector.shape_cast %49 : vector<8xf32> to vector<8x1xf32>
    %cst_62 = arith.constant 3.906250e-03 : f32
    %51 = vector.broadcast %cst_62 : f32 to vector<8x1xf32>
    %52 = arith.mulf %50, %51 : vector<8x1xf32>
    %53 = arith.mulf %48, %48 : vector<8x256xf32>
    %cst_63 = arith.constant dense<0.000000e+00> : vector<8xf32>
    %54 = vector.multi_reduction <add>, %53, %cst_63 [1] : vector<8x256xf32> to vector<8xf32>
    %55 = vector.shape_cast %54 : vector<8xf32> to vector<8x1xf32>
    %cst_64 = arith.constant 3.906250e-03 : f32
    %56 = vector.broadcast %cst_64 : f32 to vector<8x1xf32>
    %57 = arith.mulf %55, %56 : vector<8x1xf32>
    %58 = arith.mulf %52, %52 : vector<8x1xf32>
    %59 = arith.subf %57, %58 : vector<8x1xf32>
    %cst_65 = arith.constant 0.000000e+00 : f32
    %60 = vector.broadcast %cst_65 : f32 to vector<8x1xf32>
    %61 = arith.maximumf %59, %60 : vector<8x1xf32>
    %cst_66 = arith.constant 9.99999974E-6 : f32
    %62 = vector.broadcast %cst_66 : f32 to vector<8x1xf32>
    %63 = arith.addf %61, %62 : vector<8x1xf32>
    %64 = math.rsqrt %63 : vector<8x1xf32>
    %65 = vector.broadcast %52 : vector<8x1xf32> to vector<8x256xf32>
    %66 = arith.subf %48, %65 : vector<8x256xf32>
    %67 = vector.broadcast %64 : vector<8x1xf32> to vector<8x256xf32>
    %68 = arith.mulf %66, %67 : vector<8x256xf32>
    %69 = vector.broadcast %46 : vector<1x256xf32> to vector<8x256xf32>
    %70 = arith.mulf %68, %69 : vector<8x256xf32>
    %71 = vector.broadcast %47 : vector<1x256xf32> to vector<8x256xf32>
    %72 = arith.addf %70, %71 : vector<8x256xf32>
    %73 = arith.truncf %72 : vector<8x256xf32> to vector<8x256xbf16>
    %c0_67 = arith.constant 0 : index
    %c0_68 = arith.constant 0 : index
    %c0_69 = arith.constant 0 : index
    %74 = vector.load %arg5[%c0_67, %c0_68, %c0_69] : memref<1x64x256xbf16, #tpu.memory_space<vmem>>, vector<1x8x256xbf16>
    %75 = vector.shape_cast %74 : vector<1x8x256xbf16> to vector<8x256xbf16>
    %76 = vector.shape_cast %73 : vector<8x256xbf16> to vector<1x8x256xbf16>
    tpu.vector_store %arg5[%c0_67, %c0_68, %c0_69], %76 {strides = array<i32>} : memref<1x64x256xbf16, #tpu.memory_space<vmem>>, vector<1x8x256xbf16>,
    %c9_70 = arith.constant 9 : index
    %c0_71 = arith.constant 0 : index
    %77 = vector.load %arg6[%c9_70, %c0_71] : memref<72x256xf32, #tpu.memory_space<vmem>>, vector<8x256xf32>
    %cst_72 = arith.constant dense<0.000000e+00> : vector<8xf32>
    %78 = vector.multi_reduction <add>, %77, %cst_72 [1] : vector<8x256xf32> to vector<8xf32>
    %79 = vector.shape_cast %78 : vector<8xf32> to vector<8x1xf32>
    %cst_73 = arith.constant 3.906250e-03 : f32
    %80 = vector.broadcast %cst_73 : f32 to vector<8x1xf32>
    %81 = arith.mulf %79, %80 : vector<8x1xf32>
    %82 = arith.mulf %77, %77 : vector<8x256xf32>
    %cst_74 = arith.constant dense<0.000000e+00> : vector<8xf32>
    %83 = vector.multi_reduction <add>, %82, %cst_74 [1] : vector<8x256xf32> to vector<8xf32>
    %84 = vector.shape_cast %83 : vector<8xf32> to vector<8x1xf32>
    %cst_75 = arith.constant 3.906250e-03 : f32
    %85 = vector.broadcast %cst_75 : f32 to vector<8x1xf32>
    %86 = arith.mulf %84, %85 : vector<8x1xf32>
    %87 = arith.mulf %81, %81 : vector<8x1xf32>
    %88 = arith.subf %86, %87 : vector<8x1xf32>
    %cst_76 = arith.constant 0.000000e+00 : f32
    %89 = vector.broadcast %cst_76 : f32 to vector<8x1xf32>
    %90 = arith.maximumf %88, %89 : vector<8x1xf32>
    %cst_77 = arith.constant 9.99999974E-6 : f32
    %91 = vector.broadcast %cst_77 : f32 to vector<8x1xf32>
    %92 = arith.addf %90, %91 : vector<8x1xf32>
    %93 = math.rsqrt %92 : vector<8x1xf32>
    %94 = vector.broadcast %81 : vector<8x1xf32> to vector<8x256xf32>
    %95 = arith.subf %77, %94 : vector<8x256xf32>
    %96 = vector.broadcast %93 : vector<8x1xf32> to vector<8x256xf32>
    %97 = arith.mulf %95, %96 : vector<8x256xf32>
    %98 = vector.broadcast %46 : vector<1x256xf32> to vector<8x256xf32>
    %99 = arith.mulf %97, %98 : vector<8x256xf32>
    %100 = vector.broadcast %47 : vector<1x256xf32> to vector<8x256xf32>
    %101 = arith.addf %99, %100 : vector<8x256xf32>
    %102 = arith.truncf %101 : vector<8x256xf32> to vector<8x256xbf16>
    %c0_78 = arith.constant 0 : index
    %c8 = arith.constant 8 : index
    %c0_79 = arith.constant 0 : index
    %103 = vector.load %arg5[%c0_78, %c8, %c0_79] : memref<1x64x256xbf16, #tpu.memory_space<vmem>>, vector<1x8x256xbf16>
    %104 = vector.shape_cast %103 : vector<1x8x256xbf16> to vector<8x256xbf16>
    %105 = vector.shape_cast %102 : vector<8x256xbf16> to vector<1x8x256xbf16>
    tpu.vector_store %arg5[%c0_78, %c8, %c0_79], %105 {strides = array<i32>} : memref<1x64x256xbf16, #tpu.memory_space<vmem>>, vector<1x8x256xbf16>,
    %c18 = arith.constant 18 : index
    %c0_80 = arith.constant 0 : index
    %106 = vector.load %arg6[%c18, %c0_80] : memref<72x256xf32, #tpu.memory_space<vmem>>, vector<8x256xf32>
    %cst_81 = arith.constant dense<0.000000e+00> : vector<8xf32>
    %107 = vector.multi_reduction <add>, %106, %cst_81 [1] : vector<8x256xf32> to vector<8xf32>
    %108 = vector.shape_cast %107 : vector<8xf32> to vector<8x1xf32>
    %cst_82 = arith.constant 3.906250e-03 : f32
    %109 = vector.broadcast %cst_82 : f32 to vector<8x1xf32>
    %110 = arith.mulf %108, %109 : vector<8x1xf32>
    %111 = arith.mulf %106, %106 : vector<8x256xf32>
    %cst_83 = arith.constant dense<0.000000e+00> : vector<8xf32>
    %112 = vector.multi_reduction <add>, %111, %cst_83 [1] : vector<8x256xf32> to vector<8xf32>
    %113 = vector.shape_cast %112 : vector<8xf32> to vector<8x1xf32>
    %cst_84 = arith.constant 3.906250e-03 : f32
    %114 = vector.broadcast %cst_84 : f32 to vector<8x1xf32>
    %115 = arith.mulf %113, %114 : vector<8x1xf32>
    %116 = arith.mulf %110, %110 : vector<8x1xf32>
    %117 = arith.subf %115, %116 : vector<8x1xf32>
    %cst_85 = arith.constant 0.000000e+00 : f32
    %118 = vector.broadcast %cst_85 : f32 to vector<8x1xf32>
    %119 = arith.maximumf %117, %118 : vector<8x1xf32>
    %cst_86 = arith.constant 9.99999974E-6 : f32
    %120 = vector.broadcast %cst_86 : f32 to vector<8x1xf32>
    %121 = arith.addf %119, %120 : vector<8x1xf32>
    %122 = math.rsqrt %121 : vector<8x1xf32>
    %123 = vector.broadcast %110 : vector<8x1xf32> to vector<8x256xf32>
    %124 = arith.subf %106, %123 : vector<8x256xf32>
    %125 = vector.broadcast %122 : vector<8x1xf32> to vector<8x256xf32>
    %126 = arith.mulf %124, %125 : vector<8x256xf32>
    %127 = vector.broadcast %46 : vector<1x256xf32> to vector<8x256xf32>
    %128 = arith.mulf %126, %127 : vector<8x256xf32>
    %129 = vector.broadcast %47 : vector<1x256xf32> to vector<8x256xf32>
    %130 = arith.addf %128, %129 : vector<8x256xf32>
    %131 = arith.truncf %130 : vector<8x256xf32> to vector<8x256xbf16>
    %c0_87 = arith.constant 0 : index
    %c16 = arith.constant 16 : index
    %c0_88 = arith.constant 0 : index
    %132 = vector.load %arg5[%c0_87, %c16, %c0_88] : memref<1x64x256xbf16, #tpu.memory_space<vmem>>, vector<1x8x256xbf16>
    %133 = vector.shape_cast %132 : vector<1x8x256xbf16> to vector<8x256xbf16>
    %134 = vector.shape_cast %131 : vector<8x256xbf16> to vector<1x8x256xbf16>
    tpu.vector_store %arg5[%c0_87, %c16, %c0_88], %134 {strides = array<i32>} : memref<1x64x256xbf16, #tpu.memory_space<vmem>>, vector<1x8x256xbf16>,
    %c27 = arith.constant 27 : index
    %c0_89 = arith.constant 0 : index
    %135 = vector.load %arg6[%c27, %c0_89] : memref<72x256xf32, #tpu.memory_space<vmem>>, vector<8x256xf32>
    %cst_90 = arith.constant dense<0.000000e+00> : vector<8xf32>
    %136 = vector.multi_reduction <add>, %135, %cst_90 [1] : vector<8x256xf32> to vector<8xf32>
    %137 = vector.shape_cast %136 : vector<8xf32> to vector<8x1xf32>
    %cst_91 = arith.constant 3.906250e-03 : f32
    %138 = vector.broadcast %cst_91 : f32 to vector<8x1xf32>
    %139 = arith.mulf %137, %138 : vector<8x1xf32>
    %140 = arith.mulf %135, %135 : vector<8x256xf32>
    %cst_92 = arith.constant dense<0.000000e+00> : vector<8xf32>
    %141 = vector.multi_reduction <add>, %140, %cst_92 [1] : vector<8x256xf32> to vector<8xf32>
    %142 = vector.shape_cast %141 : vector<8xf32> to vector<8x1xf32>
    %cst_93 = arith.constant 3.906250e-03 : f32
    %143 = vector.broadcast %cst_93 : f32 to vector<8x1xf32>
    %144 = arith.mulf %142, %143 : vector<8x1xf32>
    %145 = arith.mulf %139, %139 : vector<8x1xf32>
    %146 = arith.subf %144, %145 : vector<8x1xf32>
    %cst_94 = arith.constant 0.000000e+00 : f32
    %147 = vector.broadcast %cst_94 : f32 to vector<8x1xf32>
    %148 = arith.maximumf %146, %147 : vector<8x1xf32>
    %cst_95 = arith.constant 9.99999974E-6 : f32
    %149 = vector.broadcast %cst_95 : f32 to vector<8x1xf32>
    %150 = arith.addf %148, %149 : vector<8x1xf32>
    %151 = math.rsqrt %150 : vector<8x1xf32>
    %152 = vector.broadcast %139 : vector<8x1xf32> to vector<8x256xf32>
    %153 = arith.subf %135, %152 : vector<8x256xf32>
    %154 = vector.broadcast %151 : vector<8x1xf32> to vector<8x256xf32>
    %155 = arith.mulf %153, %154 : vector<8x256xf32>
    %156 = vector.broadcast %46 : vector<1x256xf32> to vector<8x256xf32>
    %157 = arith.mulf %155, %156 : vector<8x256xf32>
    %158 = vector.broadcast %47 : vector<1x256xf32> to vector<8x256xf32>
    %159 = arith.addf %157, %158 : vector<8x256xf32>
    %160 = arith.truncf %159 : vector<8x256xf32> to vector<8x256xbf16>
    %c0_96 = arith.constant 0 : index
    %c24 = arith.constant 24 : index
    %c0_97 = arith.constant 0 : index
    %161 = vector.load %arg5[%c0_96, %c24, %c0_97] : memref<1x64x256xbf16, #tpu.memory_space<vmem>>, vector<1x8x256xbf16>
    %162 = vector.shape_cast %161 : vector<1x8x256xbf16> to vector<8x256xbf16>
    %163 = vector.shape_cast %160 : vector<8x256xbf16> to vector<1x8x256xbf16>
    tpu.vector_store %arg5[%c0_96, %c24, %c0_97], %163 {strides = array<i32>} : memref<1x64x256xbf16, #tpu.memory_space<vmem>>, vector<1x8x256xbf16>,
    %c36 = arith.constant 36 : index
    %c0_98 = arith.constant 0 : index
    %164 = vector.load %arg6[%c36, %c0_98] : memref<72x256xf32, #tpu.memory_space<vmem>>, vector<8x256xf32>
    %cst_99 = arith.constant dense<0.000000e+00> : vector<8xf32>
    %165 = vector.multi_reduction <add>, %164, %cst_99 [1] : vector<8x256xf32> to vector<8xf32>
    %166 = vector.shape_cast %165 : vector<8xf32> to vector<8x1xf32>
    %cst_100 = arith.constant 3.906250e-03 : f32
    %167 = vector.broadcast %cst_100 : f32 to vector<8x1xf32>
    %168 = arith.mulf %166, %167 : vector<8x1xf32>
    %169 = arith.mulf %164, %164 : vector<8x256xf32>
    %cst_101 = arith.constant dense<0.000000e+00> : vector<8xf32>
    %170 = vector.multi_reduction <add>, %169, %cst_101 [1] : vector<8x256xf32> to vector<8xf32>
    %171 = vector.shape_cast %170 : vector<8xf32> to vector<8x1xf32>
    %cst_102 = arith.constant 3.906250e-03 : f32
    %172 = vector.broadcast %cst_102 : f32 to vector<8x1xf32>
    %173 = arith.mulf %171, %172 : vector<8x1xf32>
    %174 = arith.mulf %168, %168 : vector<8x1xf32>
    %175 = arith.subf %173, %174 : vector<8x1xf32>
    %cst_103 = arith.constant 0.000000e+00 : f32
    %176 = vector.broadcast %cst_103 : f32 to vector<8x1xf32>
    %177 = arith.maximumf %175, %176 : vector<8x1xf32>
    %cst_104 = arith.constant 9.99999974E-6 : f32
    %178 = vector.broadcast %cst_104 : f32 to vector<8x1xf32>
    %179 = arith.addf %177, %178 : vector<8x1xf32>
    %180 = math.rsqrt %179 : vector<8x1xf32>
    %181 = vector.broadcast %168 : vector<8x1xf32> to vector<8x256xf32>
    %182 = arith.subf %164, %181 : vector<8x256xf32>
    %183 = vector.broadcast %180 : vector<8x1xf32> to vector<8x256xf32>
    %184 = arith.mulf %182, %183 : vector<8x256xf32>
    %185 = vector.broadcast %46 : vector<1x256xf32> to vector<8x256xf32>
    %186 = arith.mulf %184, %185 : vector<8x256xf32>
    %187 = vector.broadcast %47 : vector<1x256xf32> to vector<8x256xf32>
    %188 = arith.addf %186, %187 : vector<8x256xf32>
    %189 = arith.truncf %188 : vector<8x256xf32> to vector<8x256xbf16>
    %c0_105 = arith.constant 0 : index
    %c32 = arith.constant 32 : index
    %c0_106 = arith.constant 0 : index
    %190 = vector.load %arg5[%c0_105, %c32, %c0_106] : memref<1x64x256xbf16, #tpu.memory_space<vmem>>, vector<1x8x256xbf16>
    %191 = vector.shape_cast %190 : vector<1x8x256xbf16> to vector<8x256xbf16>
    %192 = vector.shape_cast %189 : vector<8x256xbf16> to vector<1x8x256xbf16>
    tpu.vector_store %arg5[%c0_105, %c32, %c0_106], %192 {strides = array<i32>} : memref<1x64x256xbf16, #tpu.memory_space<vmem>>, vector<1x8x256xbf16>,
    %c45 = arith.constant 45 : index
    %c0_107 = arith.constant 0 : index
    %193 = vector.load %arg6[%c45, %c0_107] : memref<72x256xf32, #tpu.memory_space<vmem>>, vector<8x256xf32>
    %cst_108 = arith.constant dense<0.000000e+00> : vector<8xf32>
    %194 = vector.multi_reduction <add>, %193, %cst_108 [1] : vector<8x256xf32> to vector<8xf32>
    %195 = vector.shape_cast %194 : vector<8xf32> to vector<8x1xf32>
    %cst_109 = arith.constant 3.906250e-03 : f32
    %196 = vector.broadcast %cst_109 : f32 to vector<8x1xf32>
    %197 = arith.mulf %195, %196 : vector<8x1xf32>
    %198 = arith.mulf %193, %193 : vector<8x256xf32>
    %cst_110 = arith.constant dense<0.000000e+00> : vector<8xf32>
    %199 = vector.multi_reduction <add>, %198, %cst_110 [1] : vector<8x256xf32> to vector<8xf32>
    %200 = vector.shape_cast %199 : vector<8xf32> to vector<8x1xf32>
    %cst_111 = arith.constant 3.906250e-03 : f32
    %201 = vector.broadcast %cst_111 : f32 to vector<8x1xf32>
    %202 = arith.mulf %200, %201 : vector<8x1xf32>
    %203 = arith.mulf %197, %197 : vector<8x1xf32>
    %204 = arith.subf %202, %203 : vector<8x1xf32>
    %cst_112 = arith.constant 0.000000e+00 : f32
    %205 = vector.broadcast %cst_112 : f32 to vector<8x1xf32>
    %206 = arith.maximumf %204, %205 : vector<8x1xf32>
    %cst_113 = arith.constant 9.99999974E-6 : f32
    %207 = vector.broadcast %cst_113 : f32 to vector<8x1xf32>
    %208 = arith.addf %206, %207 : vector<8x1xf32>
    %209 = math.rsqrt %208 : vector<8x1xf32>
    %210 = vector.broadcast %197 : vector<8x1xf32> to vector<8x256xf32>
    %211 = arith.subf %193, %210 : vector<8x256xf32>
    %212 = vector.broadcast %209 : vector<8x1xf32> to vector<8x256xf32>
    %213 = arith.mulf %211, %212 : vector<8x256xf32>
    %214 = vector.broadcast %46 : vector<1x256xf32> to vector<8x256xf32>
    %215 = arith.mulf %213, %214 : vector<8x256xf32>
    %216 = vector.broadcast %47 : vector<1x256xf32> to vector<8x256xf32>
    %217 = arith.addf %215, %216 : vector<8x256xf32>
    %218 = arith.truncf %217 : vector<8x256xf32> to vector<8x256xbf16>
    %c0_114 = arith.constant 0 : index
    %c40 = arith.constant 40 : index
    %c0_115 = arith.constant 0 : index
    %219 = vector.load %arg5[%c0_114, %c40, %c0_115] : memref<1x64x256xbf16, #tpu.memory_space<vmem>>, vector<1x8x256xbf16>
    %220 = vector.shape_cast %219 : vector<1x8x256xbf16> to vector<8x256xbf16>
    %221 = vector.shape_cast %218 : vector<8x256xbf16> to vector<1x8x256xbf16>
    tpu.vector_store %arg5[%c0_114, %c40, %c0_115], %221 {strides = array<i32>} : memref<1x64x256xbf16, #tpu.memory_space<vmem>>, vector<1x8x256xbf16>,
    %c54 = arith.constant 54 : index
    %c0_116 = arith.constant 0 : index
    %222 = vector.load %arg6[%c54, %c0_116] : memref<72x256xf32, #tpu.memory_space<vmem>>, vector<8x256xf32>
    %cst_117 = arith.constant dense<0.000000e+00> : vector<8xf32>
    %223 = vector.multi_reduction <add>, %222, %cst_117 [1] : vector<8x256xf32> to vector<8xf32>
    %224 = vector.shape_cast %223 : vector<8xf32> to vector<8x1xf32>
    %cst_118 = arith.constant 3.906250e-03 : f32
    %225 = vector.broadcast %cst_118 : f32 to vector<8x1xf32>
    %226 = arith.mulf %224, %225 : vector<8x1xf32>
    %227 = arith.mulf %222, %222 : vector<8x256xf32>
    %cst_119 = arith.constant dense<0.000000e+00> : vector<8xf32>
    %228 = vector.multi_reduction <add>, %227, %cst_119 [1] : vector<8x256xf32> to vector<8xf32>
    %229 = vector.shape_cast %228 : vector<8xf32> to vector<8x1xf32>
    %cst_120 = arith.constant 3.906250e-03 : f32
    %230 = vector.broadcast %cst_120 : f32 to vector<8x1xf32>
    %231 = arith.mulf %229, %230 : vector<8x1xf32>
    %232 = arith.mulf %226, %226 : vector<8x1xf32>
    %233 = arith.subf %231, %232 : vector<8x1xf32>
    %cst_121 = arith.constant 0.000000e+00 : f32
    %234 = vector.broadcast %cst_121 : f32 to vector<8x1xf32>
    %235 = arith.maximumf %233, %234 : vector<8x1xf32>
    %cst_122 = arith.constant 9.99999974E-6 : f32
    %236 = vector.broadcast %cst_122 : f32 to vector<8x1xf32>
    %237 = arith.addf %235, %236 : vector<8x1xf32>
    %238 = math.rsqrt %237 : vector<8x1xf32>
    %239 = vector.broadcast %226 : vector<8x1xf32> to vector<8x256xf32>
    %240 = arith.subf %222, %239 : vector<8x256xf32>
    %241 = vector.broadcast %238 : vector<8x1xf32> to vector<8x256xf32>
    %242 = arith.mulf %240, %241 : vector<8x256xf32>
    %243 = vector.broadcast %46 : vector<1x256xf32> to vector<8x256xf32>
    %244 = arith.mulf %242, %243 : vector<8x256xf32>
    %245 = vector.broadcast %47 : vector<1x256xf32> to vector<8x256xf32>
    %246 = arith.addf %244, %245 : vector<8x256xf32>
    %247 = arith.truncf %246 : vector<8x256xf32> to vector<8x256xbf16>
    %c0_123 = arith.constant 0 : index
    %c48 = arith.constant 48 : index
    %c0_124 = arith.constant 0 : index
    %248 = vector.load %arg5[%c0_123, %c48, %c0_124] : memref<1x64x256xbf16, #tpu.memory_space<vmem>>, vector<1x8x256xbf16>
    %249 = vector.shape_cast %248 : vector<1x8x256xbf16> to vector<8x256xbf16>
    %250 = vector.shape_cast %247 : vector<8x256xbf16> to vector<1x8x256xbf16>
    tpu.vector_store %arg5[%c0_123, %c48, %c0_124], %250 {strides = array<i32>} : memref<1x64x256xbf16, #tpu.memory_space<vmem>>, vector<1x8x256xbf16>,
    %c63 = arith.constant 63 : index
    %c0_125 = arith.constant 0 : index
    %251 = vector.load %arg6[%c63, %c0_125] : memref<72x256xf32, #tpu.memory_space<vmem>>, vector<8x256xf32>
    %cst_126 = arith.constant dense<0.000000e+00> : vector<8xf32>
    %252 = vector.multi_reduction <add>, %251, %cst_126 [1] : vector<8x256xf32> to vector<8xf32>
    %253 = vector.shape_cast %252 : vector<8xf32> to vector<8x1xf32>
    %cst_127 = arith.constant 3.906250e-03 : f32
    %254 = vector.broadcast %cst_127 : f32 to vector<8x1xf32>
    %255 = arith.mulf %253, %254 : vector<8x1xf32>
    %256 = arith.mulf %251, %251 : vector<8x256xf32>
    %cst_128 = arith.constant dense<0.000000e+00> : vector<8xf32>
    %257 = vector.multi_reduction <add>, %256, %cst_128 [1] : vector<8x256xf32> to vector<8xf32>
    %258 = vector.shape_cast %257 : vector<8xf32> to vector<8x1xf32>
    %cst_129 = arith.constant 3.906250e-03 : f32
    %259 = vector.broadcast %cst_129 : f32 to vector<8x1xf32>
    %260 = arith.mulf %258, %259 : vector<8x1xf32>
    %261 = arith.mulf %255, %255 : vector<8x1xf32>
    %262 = arith.subf %260, %261 : vector<8x1xf32>
    %cst_130 = arith.constant 0.000000e+00 : f32
    %263 = vector.broadcast %cst_130 : f32 to vector<8x1xf32>
    %264 = arith.maximumf %262, %263 : vector<8x1xf32>
    %cst_131 = arith.constant 9.99999974E-6 : f32
    %265 = vector.broadcast %cst_131 : f32 to vector<8x1xf32>
    %266 = arith.addf %264, %265 : vector<8x1xf32>
    %267 = math.rsqrt %266 : vector<8x1xf32>
    %268 = vector.broadcast %255 : vector<8x1xf32> to vector<8x256xf32>
    %269 = arith.subf %251, %268 : vector<8x256xf32>
    %270 = vector.broadcast %267 : vector<8x1xf32> to vector<8x256xf32>
    %271 = arith.mulf %269, %270 : vector<8x256xf32>
    %272 = vector.broadcast %46 : vector<1x256xf32> to vector<8x256xf32>
    %273 = arith.mulf %271, %272 : vector<8x256xf32>
    %274 = vector.broadcast %47 : vector<1x256xf32> to vector<8x256xf32>
    %275 = arith.addf %273, %274 : vector<8x256xf32>
    %276 = arith.truncf %275 : vector<8x256xf32> to vector<8x256xbf16>
    %c0_132 = arith.constant 0 : index
    %c56 = arith.constant 56 : index
    %c0_133 = arith.constant 0 : index
    %277 = vector.load %arg5[%c0_132, %c56, %c0_133] : memref<1x64x256xbf16, #tpu.memory_space<vmem>>, vector<1x8x256xbf16>
    %278 = vector.shape_cast %277 : vector<1x8x256xbf16> to vector<8x256xbf16>
    %279 = vector.shape_cast %276 : vector<8x256xbf16> to vector<1x8x256xbf16>
    tpu.vector_store %arg5[%c0_132, %c56, %c0_133], %279 {strides = array<i32>} : memref<1x64x256xbf16, #tpu.memory_space<vmem>>, vector<1x8x256xbf16>,
    return
  }
  func.func @transform_0(%arg0: i32) -> (i32, i32, i32) {
    %c0_i32 = arith.constant 0 : i32
    %c0_i32_0 = arith.constant 0 : i32
    %c0_i32_1 = arith.constant 0 : i32
    return %c0_i32, %arg0, %c0_i32_0 : i32, i32, i32
  }
  func.func @transform_1(%arg0: i32) -> (i32, i32, i32) {
    %c0_i32 = arith.constant 0 : i32
    %c0_i32_0 = arith.constant 0 : i32
    %c0_i32_1 = arith.constant 0 : i32
    %c0_i32_2 = arith.constant 0 : i32
    return %c0_i32, %c0_i32_0, %c0_i32_1 : i32, i32, i32
  }
  func.func @transform_2(%arg0: i32) -> (i32, i32) {
    %c0_i32 = arith.constant 0 : i32
    %c0_i32_0 = arith.constant 0 : i32
    %c0_i32_1 = arith.constant 0 : i32
    return %c0_i32, %c0_i32_0 : i32, i32
  }
  func.func @transform_3(%arg0: i32) -> (i32, i32) {
    %c0_i32 = arith.constant 0 : i32
    %c0_i32_0 = arith.constant 0 : i32
    %c0_i32_1 = arith.constant 0 : i32
    return %c0_i32, %c0_i32_0 : i32, i32
  }
  func.func @transform_4(%arg0: i32) -> (i32, i32, i32) {
    %c0_i32 = arith.constant 0 : i32
    %c0_i32_0 = arith.constant 0 : i32
    %c0_i32_1 = arith.constant 0 : i32
    return %arg0, %c0_i32, %c0_i32_0 : i32, i32, i32
  }
}

</mosaic_0001>

<llo_original>
// kernel: conv_downsampler.1
$region0: #{conv_downsampler.1}
  #allocation0 [shape = 'u32[]', space=smem, size = 0x4, offset = 0x4, fixed_abs, tag = 'smem constant byte address 0x4 - core index']
  #allocation1 [shape = 'u32[72,128]{1,0:T(1,128)}', space=vmem, size = 0x9000, scoped, tag = 'internal scratch']
  #allocation2 [shape = 'f32[72,256]{1,0:T(8,128)}', space=vmem, size = 0x12000, scoped, tag = 'scratch operand']
  %s0 = inlined_call_operand.vmem [shape: bf16[2,192,256], index: 0, kind: input, shape index: {}]
  %s1 = inlined_call_operand.vmem [shape: bf16[6,256,256], index: 1, kind: input, shape index: {}]
  %s2 = inlined_call_operand.vmem [shape: f32[1,256], index: 2, kind: input, shape index: {}]
  %s3 = inlined_call_operand.vmem [shape: f32[1,256], index: 3, kind: input, shape index: {}]
  %s4 = inlined_call_operand.hbm [shape: bf16[2,64,256], index: 4, kind: output, shape index: {}]
  %s5 = sld [smem:[#allocation0]]
  $region87: #{conv_downsampler.1} parent=0
    _
  %s7 = ssub.s32 1, %s5
  %s8 = scalar_select 0, %s7, %s5
  $region1: #{conv_downsampler.1} parent=0
    #allocation3 [shape = 'u8[196608]{0}', space=vmem, size = 0x30000, scoped, tag = 'input window, operand 0']
    #allocation4 [shape = 'u8[65536]{0}', space=vmem, size = 0x10000, scoped, tag = 'output window, operand 0']
    #allocation5 [shape = 's32[2]{0}', space=sflag, size = 0x8, scoped, tag = 'scoped memory for conv_downsampler.1']
    %9 = vsyncpa [#allocation5], 0
    %s10 = scalar_lea.sflag [#allocation5], 1
    %11 = vsyncpa %s10, 0
    loop: start=0, step=1, limit=4
    $region2: #{conv_downsampler.1} parent=1 // loop_pre_header
      _
    $region3: #{conv_downsampler.1} parent=1 // loop_header
      %s13 = sphi 0, %s17
      %p14 = scmp.ge.s32.totalorder %s13, 4
      %s23 = sphi 0, %s25
      %s26 = sphi 0, %s23
      %s27 = sphi 0, %s26
      %s43 = sphi 0, %s27
      %s47 = sphi 0, %s47
      %s49 = sphi 0, %s47
      %s50 = sphi 0, %s49
      %s64 = sphi 0, %s50
      %s68 = sphi 0, %s68
      %s70 = sphi 0, %s68
      %s71 = sphi 0, %s70
      %s85 = sphi 0, %s71
      %s89 = sphi 0, %s89
      %s91 = sphi 0, %s89
      %s92 = sphi 0, %s91
      %s106 = sphi 0, %s92
      %s112 = sphi 0, %s114
      %s115 = sphi 0, %s112
      %s116 = sphi 0, %s115
      %s132 = sphi 0, %s116
    $region4: #{conv_downsampler.1} parent=1 // loop_header_branch
      %16 = sbr.rel (%p14) target = $region8
    $region5: #{conv_downsampler.1} parent=1 // loop_body
      %s18 = ssub.s32 %s13, 1
      %s19 = ssub.s32 %s13, 2
      %s20 = sadd.s32 %s13, 1
      %s21 = ssub.s32 %s13, %s20
      %p22 = scmp.eq.s32.totalorder %s21, 0
      %s24 = sadd.s32 %s23, 1
      %s25 = scalar_select %p22, %s23, %s24
      %p28 = pneg %p22
      %p29 = scmp.eq.s32.totalorder %s13, 1
      %p30 = por %p28, %p29
      %p31 = scmp.ne.s32.totalorder %s23, %s26
      %p32 = scmp.eq.s32.totalorder %s13, 0
      %p33 = por %p31, %p32
      %p34 = scmp.ne.s32.totalorder %s23, %s26
      %p35 = scmp.eq.s32.totalorder %s18, 1
      %p36 = por %p34, %p35
      %p37 = scmp.ne.s32.totalorder %s26, %s27
      %p38 = scmp.eq.s32.totalorder %s18, 0
      %p39 = por %p37, %p38
      %p40 = scmp.ne.s32.totalorder %s26, %s27
      %p41 = scmp.eq.s32.totalorder %s19, 1
      %p42 = por %p40, %p41
      %p44 = scmp.ne.s32.totalorder %s27, %s43
      %p45 = scmp.eq.s32.totalorder %s19, 0
      %p46 = por %p44, %p45
      %s48 = sadd.s32 %s47, 1
      %p51 = scmp.eq.s32.totalorder %s13, 1
      %p52 = scmp.ne.s32.totalorder %s47, %s49
      %p53 = scmp.eq.s32.totalorder %s13, 0
      %p54 = por %p52, %p53
      %p55 = scmp.ne.s32.totalorder %s47, %s49
      %p56 = scmp.eq.s32.totalorder %s18, 1
      %p57 = por %p55, %p56
      %p58 = scmp.ne.s32.totalorder %s49, %s50
      %p59 = scmp.eq.s32.totalorder %s18, 0
      %p60 = por %p58, %p59
      %p61 = scmp.ne.s32.totalorder %s49, %s50
      %p62 = scmp.eq.s32.totalorder %s19, 1
      %p63 = por %p61, %p62
      %p65 = scmp.ne.s32.totalorder %s50, %s64
      %p66 = scmp.eq.s32.totalorder %s19, 0
      %p67 = por %p65, %p66
      %s69 = sadd.s32 %s68, 1
      %p72 = scmp.eq.s32.totalorder %s13, 1
      %p73 = scmp.ne.s32.totalorder %s68, %s70
      %p74 = scmp.eq.s32.totalorder %s13, 0
      %p75 = por %p73, %p74
      %p76 = scmp.ne.s32.totalorder %s68, %s70
      %p77 = scmp.eq.s32.totalorder %s18, 1
      %p78 = por %p76, %p77
      %p79 = scmp.ne.s32.totalorder %s70, %s71
      %p80 = scmp.eq.s32.totalorder %s18, 0
      %p81 = por %p79, %p80
      %p82 = scmp.ne.s32.totalorder %s70, %s71
      %p83 = scmp.eq.s32.totalorder %s19, 1
      %p84 = por %p82, %p83
      %p86 = scmp.ne.s32.totalorder %s71, %s85
      %p87 = scmp.eq.s32.totalorder %s19, 0
      %p88 = por %p86, %p87
      %s90 = sadd.s32 %s89, 1
      %p93 = scmp.eq.s32.totalorder %s13, 1
      %p94 = scmp.ne.s32.totalorder %s89, %s91
      %p95 = scmp.eq.s32.totalorder %s13, 0
      %p96 = por %p94, %p95
      %p97 = scmp.ne.s32.totalorder %s89, %s91
      %p98 = scmp.eq.s32.totalorder %s18, 1
      %p99 = por %p97, %p98
      %p100 = scmp.ne.s32.totalorder %s91, %s92
      %p101 = scmp.eq.s32.totalorder %s18, 0
      %p102 = por %p100, %p101
      %p103 = scmp.ne.s32.totalorder %s91, %s92
      %p104 = scmp.eq.s32.totalorder %s19, 1
      %p105 = por %p103, %p104
      %p107 = scmp.ne.s32.totalorder %s92, %s106
      %p108 = scmp.eq.s32.totalorder %s19, 0
      %p109 = por %p107, %p108
      %s110 = ssub.s32 %s13, %s20
      %p111 = scmp.eq.s32.totalorder %s110, 0
      %s113 = sadd.s32 %s112, 1
      %s114 = scalar_select %p111, %s112, %s113
      %p117 = pneg %p111
      %p118 = scmp.eq.s32.totalorder %s13, 1
      %p119 = por %p117, %p118
      %p120 = scmp.ne.s32.totalorder %s112, %s115
      %p121 = scmp.eq.s32.totalorder %s13, 0
      %p122 = por %p120, %p121
      %p123 = scmp.ne.s32.totalorder %s112, %s115
      %p124 = scmp.eq.s32.totalorder %s18, 1
      %p125 = por %p123, %p124
      %p126 = scmp.ne.s32.totalorder %s115, %s116
      %p127 = scmp.eq.s32.totalorder %s18, 0
      %p128 = por %p126, %p127
      %p129 = scmp.ne.s32.totalorder %s115, %s116
      %p130 = scmp.eq.s32.totalorder %s19, 1
      %p131 = por %p129, %p130
      %p133 = scmp.ne.s32.totalorder %s116, %s132
      %p134 = scmp.eq.s32.totalorder %s19, 0
      %p135 = por %p133, %p134
      %p136 = scmp.le.s32.totalorder 1, %s13
      %p137 = scmp.lt.s32.totalorder %s13, 3
      %p138 = pnand %p136, %p137
      %p139 = pneg %p138
      // Predicated region
      $region9: #{conv_downsampler.1} parent=5 // pred_check
        _
      $region10: #{conv_downsampler.1} parent=5 // pred_check_branch
        %141 = sbr.rel (%p138) target = $region12
      $region11: #{conv_downsampler.1} parent=5 // pred_region
        %s142 = ssub.s32 %s13, 1
        // Predicated region
        $region13: #{conv_downsampler.1} parent=11 // pred_check
          %p143 = pneg %p60
        $region14: #{conv_downsampler.1} parent=11 // pred_check_branch
          %145 = sbr.rel (%p143) target = $region16
        $region15: #{conv_downsampler.1} parent=11 // pred_region
          _
        $region16: #{conv_downsampler.1} parent=11 // pred_fallthru
          _
        // Predicated region
        $region17: #{conv_downsampler.1} parent=11 // pred_check
          %p146 = pneg %p81
        $region18: #{conv_downsampler.1} parent=11 // pred_check_branch
          %148 = sbr.rel (%p146) target = $region20
        $region19: #{conv_downsampler.1} parent=11 // pred_region
          _
        $region20: #{conv_downsampler.1} parent=11 // pred_fallthru
          _
        // Predicated region
        $region21: #{conv_downsampler.1} parent=11 // pred_check
          %p149 = pneg %p102
        $region22: #{conv_downsampler.1} parent=11 // pred_check_branch
          %151 = sbr.rel (%p149) target = $region24
        $region23: #{conv_downsampler.1} parent=11 // pred_region
          _
        $region24: #{conv_downsampler.1} parent=11 // pred_fallthru
          _
      $region12: #{conv_downsampler.1} parent=5 // pred_fallthru
        _
      %p152 = scmp.lt.s32.totalorder %s13, 2
      // Predicated region
      $region25: #{conv_downsampler.1} parent=5 // pred_check
        %p153 = pneg %p152
      $region26: #{conv_downsampler.1} parent=5 // pred_check_branch
        %155 = sbr.rel (%p153) target = $region28
      $region27: #{conv_downsampler.1} parent=5 // pred_region
        // Predicated region
        $region29: #{conv_downsampler.1} parent=27 // pred_check
          %p156 = pneg %p33
        $region30: #{conv_downsampler.1} parent=27 // pred_check_branch
          %158 = sbr.rel (%p156) target = $region32
        $region31: #{conv_downsampler.1} parent=27 // pred_region
          %s159 = sand.u32 %s23, 1
          %s160 = sand.u32 %s23, 1
          %s161 = smul.addr %s160, 192
          %s162 = scalar_lea.vmem [#allocation3], %s161
          %s163 = smul.u32 12, %s13
          %s164 = smul.addr %s163, 2
          %s165 = smul.addr %s164, 4
          %s166 = scalar_lea.vmem %s0, %s165
          // Predicated region
          $region33: #{conv_downsampler.1} parent=31 // pred_check
            _
          $region34: #{conv_downsampler.1} parent=31 // pred_check_branch
            %168 = sbr.rel (0) target = $region36
          $region35: #{conv_downsampler.1} parent=31 // pred_region
            // Predicated region
            $region37: #{conv_downsampler.1} parent=35 // pred_check
              _
            $region38: #{conv_downsampler.1} parent=35 // pred_check_branch
              %170 = sbr.rel (0) target = $region40
            $region39: #{conv_downsampler.1} parent=35 // pred_region
              // Predicated region
              $region52: #{conv_downsampler.1} parent=39 // pred_check
                _
              $region53: #{conv_downsampler.1} parent=39 // pred_check_branch
                %232 = sbr.rel (0) target = $region55
              $region54: #{conv_downsampler.1} parent=39 // pred_region
                loop: start=0, step=1, limit=1
                $region56: #{conv_downsampler.1} parent=54 // loop_pre_header
                  _
                $region57: #{conv_downsampler.1} parent=54 // loop_header
                  %s234 = sphi 0, %s238
                  %p235 = scmp.ge.s32.totalorder %s234, 1
                  %s239 = sphi %s166, %s166
                  %s240 = sphi %s162, %s162
                $region58: #{conv_downsampler.1} parent=54 // loop_header_branch
                  %237 = sbr.rel (%p235) target = $region62
                $region59: #{conv_downsampler.1} parent=54 // loop_body
                  %v241 = vld [vmem:[%s239] sm:$0xff]
                  %242 = vst [vmem:[%s240] sm:$0xff] %v241
                  %v243 = vld [vmem:[%s239 + $0x8] sm:$0xff]
                  %244 = vst [vmem:[%s240 + $0x8] sm:$0xff] %v243
                  %v245 = vld [vmem:[%s239 + $0x10] sm:$0xff]
                  %246 = vst [vmem:[%s240 + $0x10] sm:$0xff] %v245
                  %v247 = vld [vmem:[%s239 + $0x18] sm:$0xff]
                  %248 = vst [vmem:[%s240 + $0x18] sm:$0xff] %v247
                  %v249 = vld [vmem:[%s239 + $0x20] sm:$0xff]
                  %250 = vst [vmem:[%s240 + $0x20] sm:$0xff] %v249
                  %v251 = vld [vmem:[%s239 + $0x28] sm:$0xff]
                  %252 = vst [vmem:[%s240 + $0x28] sm:$0xff] %v251
                  %v253 = vld [vmem:[%s239 + $0x30] sm:$0xff]
                  %254 = vst [vmem:[%s240 + $0x30] sm:$0xff] %v253
                  %v255 = vld [vmem:[%s239 + $0x38] sm:$0xff]
                  %256 = vst [vmem:[%s240 + $0x38] sm:$0xff] %v255
                  %v257 = vld [vmem:[%s239 + $0x40] sm:$0xff]
                  %258 = vst [vmem:[%s240 + $0x40] sm:$0xff] %v257
                  %v259 = vld [vmem:[%s239 + $0x48] sm:$0xff]
                  %260 = vst [vmem:[%s240 + $0x48] sm:$0xff] %v259
                  %v261 = vld [vmem:[%s239 + $0x50] sm:$0xff]
                  %262 = vst [vmem:[%s240 + $0x50] sm:$0xff] %v261
                  %v263 = vld [vmem:[%s239 + $0x58] sm:$0xff]
                  %264 = vst [vmem:[%s240 + $0x58] sm:$0xff] %v263
                  %v265 = vld [vmem:[%s239 + $0xc0] sm:$0xff]
                  %266 = vst [vmem:[%s240 + $0x60] sm:$0xff] %v265
                  %v267 = vld [vmem:[%s239 + $0xc8] sm:$0xff]
                  %268 = vst [vmem:[%s240 + $0x68] sm:$0xff] %v267
                  %v269 = vld [vmem:[%s239 + $0xd0] sm:$0xff]
                  %270 = vst [vmem:[%s240 + $0x70] sm:$0xff] %v269
                  %v271 = vld [vmem:[%s239 + $0xd8] sm:$0xff]
                  %272 = vst [vmem:[%s240 + $0x78] sm:$0xff] %v271
                  %v273 = vld [vmem:[%s239 + $0xe0] sm:$0xff]
                  %274 = vst [vmem:[%s240 + $0x80] sm:$0xff] %v273
                  %v275 = vld [vmem:[%s239 + $0xe8] sm:$0xff]
                  %276 = vst [vmem:[%s240 + $0x88] sm:$0xff] %v275
                  %v277 = vld [vmem:[%s239 + $0xf0] sm:$0xff]
                  %278 = vst [vmem:[%s240 + $0x90] sm:$0xff] %v277
                  %v279 = vld [vmem:[%s239 + $0xf8] sm:$0xff]
                  %280 = vst [vmem:[%s240 + $0x98] sm:$0xff] %v279
                  %v281 = vld [vmem:[%s239 + $0x100] sm:$0xff]
                  %282 = vst [vmem:[%s240 + $0xa0] sm:$0xff] %v281
                  %v283 = vld [vmem:[%s239 + $0x108] sm:$0xff]
                  %284 = vst [vmem:[%s240 + $0xa8] sm:$0xff] %v283
                  %v285 = vld [vmem:[%s239 + $0x110] sm:$0xff]
                  %286 = vst [vmem:[%s240 + $0xb0] sm:$0xff] %v285
                  %v287 = vld [vmem:[%s239 + $0x118] sm:$0xff]
                  %288 = vst [vmem:[%s240 + $0xb8] sm:$0xff] %v287
                $region60: #{conv_downsampler.1} parent=54 // loop_footer
                  %s238 = sadd.s32 1, %s234
                $region61: #{conv_downsampler.1} parent=54 // loop_footer_branch
                  %233 = sbr.rel target = $region57
                $region62: #{conv_downsampler.1} parent=54 // loop_exit
                  _
              $region55: #{conv_downsampler.1} parent=39 // pred_fallthru
                _
              // Predicated region
              $region63: #{conv_downsampler.1} parent=39 // pred_check
                _
              $region64: #{conv_downsampler.1} parent=39 // pred_check_branch
                %290 = sbr.rel target = $region66
              $region65: #{conv_downsampler.1} parent=39 // pred_region
                _
              $region66: #{conv_downsampler.1} parent=39 // pred_fallthru
                _
            $region40: #{conv_downsampler.1} parent=35 // pred_fallthru
              _
            // Predicated region
            $region41: #{conv_downsampler.1} parent=35 // pred_check
              _
            $region42: #{conv_downsampler.1} parent=35 // pred_check_branch
              %172 = sbr.rel target = $region44
            $region43: #{conv_downsampler.1} parent=35 // pred_region
              %s174 = ssub.s32 256, 1
              loop: start=0, step=1, limit=1
              $region45: #{conv_downsampler.1} parent=43 // loop_pre_header
                _
              $region46: #{conv_downsampler.1} parent=43 // loop_header
                %s176 = sphi 0, %s180
                %p177 = scmp.ge.s32.totalorder %s176, 1
                %s181 = sphi %s166, %s166
                %s182 = sphi %s162, %s162
              $region47: #{conv_downsampler.1} parent=43 // loop_header_branch
                %179 = sbr.rel (%p177) target = $region51
              $region48: #{conv_downsampler.1} parent=43 // loop_body
                %v183 = vld [vmem:[%s181] sm:%s174]
                %184 = vst [vmem:[%s182] sm:%s174] %v183
                %v185 = vld [vmem:[%s181 + $0x8] sm:%s174]
                %186 = vst [vmem:[%s182 + $0x8] sm:%s174] %v185
                %v187 = vld [vmem:[%s181 + $0x10] sm:%s174]
                %188 = vst [vmem:[%s182 + $0x10] sm:%s174] %v187
                %v189 = vld [vmem:[%s181 + $0x18] sm:%s174]
                %190 = vst [vmem:[%s182 + $0x18] sm:%s174] %v189
                %v191 = vld [vmem:[%s181 + $0x20] sm:%s174]
                %192 = vst [vmem:[%s182 + $0x20] sm:%s174] %v191
                %v193 = vld [vmem:[%s181 + $0x28] sm:%s174]
                %194 = vst [vmem:[%s182 + $0x28] sm:%s174] %v193
                %v195 = vld [vmem:[%s181 + $0x30] sm:%s174]
                %196 = vst [vmem:[%s182 + $0x30] sm:%s174] %v195
                %v197 = vld [vmem:[%s181 + $0x38] sm:%s174]
                %198 = vst [vmem:[%s182 + $0x38] sm:%s174] %v197
                %v199 = vld [vmem:[%s181 + $0x40] sm:%s174]
                %200 = vst [vmem:[%s182 + $0x40] sm:%s174] %v199
                %v201 = vld [vmem:[%s181 + $0x48] sm:%s174]
                %202 = vst [vmem:[%s182 + $0x48] sm:%s174] %v201
                %v203 = vld [vmem:[%s181 + $0x50] sm:%s174]
                %204 = vst [vmem:[%s182 + $0x50] sm:%s174] %v203
                %v205 = vld [vmem:[%s181 + $0x58] sm:%s174]
                %206 = vst [vmem:[%s182 + $0x58] sm:%s174] %v205
                %v207 = vld [vmem:[%s181 + $0xc0] sm:%s174]
                %208 = vst [vmem:[%s182 + $0x60] sm:%s174] %v207
                %v209 = vld [vmem:[%s181 + $0xc8] sm:%s174]
                %210 = vst [vmem:[%s182 + $0x68] sm:%s174] %v209
                %v211 = vld [vmem:[%s181 + $0xd0] sm:%s174]
                %212 = vst [vmem:[%s182 + $0x70] sm:%s174] %v211
                %v213 = vld [vmem:[%s181 + $0xd8] sm:%s174]
                %214 = vst [vmem:[%s182 + $0x78] sm:%s174] %v213
                %v215 = vld [vmem:[%s181 + $0xe0] sm:%s174]
                %216 = vst [vmem:[%s182 + $0x80] sm:%s174] %v215
                %v217 = vld [vmem:[%s181 + $0xe8] sm:%s174]
                %218 = vst [vmem:[%s182 + $0x88] sm:%s174] %v217
                %v219 = vld [vmem:[%s181 + $0xf0] sm:%s174]
                %220 = vst [vmem:[%s182 + $0x90] sm:%s174] %v219
                %v221 = vld [vmem:[%s181 + $0xf8] sm:%s174]
                %222 = vst [vmem:[%s182 + $0x98] sm:%s174] %v221
                %v223 = vld [vmem:[%s181 + $0x100] sm:%s174]
                %224 = vst [vmem:[%s182 + $0xa0] sm:%s174] %v223
                %v225 = vld [vmem:[%s181 + $0x108] sm:%s174]
                %226 = vst [vmem:[%s182 + $0xa8] sm:%s174] %v225
                %v227 = vld [vmem:[%s181 + $0x110] sm:%s174]
                %228 = vst [vmem:[%s182 + $0xb0] sm:%s174] %v227
                %v229 = vld [vmem:[%s181 + $0x118] sm:%s174]
                %230 = vst [vmem:[%s182 + $0xb8] sm:%s174] %v229
              $region49: #{conv_downsampler.1} parent=43 // loop_footer
                %s180 = sadd.s32 1, %s176
              $region50: #{conv_downsampler.1} parent=43 // loop_footer_branch
                %175 = sbr.rel target = $region46
              $region51: #{conv_downsampler.1} parent=43 // loop_exit
                _
            $region44: #{conv_downsampler.1} parent=35 // pred_fallthru
              _
          $region36: #{conv_downsampler.1} parent=31 // pred_fallthru
            _
          %291 = vnop
        $region32: #{conv_downsampler.1} parent=27 // pred_fallthru
          _
      $region28: #{conv_downsampler.1} parent=5 // pred_fallthru
        _
      %p292 = scmp.le.s32.totalorder 1, %s13
      %p293 = scmp.lt.s32.totalorder %s13, 3
      %p294 = pnand %p292, %p293
      %p295 = pneg %p294
      // Predicated region
      $region67: #{conv_downsampler.1} parent=5 // pred_check
        _
      $region68: #{conv_downsampler.1} parent=5 // pred_check_branch
        %297 = sbr.rel (%p294) target = $region70
      $region69: #{conv_downsampler.1} parent=5 // pred_region
        %s298 = ssub.s32 %s13, 1
        %s299 = sand.u32 %s26, 1
        %s300 = sand.u32 %s26, 1
        %s301 = smul.addr %s300, 192
        %s302 = scalar_lea.vmem [#allocation3], %s301
        // Predicated region
        $region71: #{conv_downsampler.1} parent=69 // pred_check
          %p303 = pneg %p39
        $region72: #{conv_downsampler.1} parent=69 // pred_check_branch
          %305 = sbr.rel (%p303) target = $region74
        $region73: #{conv_downsampler.1} parent=69 // pred_region
          _
        $region74: #{conv_downsampler.1} parent=69 // pred_fallthru
          _
        %s306 = sand.u32 %s26, 1
        %s307 = sand.u32 %s26, 1
        %s308 = smul.addr %s307, 192
        %s309 = scalar_lea.vmem [#allocation3], %s308
        %p310 = pneg %p39
        %p311 = pneg %p36
        %p312 = pneg %p60
        %p313 = pneg %p57
        %p314 = pneg %p81
        %p315 = pneg %p78
        %p316 = pneg %p102
        %p317 = pneg %p99
        %p318 = pneg %p128
        %p319 = pneg %p125
        %s320 = sand.u32 %s115, 1
        %s321 = scalar_lea.sflag [#allocation5], %s320
        %s322 = sand.u32 %s115, 1
        %s323 = smul.addr %s322, 64
        %s324 = scalar_lea.vmem [#allocation4], %s323
        %s325 = smul.u32 12, %s18
        %v326 = vld [vmem:[%s302] sm:$0xff]
        %v327 = vld [vmem:[%s302 + $0x8] sm:$0xff]
        %v328 = vld [vmem:[%s302 + $0x10] sm:$0xff]
        %v329 = vld [vmem:[%s302 + $0x18] sm:$0xff]
        %v330 = vld [vmem:[%s302 + $0x20] sm:$0xff]
        %v331 = vld [vmem:[%s302 + $0x28] sm:$0xff]
        %v332 = vld [vmem:[%s302 + $0x30] sm:$0xff]
        %v333 = vld [vmem:[%s302 + $0x38] sm:$0xff]
        %v334 = vld [vmem:[%s302 + $0x40] sm:$0xff]
        %v335 = vld [vmem:[%s1] sm:$0xff]
        %v336 = vld [vmem:[%s1 + $0x8] sm:$0xff]
        %v337 = vld [vmem:[%s1 + $0x10] sm:$0xff]
        %v338 = vld [vmem:[%s1 + $0x18] sm:$0xff]
        %v339 = vld [vmem:[%s1 + $0x20] sm:$0xff]
        %v340 = vld [vmem:[%s1 + $0x28] sm:$0xff]
        %v341 = vld [vmem:[%s1 + $0x30] sm:$0xff]
        %v342 = vld [vmem:[%s1 + $0x38] sm:$0xff]
        %v343 = vld [vmem:[%s1 + $0x40] sm:$0xff]
        %v344 = vld [vmem:[%s1 + $0x48] sm:$0xff]
        %v345 = vld [vmem:[%s1 + $0x50] sm:$0xff]
        %v346 = vld [vmem:[%s1 + $0x58] sm:$0xff]
        %v347 = vld [vmem:[%s1 + $0x60] sm:$0xff]
        %v348 = vld [vmem:[%s1 + $0x68] sm:$0xff]
        %v349 = vld [vmem:[%s1 + $0x70] sm:$0xff]
        %v350 = vld [vmem:[%s1 + $0x78] sm:$0xff]
        %v351 = vld [vmem:[%s1 + $0x80] sm:$0xff]
        %v352 = vld [vmem:[%s1 + $0x88] sm:$0xff]
        %v353 = vld [vmem:[%s1 + $0x90] sm:$0xff]
        %v354 = vld [vmem:[%s1 + $0x98] sm:$0xff]
        %v355 = vld [vmem:[%s1 + $0xa0] sm:$0xff]
        %v356 = vld [vmem:[%s1 + $0xa8] sm:$0xff]
        %v357 = vld [vmem:[%s1 + $0xb0] sm:$0xff]
        %v358 = vld [vmem:[%s1 + $0xb8] sm:$0xff]
        %v359 = vld [vmem:[%s1 + $0xc0] sm:$0xff]
        %v360 = vld [vmem:[%s1 + $0xc8] sm:$0xff]
        %v361 = vld [vmem:[%s1 + $0xd0] sm:$0xff]
        %v362 = vld [vmem:[%s1 + $0xd8] sm:$0xff]
        %v363 = vld [vmem:[%s1 + $0xe0] sm:$0xff]
        %v364 = vld [vmem:[%s1 + $0xe8] sm:$0xff]
        %v365 = vld [vmem:[%s1 + $0xf0] sm:$0xff]
        %v366 = vld [vmem:[%s1 + $0xf8] sm:$0xff]
        %v376 = vunpack.c.l.b16 %v326
        %v377 = vunpack.c.h.b16 %v326
        %v378 = vunpack.c.l.b16 %v327
        %v379 = vunpack.c.h.b16 %v327
        %v380 = vunpack.c.l.b16 %v328
        %v381 = vunpack.c.h.b16 %v328
        %v382 = vunpack.c.l.b16 %v329
        %v383 = vunpack.c.h.b16 %v329
        %v384 = vunpack.c.l.b16 %v330
        %v385 = vunpack.c.h.b16 %v330
        %v386 = vunpack.c.l.b16 %v331
        %v387 = vunpack.c.h.b16 %v331
        %v388 = vunpack.c.l.b16 %v332
        %v389 = vunpack.c.h.b16 %v332
        %v390 = vunpack.c.l.b16 %v333
        %v391 = vunpack.c.h.b16 %v333
        %v392 = vunpack.c.l.b16 %v334
        %v393 = vunpack.c.h.b16 %v334
        %v394 = vpack.c.b16 %v378, %v376
        %v395 = vpack.c.b16 %v379, %v377
        %v396 = vpack.c.b16 %v382, %v380
        %v397 = vpack.c.b16 %v383, %v381
        %v398 = vpack.c.b16 %v386, %v384
        %v399 = vpack.c.b16 %v387, %v385
        %v400 = vpack.c.b16 %v390, %v388
        %v401 = vpack.c.b16 %v391, %v389
        %v402 = vpack.c.b16 %v392, %v392
        %v403 = vpack.c.b16 %v393, %v393
        %v446 = vunpack.c.l.b16 %v335
        %v447 = vunpack.c.h.b16 %v335
        %v448 = vunpack.c.l.b16 %v336
        %v449 = vunpack.c.h.b16 %v336
        %v450 = vunpack.c.l.b16 %v337
        %v451 = vunpack.c.h.b16 %v337
        %v452 = vunpack.c.l.b16 %v338
        %v453 = vunpack.c.h.b16 %v338
        %v454 = vunpack.c.l.b16 %v339
        %v455 = vunpack.c.h.b16 %v339
        %v456 = vunpack.c.l.b16 %v340
        %v457 = vunpack.c.h.b16 %v340
        %v458 = vunpack.c.l.b16 %v341
        %v459 = vunpack.c.h.b16 %v341
        %v460 = vunpack.c.l.b16 %v342
        %v461 = vunpack.c.h.b16 %v342
        %v462 = vunpack.c.l.b16 %v343
        %v463 = vunpack.c.h.b16 %v343
        %v464 = vunpack.c.l.b16 %v344
        %v465 = vunpack.c.h.b16 %v344
        %v466 = vunpack.c.l.b16 %v345
        %v467 = vunpack.c.h.b16 %v345
        %v468 = vunpack.c.l.b16 %v346
        %v469 = vunpack.c.h.b16 %v346
        %v470 = vunpack.c.l.b16 %v347
        %v471 = vunpack.c.h.b16 %v347
        %v472 = vunpack.c.l.b16 %v348
        %v473 = vunpack.c.h.b16 %v348
        %v474 = vunpack.c.l.b16 %v349
        %v475 = vunpack.c.h.b16 %v349
        %v476 = vunpack.c.l.b16 %v350
        %v477 = vunpack.c.h.b16 %v350
        %v478 = vunpack.c.l.b16 %v351
        %v479 = vunpack.c.h.b16 %v351
        %v480 = vunpack.c.l.b16 %v352
        %v481 = vunpack.c.h.b16 %v352
        %v482 = vunpack.c.l.b16 %v353
        %v483 = vunpack.c.h.b16 %v353
        %v484 = vunpack.c.l.b16 %v354
        %v485 = vunpack.c.h.b16 %v354
        %v486 = vunpack.c.l.b16 %v355
        %v487 = vunpack.c.h.b16 %v355
        %v488 = vunpack.c.l.b16 %v356
        %v489 = vunpack.c.h.b16 %v356
        %v490 = vunpack.c.l.b16 %v357
        %v491 = vunpack.c.h.b16 %v357
        %v492 = vunpack.c.l.b16 %v358
        %v493 = vunpack.c.h.b16 %v358
        %v494 = vunpack.c.l.b16 %v359
        %v495 = vunpack.c.h.b16 %v359
        %v496 = vunpack.c.l.b16 %v360
        %v497 = vunpack.c.h.b16 %v360
        %v498 = vunpack.c.l.b16 %v361
        %v499 = vunpack.c.h.b16 %v361
        %v500 = vunpack.c.l.b16 %v362
        %v501 = vunpack.c.h.b16 %v362
        %v502 = vunpack.c.l.b16 %v363
        %v503 = vunpack.c.h.b16 %v363
        %v504 = vunpack.c.l.b16 %v364
        %v505 = vunpack.c.h.b16 %v364
        %v506 = vunpack.c.l.b16 %v365
        %v507 = vunpack.c.h.b16 %v365
        %v508 = vunpack.c.l.b16 %v366
        %v509 = vunpack.c.h.b16 %v366
        %v510 = vpack.c.b16 %v448, %v446
        %v511 = vpack.c.b16 %v449, %v447
        %v512 = vpack.c.b16 %v452, %v450
        %v513 = vpack.c.b16 %v453, %v451
        %v514 = vpack.c.b16 %v456, %v454
        %v515 = vpack.c.b16 %v457, %v455
        %v516 = vpack.c.b16 %v460, %v458
        %v517 = vpack.c.b16 %v461, %v459
        %v518 = vpack.c.b16 %v464, %v462
        %v519 = vpack.c.b16 %v465, %v463
        %v520 = vpack.c.b16 %v468, %v466
        %v521 = vpack.c.b16 %v469, %v467
        %v522 = vpack.c.b16 %v472, %v470
        %v523 = vpack.c.b16 %v473, %v471
        %v524 = vpack.c.b16 %v476, %v474
        %v525 = vpack.c.b16 %v477, %v475
        %v526 = vpack.c.b16 %v480, %v478
        %v527 = vpack.c.b16 %v481, %v479
        %v528 = vpack.c.b16 %v484, %v482
        %v529 = vpack.c.b16 %v485, %v483
        %v530 = vpack.c.b16 %v488, %v486
        %v531 = vpack.c.b16 %v489, %v487
        %v532 = vpack.c.b16 %v492, %v490
        %v533 = vpack.c.b16 %v493, %v491
        %v534 = vpack.c.b16 %v496, %v494
        %v535 = vpack.c.b16 %v497, %v495
        %v536 = vpack.c.b16 %v500, %v498
        %v537 = vpack.c.b16 %v501, %v499
        %v538 = vpack.c.b16 %v504, %v502
        %v539 = vpack.c.b16 %v505, %v503
        %v540 = vpack.c.b16 %v508, %v506
        %v541 = vpack.c.b16 %v509, %v507
        %574 = vmatpush.bf16.msra.mxu0 %v524
        %575 = vmatpush.bf16.msra.mxu0 %v522
        %576 = vmatpush.bf16.msra.mxu0 %v520
        %577 = vmatpush.bf16.msra.mxu0 %v518
        %578 = vmatpush.bf16.msra.mxu0 %v516
        %579 = vmatpush.bf16.msra.mxu0 %v514
        %580 = vmatpush.bf16.msra.mxu0 %v512
        %581 = vmatpush.bf16.msra.mxu0 %v510
        %582 = vmatmul.bf16.gmra.mxu0 %v394
        %v583 = vpop.f32.mrf.mxu0
        %v584 = vadd.f32 0.0, %v583
        %v585 = vpop.f32.mrf.mxu0
        %v586 = vadd.f32 0.0, %v585
        %587 = vmatmul.bf16.gmra.mxu0 %v396
        %v588 = vpop.f32.mrf.mxu0
        %v589 = vadd.f32 0.0, %v588
        %v590 = vpop.f32.mrf.mxu0
        %v591 = vadd.f32 0.0, %v590
        %592 = vmatmul.bf16.gmra.mxu0 %v398
        %v593 = vpop.f32.mrf.mxu0
        %v594 = vadd.f32 0.0, %v593
        %v595 = vpop.f32.mrf.mxu0
        %v596 = vadd.f32 0.0, %v595
        %597 = vmatmul.bf16.gmra.mxu0 %v400
        %v598 = vpop.f32.mrf.mxu0
        %v599 = vadd.f32 0.0, %v598
        %v600 = vpop.f32.mrf.mxu0
        %v601 = vadd.f32 0.0, %v600
        %602 = vmatmul.bf16.gmra.mxu0 %v402
        %v603 = vpop.f32.mrf.mxu0
        %v604 = vadd.f32 0.0, %v603
        %v605 = vpop.f32.mrf.mxu0
        %606 = vdwg.mxu0
        %607 = vmatpush.bf16.msra.mxu0 %v540
        %608 = vmatpush.bf16.msra.mxu0 %v538
        %609 = vmatpush.bf16.msra.mxu0 %v536
        %610 = vmatpush.bf16.msra.mxu0 %v534
        %611 = vmatpush.bf16.msra.mxu0 %v532
        %612 = vmatpush.bf16.msra.mxu0 %v530
        %613 = vmatpush.bf16.msra.mxu0 %v528
        %614 = vmatpush.bf16.msra.mxu0 %v526
        %615 = vmatmul.bf16.gmra.mxu0 %v395
        %v616 = vpop.f32.mrf.mxu0
        %v617 = vadd.f32 %v584, %v616
        %v618 = vpop.f32.mrf.mxu0
        %v619 = vadd.f32 %v586, %v618
        %620 = vmatmul.bf16.gmra.mxu0 %v397
        %v621 = vpop.f32.mrf.mxu0
        %v622 = vadd.f32 %v589, %v621
        %v623 = vpop.f32.mrf.mxu0
        %v624 = vadd.f32 %v591, %v623
        %625 = vmatmul.bf16.gmra.mxu0 %v399
        %v626 = vpop.f32.mrf.mxu0
        %v627 = vadd.f32 %v594, %v626
        %v628 = vpop.f32.mrf.mxu0
        %v629 = vadd.f32 %v596, %v628
        %630 = vmatmul.bf16.gmra.mxu0 %v401
        %v631 = vpop.f32.mrf.mxu0
        %v632 = vadd.f32 %v599, %v631
        %v633 = vpop.f32.mrf.mxu0
        %v634 = vadd.f32 %v601, %v633
        %635 = vmatmul.bf16.gmra.mxu0 %v403
        %v636 = vpop.f32.mrf.mxu0
        %v637 = vadd.f32 %v604, %v636
        %v638 = vpop.f32.mrf.mxu0
        %639 = vdwg.mxu0
        %640 = vmatpush.bf16.msra.mxu0 %v525
        %641 = vmatpush.bf16.msra.mxu0 %v523
        %642 = vmatpush.bf16.msra.mxu0 %v521
        %643 = vmatpush.bf16.msra.mxu0 %v519
        %644 = vmatpush.bf16.msra.mxu0 %v517
        %645 = vmatpush.bf16.msra.mxu0 %v515
        %646 = vmatpush.bf16.msra.mxu0 %v513
        %647 = vmatpush.bf16.msra.mxu0 %v511
        %648 = vmatmul.bf16.gmra.mxu0 %v394
        %v649 = vpop.f32.mrf.mxu0
        %v650 = vadd.f32 0.0, %v649
        %v651 = vpop.f32.mrf.mxu0
        %v652 = vadd.f32 0.0, %v651
        %653 = vmatmul.bf16.gmra.mxu0 %v396
        %v654 = vpop.f32.mrf.mxu0
        %v655 = vadd.f32 0.0, %v654
        %v656 = vpop.f32.mrf.mxu0
        %v657 = vadd.f32 0.0, %v656
        %658 = vmatmul.bf16.gmra.mxu0 %v398
        %v659 = vpop.f32.mrf.mxu0
        %v660 = vadd.f32 0.0, %v659
        %v661 = vpop.f32.mrf.mxu0
        %v662 = vadd.f32 0.0, %v661
        %663 = vmatmul.bf16.gmra.mxu0 %v400
        %v664 = vpop.f32.mrf.mxu0
        %v665 = vadd.f32 0.0, %v664
        %v666 = vpop.f32.mrf.mxu0
        %v667 = vadd.f32 0.0, %v666
        %668 = vmatmul.bf16.gmra.mxu0 %v402
        %v669 = vpop.f32.mrf.mxu0
        %v670 = vadd.f32 0.0, %v669
        %v671 = vpop.f32.mrf.mxu0
        %672 = vdwg.mxu0
        %673 = vmatpush.bf16.msra.mxu0 %v541
        %674 = vmatpush.bf16.msra.mxu0 %v539
        %675 = vmatpush.bf16.msra.mxu0 %v537
        %676 = vmatpush.bf16.msra.mxu0 %v535
        %677 = vmatpush.bf16.msra.mxu0 %v533
        %678 = vmatpush.bf16.msra.mxu0 %v531
        %679 = vmatpush.bf16.msra.mxu0 %v529
        %680 = vmatpush.bf16.msra.mxu0 %v527
        %681 = vmatmul.bf16.gmra.mxu0 %v395
        %v682 = vpop.f32.mrf.mxu0
        %v683 = vadd.f32 %v650, %v682
        %v684 = vpop.f32.mrf.mxu0
        %v685 = vadd.f32 %v652, %v684
        %686 = vmatmul.bf16.gmra.mxu0 %v397
        %v687 = vpop.f32.mrf.mxu0
        %v688 = vadd.f32 %v655, %v687
        %v689 = vpop.f32.mrf.mxu0
        %v690 = vadd.f32 %v657, %v689
        %691 = vmatmul.bf16.gmra.mxu0 %v399
        %v692 = vpop.f32.mrf.mxu0
        %v693 = vadd.f32 %v660, %v692
        %v694 = vpop.f32.mrf.mxu0
        %v695 = vadd.f32 %v662, %v694
        %696 = vmatmul.bf16.gmra.mxu0 %v401
        %v697 = vpop.f32.mrf.mxu0
        %v698 = vadd.f32 %v665, %v697
        %v699 = vpop.f32.mrf.mxu0
        %v700 = vadd.f32 %v667, %v699
        %701 = vmatmul.bf16.gmra.mxu0 %v403
        %v702 = vpop.f32.mrf.mxu0
        %v703 = vadd.f32 %v670, %v702
        %v704 = vpop.f32.mrf.mxu0
        %705 = vdwg.mxu0
        %706 = vst [vmem:[#allocation2] sm:$0xff] %v617
        %707 = vst [vmem:[#allocation2 + $0x8] sm:$0xff] %v683
        %708 = vst [vmem:[#allocation2 + $0x10] sm:$0xff] %v619
        %709 = vst [vmem:[#allocation2 + $0x18] sm:$0xff] %v685
        %710 = vst [vmem:[#allocation2 + $0x20] sm:$0xff] %v622
        %711 = vst [vmem:[#allocation2 + $0x28] sm:$0xff] %v688
        %712 = vst [vmem:[#allocation2 + $0x30] sm:$0xff] %v624
        %713 = vst [vmem:[#allocation2 + $0x38] sm:$0xff] %v690
        %714 = vst [vmem:[#allocation2 + $0x40] sm:$0xff] %v627
        %715 = vst [vmem:[#allocation2 + $0x48] sm:$0xff] %v693
        %716 = vst [vmem:[#allocation2 + $0x50] sm:$0xff] %v629
        %717 = vst [vmem:[#allocation2 + $0x58] sm:$0xff] %v695
        %718 = vst [vmem:[#allocation2 + $0x60] sm:$0xff] %v632
        %719 = vst [vmem:[#allocation2 + $0x68] sm:$0xff] %v698
        %720 = vst [vmem:[#allocation2 + $0x70] sm:$0xff] %v634
        %721 = vst [vmem:[#allocation2 + $0x78] sm:$0xff] %v700
        %722 = vst [vmem:[#allocation2 + $0x80] sm:$0xff] %v637
        %723 = vst [vmem:[#allocation2 + $0x88] sm:$0xff] %v703
        %v724 = vld [vmem:[%s302] sm:$0xff]
        %v725 = vld [vmem:[%s302 + $0x8] sm:$0xff]
        %v726 = vld [vmem:[%s302 + $0x10] sm:$0xff]
        %v727 = vld [vmem:[%s302 + $0x18] sm:$0xff]
        %v728 = vld [vmem:[%s302 + $0x20] sm:$0xff]
        %v729 = vld [vmem:[%s302 + $0x28] sm:$0xff]
        %v730 = vld [vmem:[%s302 + $0x30] sm:$0xff]
        %v731 = vld [vmem:[%s302 + $0x38] sm:$0xff]
        %v732 = vld [vmem:[%s302 + $0x40] sm:$0xff]
        %v733 = vld [vmem:[%s302 + $0x48] sm:$0x11]
        %s734 = scalar_lea.vmem %s1, 256
        %v735 = vld [vmem:[%s734] sm:$0xff]
        %v736 = vld [vmem:[%s734 + $0x8] sm:$0xff]
        %v737 = vld [vmem:[%s734 + $0x10] sm:$0xff]
        %v738 = vld [vmem:[%s734 + $0x18] sm:$0xff]
        %v739 = vld [vmem:[%s734 + $0x20] sm:$0xff]
        %v740 = vld [vmem:[%s734 + $0x28] sm:$0xff]
        %v741 = vld [vmem:[%s734 + $0x30] sm:$0xff]
        %v742 = vld [vmem:[%s734 + $0x38] sm:$0xff]
        %v743 = vld [vmem:[%s734 + $0x40] sm:$0xff]
        %v744 = vld [vmem:[%s734 + $0x48] sm:$0xff]
        %v745 = vld [vmem:[%s734 + $0x50] sm:$0xff]
        %v746 = vld [vmem:[%s734 + $0x58] sm:$0xff]
        %v747 = vld [vmem:[%s734 + $0x60] sm:$0xff]
        %v748 = vld [vmem:[%s734 + $0x68] sm:$0xff]
        %v749 = vld [vmem:[%s734 + $0x70] sm:$0xff]
        %v750 = vld [vmem:[%s734 + $0x78] sm:$0xff]
        %v751 = vld [vmem:[%s734 + $0x80] sm:$0xff]
        %v752 = vld [vmem:[%s734 + $0x88] sm:$0xff]
        %v753 = vld [vmem:[%s734 + $0x90] sm:$0xff]
        %v754 = vld [vmem:[%s734 + $0x98] sm:$0xff]
        %v755 = vld [vmem:[%s734 + $0xa0] sm:$0xff]
        %v756 = vld [vmem:[%s734 + $0xa8] sm:$0xff]
        %v757 = vld [vmem:[%s734 + $0xb0] sm:$0xff]
        %v758 = vld [vmem:[%s734 + $0xb8] sm:$0xff]
        %v759 = vld [vmem:[%s734 + $0xc0] sm:$0xff]
        %v760 = vld [vmem:[%s734 + $0xc8] sm:$0xff]
        %v761 = vld [vmem:[%s734 + $0xd0] sm:$0xff]
        %v762 = vld [vmem:[%s734 + $0xd8] sm:$0xff]
        %v763 = vld [vmem:[%s734 + $0xe0] sm:$0xff]
        %v764 = vld [vmem:[%s734 + $0xe8] sm:$0xff]
        %v765 = vld [vmem:[%s734 + $0xf0] sm:$0xff]
        %v766 = vld [vmem:[%s734 + $0xf8] sm:$0xff]
        %v777 = vunpack.c.l.b16 %v724
        %v778 = vunpack.c.h.b16 %v724
        %v779 = vunpack.c.l.b16 %v725
        %v780 = vunpack.c.h.b16 %v725
        %v781 = vunpack.c.l.b16 %v726
        %v782 = vunpack.c.h.b16 %v726
        %v783 = vunpack.c.l.b16 %v727
        %v784 = vunpack.c.h.b16 %v727
        %v785 = vunpack.c.l.b16 %v728
        %v786 = vunpack.c.h.b16 %v728
        %v787 = vunpack.c.l.b16 %v729
        %v788 = vunpack.c.h.b16 %v729
        %v789 = vunpack.c.l.b16 %v730
        %v790 = vunpack.c.h.b16 %v730
        %v791 = vunpack.c.l.b16 %v731
        %v792 = vunpack.c.h.b16 %v731
        %v793 = vunpack.c.l.b16 %v732
        %v794 = vunpack.c.h.b16 %v732
        %v795 = vunpack.c.l.b16 %v733
        %v796 = vunpack.c.h.b16 %v733
        %v797 = vpack.c.b16 %v779, %v777
        %v798 = vpack.c.b16 %v780, %v778
        %v799 = vpack.c.b16 %v783, %v781
        %v800 = vpack.c.b16 %v784, %v782
        %v801 = vpack.c.b16 %v787, %v785
        %v802 = vpack.c.b16 %v788, %v786
        %v803 = vpack.c.b16 %v791, %v789
        %v804 = vpack.c.b16 %v792, %v790
        %v805 = vpack.c.b16 %v795, %v793
        %v806 = vpack.c.b16 %v796, %v794
        %vm807 = vsmask.f32 7424
        %v809 = vshrl.u32 %v797, 16
        %v811 = vshll.u32 %v797, 16
        %v813 = vrot.slane %v811, 1
        %v814 = vor.u32 %v809, %v813
        %v816 = vshll.u32 %v799, 16
        %v818 = vrot.slane %v816, 1
        %v819 = vsel %vm807, %v814, %v818
        %v821 = vshrl.u32 %v798, 16
        %v823 = vshll.u32 %v798, 16
        %v825 = vrot.slane %v823, 1
        %v826 = vor.u32 %v821, %v825
        %v828 = vshll.u32 %v800, 16
        %v830 = vrot.slane %v828, 1
        %v831 = vsel %vm807, %v826, %v830
        %v832 = vshrl.u32 %v799, 16
        %v834 = vor.u32 %v832, %v818
        %v836 = vshll.u32 %v801, 16
        %v838 = vrot.slane %v836, 1
        %v839 = vsel %vm807, %v834, %v838
        %v840 = vshrl.u32 %v800, 16
        %v842 = vor.u32 %v840, %v830
        %v844 = vshll.u32 %v802, 16
        %v846 = vrot.slane %v844, 1
        %v847 = vsel %vm807, %v842, %v846
        %v848 = vshrl.u32 %v801, 16
        %v850 = vor.u32 %v848, %v838
        %v852 = vshll.u32 %v803, 16
        %v854 = vrot.slane %v852, 1
        %v855 = vsel %vm807, %v850, %v854
        %v856 = vshrl.u32 %v802, 16
        %v858 = vor.u32 %v856, %v846
        %v860 = vshll.u32 %v804, 16
        %v862 = vrot.slane %v860, 1
        %v863 = vsel %vm807, %v858, %v862
        %v864 = vshrl.u32 %v803, 16
        %v866 = vor.u32 %v864, %v854
        %v868 = vshll.u32 %v805, 16
        %v870 = vrot.slane %v868, 1
        %v871 = vsel %vm807, %v866, %v870
        %v872 = vshrl.u32 %v804, 16
        %v874 = vor.u32 %v872, %v862
        %v876 = vshll.u32 %v806, 16
        %v878 = vrot.slane %v876, 1
        %v879 = vsel %vm807, %v874, %v878
        %v880 = vshrl.u32 %v805, 16
        %v882 = vor.u32 %v880, %v870
        %v883 = vshrl.u32 %v806, 16
        %v885 = vor.u32 %v883, %v878
        %v928 = vunpack.c.l.b16 %v735
        %v929 = vunpack.c.h.b16 %v735
        %v930 = vunpack.c.l.b16 %v736
        %v931 = vunpack.c.h.b16 %v736
        %v932 = vunpack.c.l.b16 %v737
        %v933 = vunpack.c.h.b16 %v737
        %v934 = vunpack.c.l.b16 %v738
        %v935 = vunpack.c.h.b16 %v738
        %v936 = vunpack.c.l.b16 %v739
        %v937 = vunpack.c.h.b16 %v739
        %v938 = vunpack.c.l.b16 %v740
        %v939 = vunpack.c.h.b16 %v740
        %v940 = vunpack.c.l.b16 %v741
        %v941 = vunpack.c.h.b16 %v741
        %v942 = vunpack.c.l.b16 %v742
        %v943 = vunpack.c.h.b16 %v742
        %v944 = vunpack.c.l.b16 %v743
        %v945 = vunpack.c.h.b16 %v743
        %v946 = vunpack.c.l.b16 %v744
        %v947 = vunpack.c.h.b16 %v744
        %v948 = vunpack.c.l.b16 %v745
        %v949 = vunpack.c.h.b16 %v745
        %v950 = vunpack.c.l.b16 %v746
        %v951 = vunpack.c.h.b16 %v746
        %v952 = vunpack.c.l.b16 %v747
        %v953 = vunpack.c.h.b16 %v747
        %v954 = vunpack.c.l.b16 %v748
        %v955 = vunpack.c.h.b16 %v748
        %v956 = vunpack.c.l.b16 %v749
        %v957 = vunpack.c.h.b16 %v749
        %v958 = vunpack.c.l.b16 %v750
        %v959 = vunpack.c.h.b16 %v750
        %v960 = vunpack.c.l.b16 %v751
        %v961 = vunpack.c.h.b16 %v751
        %v962 = vunpack.c.l.b16 %v752
        %v963 = vunpack.c.h.b16 %v752
        %v964 = vunpack.c.l.b16 %v753
        %v965 = vunpack.c.h.b16 %v753
        %v966 = vunpack.c.l.b16 %v754
        %v967 = vunpack.c.h.b16 %v754
        %v968 = vunpack.c.l.b16 %v755
        %v969 = vunpack.c.h.b16 %v755
        %v970 = vunpack.c.l.b16 %v756
        %v971 = vunpack.c.h.b16 %v756
        %v972 = vunpack.c.l.b16 %v757
        %v973 = vunpack.c.h.b16 %v757
        %v974 = vunpack.c.l.b16 %v758
        %v975 = vunpack.c.h.b16 %v758
        %v976 = vunpack.c.l.b16 %v759
        %v977 = vunpack.c.h.b16 %v759
        %v978 = vunpack.c.l.b16 %v760
        %v979 = vunpack.c.h.b16 %v760
        %v980 = vunpack.c.l.b16 %v761
        %v981 = vunpack.c.h.b16 %v761
        %v982 = vunpack.c.l.b16 %v762
        %v983 = vunpack.c.h.b16 %v762
        %v984 = vunpack.c.l.b16 %v763
        %v985 = vunpack.c.h.b16 %v763
        %v986 = vunpack.c.l.b16 %v764
        %v987 = vunpack.c.h.b16 %v764
        %v988 = vunpack.c.l.b16 %v765
        %v989 = vunpack.c.h.b16 %v765
        %v990 = vunpack.c.l.b16 %v766
        %v991 = vunpack.c.h.b16 %v766
        %v992 = vpack.c.b16 %v930, %v928
        %v993 = vpack.c.b16 %v931, %v929
        %v994 = vpack.c.b16 %v934, %v932
        %v995 = vpack.c.b16 %v935, %v933
        %v996 = vpack.c.b16 %v938, %v936
        %v997 = vpack.c.b16 %v939, %v937
        %v998 = vpack.c.b16 %v942, %v940
        %v999 = vpack.c.b16 %v943, %v941
        %v1000 = vpack.c.b16 %v946, %v944
        %v1001 = vpack.c.b16 %v947, %v945
        %v1002 = vpack.c.b16 %v950, %v948
        %v1003 = vpack.c.b16 %v951, %v949
        %v1004 = vpack.c.b16 %v954, %v952
        %v1005 = vpack.c.b16 %v955, %v953
        %v1006 = vpack.c.b16 %v958, %v956
        %v1007 = vpack.c.b16 %v959, %v957
        %v1008 = vpack.c.b16 %v962, %v960
        %v1009 = vpack.c.b16 %v963, %v961
        %v1010 = vpack.c.b16 %v966, %v964
        %v1011 = vpack.c.b16 %v967, %v965
        %v1012 = vpack.c.b16 %v970, %v968
        %v1013 = vpack.c.b16 %v971, %v969
        %v1014 = vpack.c.b16 %v974, %v972
        %v1015 = vpack.c.b16 %v975, %v973
        %v1016 = vpack.c.b16 %v978, %v976
        %v1017 = vpack.c.b16 %v979, %v977
        %v1018 = vpack.c.b16 %v982, %v980
        %v1019 = vpack.c.b16 %v983, %v981
        %v1020 = vpack.c.b16 %v986, %v984
        %v1021 = vpack.c.b16 %v987, %v985
        %v1022 = vpack.c.b16 %v990, %v988
        %v1023 = vpack.c.b16 %v991, %v989
        %1056 = vmatpush.bf16.msra.mxu0 %v1006
        %1057 = vmatpush.bf16.msra.mxu0 %v1004
        %1058 = vmatpush.bf16.msra.mxu0 %v1002
        %1059 = vmatpush.bf16.msra.mxu0 %v1000
        %1060 = vmatpush.bf16.msra.mxu0 %v998
        %1061 = vmatpush.bf16.msra.mxu0 %v996
        %1062 = vmatpush.bf16.msra.mxu0 %v994
        %1063 = vmatpush.bf16.msra.mxu0 %v992
        %1064 = vmatmul.bf16.gmra.mxu0 %v819
        %v1065 = vpop.f32.mrf.mxu0
        %v1066 = vadd.f32 0.0, %v1065
        %v1067 = vpop.f32.mrf.mxu0
        %v1068 = vadd.f32 0.0, %v1067
        %1069 = vmatmul.bf16.gmra.mxu0 %v839
        %v1070 = vpop.f32.mrf.mxu0
        %v1071 = vadd.f32 0.0, %v1070
        %v1072 = vpop.f32.mrf.mxu0
        %v1073 = vadd.f32 0.0, %v1072
        %1074 = vmatmul.bf16.gmra.mxu0 %v855
        %v1075 = vpop.f32.mrf.mxu0
        %v1076 = vadd.f32 0.0, %v1075
        %v1077 = vpop.f32.mrf.mxu0
        %v1078 = vadd.f32 0.0, %v1077
        %1079 = vmatmul.bf16.gmra.mxu0 %v871
        %v1080 = vpop.f32.mrf.mxu0
        %v1081 = vadd.f32 0.0, %v1080
        %v1082 = vpop.f32.mrf.mxu0
        %v1083 = vadd.f32 0.0, %v1082
        %1084 = vmatmul.bf16.gmra.mxu0 %v882
        %v1085 = vpop.f32.mrf.mxu0
        %v1086 = vadd.f32 0.0, %v1085
        %v1087 = vpop.f32.mrf.mxu0
        %1088 = vdwg.mxu0
        %1089 = vmatpush.bf16.msra.mxu0 %v1022
        %1090 = vmatpush.bf16.msra.mxu0 %v1020
        %1091 = vmatpush.bf16.msra.mxu0 %v1018
        %1092 = vmatpush.bf16.msra.mxu0 %v1016
        %1093 = vmatpush.bf16.msra.mxu0 %v1014
        %1094 = vmatpush.bf16.msra.mxu0 %v1012
        %1095 = vmatpush.bf16.msra.mxu0 %v1010
        %1096 = vmatpush.bf16.msra.mxu0 %v1008
        %1097 = vmatmul.bf16.gmra.mxu0 %v831
        %v1098 = vpop.f32.mrf.mxu0
        %v1099 = vadd.f32 %v1066, %v1098
        %v1100 = vpop.f32.mrf.mxu0
        %v1101 = vadd.f32 %v1068, %v1100
        %1102 = vmatmul.bf16.gmra.mxu0 %v847
        %v1103 = vpop.f32.mrf.mxu0
        %v1104 = vadd.f32 %v1071, %v1103
        %v1105 = vpop.f32.mrf.mxu0
        %v1106 = vadd.f32 %v1073, %v1105
        %1107 = vmatmul.bf16.gmra.mxu0 %v863
        %v1108 = vpop.f32.mrf.mxu0
        %v1109 = vadd.f32 %v1076, %v1108
        %v1110 = vpop.f32.mrf.mxu0
        %v1111 = vadd.f32 %v1078, %v1110
        %1112 = vmatmul.bf16.gmra.mxu0 %v879
        %v1113 = vpop.f32.mrf.mxu0
        %v1114 = vadd.f32 %v1081, %v1113
        %v1115 = vpop.f32.mrf.mxu0
        %v1116 = vadd.f32 %v1083, %v1115
        %1117 = vmatmul.bf16.gmra.mxu0 %v885
        %v1118 = vpop.f32.mrf.mxu0
        %v1119 = vadd.f32 %v1086, %v1118
        %v1120 = vpop.f32.mrf.mxu0
        %1121 = vdwg.mxu0
        %1122 = vmatpush.bf16.msra.mxu0 %v1007
        %1123 = vmatpush.bf16.msra.mxu0 %v1005
        %1124 = vmatpush.bf16.msra.mxu0 %v1003
        %1125 = vmatpush.bf16.msra.mxu0 %v1001
        %1126 = vmatpush.bf16.msra.mxu0 %v999
        %1127 = vmatpush.bf16.msra.mxu0 %v997
        %1128 = vmatpush.bf16.msra.mxu0 %v995
        %1129 = vmatpush.bf16.msra.mxu0 %v993
        %1130 = vmatmul.bf16.gmra.mxu0 %v819
        %v1131 = vpop.f32.mrf.mxu0
        %v1132 = vadd.f32 0.0, %v1131
        %v1133 = vpop.f32.mrf.mxu0
        %v1134 = vadd.f32 0.0, %v1133
        %1135 = vmatmul.bf16.gmra.mxu0 %v839
        %v1136 = vpop.f32.mrf.mxu0
        %v1137 = vadd.f32 0.0, %v1136
        %v1138 = vpop.f32.mrf.mxu0
        %v1139 = vadd.f32 0.0, %v1138
        %1140 = vmatmul.bf16.gmra.mxu0 %v855
        %v1141 = vpop.f32.mrf.mxu0
        %v1142 = vadd.f32 0.0, %v1141
        %v1143 = vpop.f32.mrf.mxu0
        %v1144 = vadd.f32 0.0, %v1143
        %1145 = vmatmul.bf16.gmra.mxu0 %v871
        %v1146 = vpop.f32.mrf.mxu0
        %v1147 = vadd.f32 0.0, %v1146
        %v1148 = vpop.f32.mrf.mxu0
        %v1149 = vadd.f32 0.0, %v1148
        %1150 = vmatmul.bf16.gmra.mxu0 %v882
        %v1151 = vpop.f32.mrf.mxu0
        %v1152 = vadd.f32 0.0, %v1151
        %v1153 = vpop.f32.mrf.mxu0
        %1154 = vdwg.mxu0
        %1155 = vmatpush.bf16.msra.mxu0 %v1023
        %1156 = vmatpush.bf16.msra.mxu0 %v1021
        %1157 = vmatpush.bf16.msra.mxu0 %v1019
        %1158 = vmatpush.bf16.msra.mxu0 %v1017
        %1159 = vmatpush.bf16.msra.mxu0 %v1015
        %1160 = vmatpush.bf16.msra.mxu0 %v1013
        %1161 = vmatpush.bf16.msra.mxu0 %v1011
        %1162 = vmatpush.bf16.msra.mxu0 %v1009
        %1163 = vmatmul.bf16.gmra.mxu0 %v831
        %v1164 = vpop.f32.mrf.mxu0
        %v1165 = vadd.f32 %v1132, %v1164
        %v1166 = vpop.f32.mrf.mxu0
        %v1167 = vadd.f32 %v1134, %v1166
        %1168 = vmatmul.bf16.gmra.mxu0 %v847
        %v1169 = vpop.f32.mrf.mxu0
        %v1170 = vadd.f32 %v1137, %v1169
        %v1171 = vpop.f32.mrf.mxu0
        %v1172 = vadd.f32 %v1139, %v1171
        %1173 = vmatmul.bf16.gmra.mxu0 %v863
        %v1174 = vpop.f32.mrf.mxu0
        %v1175 = vadd.f32 %v1142, %v1174
        %v1176 = vpop.f32.mrf.mxu0
        %v1177 = vadd.f32 %v1144, %v1176
        %1178 = vmatmul.bf16.gmra.mxu0 %v879
        %v1179 = vpop.f32.mrf.mxu0
        %v1180 = vadd.f32 %v1147, %v1179
        %v1181 = vpop.f32.mrf.mxu0
        %v1182 = vadd.f32 %v1149, %v1181
        %1183 = vmatmul.bf16.gmra.mxu0 %v885
        %v1184 = vpop.f32.mrf.mxu0
        %v1185 = vadd.f32 %v1152, %v1184
        %v1186 = vpop.f32.mrf.mxu0
        %1187 = vdwg.mxu0
        %v1188 = vld [vmem:[#allocation2] sm:$0xff]
        %v1189 = vld [vmem:[#allocation2 + $0x8] sm:$0xff]
        %v1190 = vld [vmem:[#allocation2 + $0x10] sm:$0xff]
        %v1191 = vld [vmem:[#allocation2 + $0x18] sm:$0xff]
        %v1192 = vld [vmem:[#allocation2 + $0x20] sm:$0xff]
        %v1193 = vld [vmem:[#allocation2 + $0x28] sm:$0xff]
        %v1194 = vld [vmem:[#allocation2 + $0x30] sm:$0xff]
        %v1195 = vld [vmem:[#allocation2 + $0x38] sm:$0xff]
        %v1196 = vld [vmem:[#allocation2 + $0x40] sm:$0xff]
        %v1197 = vld [vmem:[#allocation2 + $0x48] sm:$0xff]
        %v1198 = vld [vmem:[#allocation2 + $0x50] sm:$0xff]
        %v1199 = vld [vmem:[#allocation2 + $0x58] sm:$0xff]
        %v1200 = vld [vmem:[#allocation2 + $0x60] sm:$0xff]
        %v1201 = vld [vmem:[#allocation2 + $0x68] sm:$0xff]
        %v1202 = vld [vmem:[#allocation2 + $0x70] sm:$0xff]
        %v1203 = vld [vmem:[#allocation2 + $0x78] sm:$0xff]
        %v1204 = vld [vmem:[#allocation2 + $0x80] sm:$0xff]
        %v1205 = vld [vmem:[#allocation2 + $0x88] sm:$0xff]
        %v1206 = vadd.f32 %v1188, %v1099
        %v1207 = vadd.f32 %v1189, %v1165
        %v1208 = vadd.f32 %v1190, %v1101
        %v1209 = vadd.f32 %v1191, %v1167
        %v1210 = vadd.f32 %v1192, %v1104
        %v1211 = vadd.f32 %v1193, %v1170
        %v1212 = vadd.f32 %v1194, %v1106
        %v1213 = vadd.f32 %v1195, %v1172
        %v1214 = vadd.f32 %v1196, %v1109
        %v1215 = vadd.f32 %v1197, %v1175
        %v1216 = vadd.f32 %v1198, %v1111
        %v1217 = vadd.f32 %v1199, %v1177
        %v1218 = vadd.f32 %v1200, %v1114
        %v1219 = vadd.f32 %v1201, %v1180
        %v1220 = vadd.f32 %v1202, %v1116
        %v1221 = vadd.f32 %v1203, %v1182
        %v1222 = vadd.f32 %v1204, %v1119
        %v1223 = vadd.f32 %v1205, %v1185
        %1224 = vst [vmem:[#allocation2] sm:$0xff] %v1206
        %1225 = vst [vmem:[#allocation2 + $0x8] sm:$0xff] %v1207
        %1226 = vst [vmem:[#allocation2 + $0x10] sm:$0xff] %v1208
        %1227 = vst [vmem:[#allocation2 + $0x18] sm:$0xff] %v1209
        %1228 = vst [vmem:[#allocation2 + $0x20] sm:$0xff] %v1210
        %1229 = vst [vmem:[#allocation2 + $0x28] sm:$0xff] %v1211
        %1230 = vst [vmem:[#allocation2 + $0x30] sm:$0xff] %v1212
        %1231 = vst [vmem:[#allocation2 + $0x38] sm:$0xff] %v1213
        %1232 = vst [vmem:[#allocation2 + $0x40] sm:$0xff] %v1214
        %1233 = vst [vmem:[#allocation2 + $0x48] sm:$0xff] %v1215
        %1234 = vst [vmem:[#allocation2 + $0x50] sm:$0xff] %v1216
        %1235 = vst [vmem:[#allocation2 + $0x58] sm:$0xff] %v1217
        %1236 = vst [vmem:[#allocation2 + $0x60] sm:$0xff] %v1218
        %1237 = vst [vmem:[#allocation2 + $0x68] sm:$0xff] %v1219
        %1238 = vst [vmem:[#allocation2 + $0x70] sm:$0xff] %v1220
        %1239 = vst [vmem:[#allocation2 + $0x78] sm:$0xff] %v1221
        %1240 = vst [vmem:[#allocation2 + $0x80] sm:$0xff] %v1222
        %1241 = vst [vmem:[#allocation2 + $0x88] sm:$0xff] %v1223
        %s1242 = scalar_lea.vmem %s302, 96 [#allocation3]
        %v1243 = vld [vmem:[%s1242] sm:$0xff]
        %v1244 = vld [vmem:[%s1242 + $0x8] sm:$0xff]
        %v1245 = vld [vmem:[%s1242 + $0x10] sm:$0xff]
        %v1246 = vld [vmem:[%s1242 + $0x18] sm:$0xff]
        %v1247 = vld [vmem:[%s1242 + $0x20] sm:$0xff]
        %v1248 = vld [vmem:[%s1242 + $0x28] sm:$0xff]
        %v1249 = vld [vmem:[%s1242 + $0x30] sm:$0xff]
        %v1250 = vld [vmem:[%s1242 + $0x38] sm:$0xff]
        %v1251 = vld [vmem:[%s1242 + $0x40] sm:$0xff]
        %s1252 = scalar_lea.vmem %s1, 512
        %v1253 = vld [vmem:[%s1252] sm:$0xff]
        %v1254 = vld [vmem:[%s1252 + $0x8] sm:$0xff]
        %v1255 = vld [vmem:[%s1252 + $0x10] sm:$0xff]
        %v1256 = vld [vmem:[%s1252 + $0x18] sm:$0xff]
        %v1257 = vld [vmem:[%s1252 + $0x20] sm:$0xff]
        %v1258 = vld [vmem:[%s1252 + $0x28] sm:$0xff]
        %v1259 = vld [vmem:[%s1252 + $0x30] sm:$0xff]
        %v1260 = vld [vmem:[%s1252 + $0x38] sm:$0xff]
        %v1261 = vld [vmem:[%s1252 + $0x40] sm:$0xff]
        %v1262 = vld [vmem:[%s1252 + $0x48] sm:$0xff]
        %v1263 = vld [vmem:[%s1252 + $0x50] sm:$0xff]
        %v1264 = vld [vmem:[%s1252 + $0x58] sm:$0xff]
        %v1265 = vld [vmem:[%s1252 + $0x60] sm:$0xff]
        %v1266 = vld [vmem:[%s1252 + $0x68] sm:$0xff]
        %v1267 = vld [vmem:[%s1252 + $0x70] sm:$0xff]
        %v1268 = vld [vmem:[%s1252 + $0x78] sm:$0xff]
        %v1269 = vld [vmem:[%s1252 + $0x80] sm:$0xff]
        %v1270 = vld [vmem:[%s1252 + $0x88] sm:$0xff]
        %v1271 = vld [vmem:[%s1252 + $0x90] sm:$0xff]
        %v1272 = vld [vmem:[%s1252 + $0x98] sm:$0xff]
        %v1273 = vld [vmem:[%s1252 + $0xa0] sm:$0xff]
        %v1274 = vld [vmem:[%s1252 + $0xa8] sm:$0xff]
        %v1275 = vld [vmem:[%s1252 + $0xb0] sm:$0xff]
        %v1276 = vld [vmem:[%s1252 + $0xb8] sm:$0xff]
        %v1277 = vld [vmem:[%s1252 + $0xc0] sm:$0xff]
        %v1278 = vld [vmem:[%s1252 + $0xc8] sm:$0xff]
        %v1279 = vld [vmem:[%s1252 + $0xd0] sm:$0xff]
        %v1280 = vld [vmem:[%s1252 + $0xd8] sm:$0xff]
        %v1281 = vld [vmem:[%s1252 + $0xe0] sm:$0xff]
        %v1282 = vld [vmem:[%s1252 + $0xe8] sm:$0xff]
        %v1283 = vld [vmem:[%s1252 + $0xf0] sm:$0xff]
        %v1284 = vld [vmem:[%s1252 + $0xf8] sm:$0xff]
        %v1294 = vunpack.c.l.b16 %v1243
        %v1295 = vunpack.c.h.b16 %v1243
        %v1296 = vunpack.c.l.b16 %v1244
        %v1297 = vunpack.c.h.b16 %v1244
        %v1298 = vunpack.c.l.b16 %v1245
        %v1299 = vunpack.c.h.b16 %v1245
        %v1300 = vunpack.c.l.b16 %v1246
        %v1301 = vunpack.c.h.b16 %v1246
        %v1302 = vunpack.c.l.b16 %v1247
        %v1303 = vunpack.c.h.b16 %v1247
        %v1304 = vunpack.c.l.b16 %v1248
        %v1305 = vunpack.c.h.b16 %v1248
        %v1306 = vunpack.c.l.b16 %v1249
        %v1307 = vunpack.c.h.b16 %v1249
        %v1308 = vunpack.c.l.b16 %v1250
        %v1309 = vunpack.c.h.b16 %v1250
        %v1310 = vunpack.c.l.b16 %v1251
        %v1311 = vunpack.c.h.b16 %v1251
        %v1312 = vpack.c.b16 %v1296, %v1294
        %v1313 = vpack.c.b16 %v1297, %v1295
        %v1314 = vpack.c.b16 %v1300, %v1298
        %v1315 = vpack.c.b16 %v1301, %v1299
        %v1316 = vpack.c.b16 %v1304, %v1302
        %v1317 = vpack.c.b16 %v1305, %v1303
        %v1318 = vpack.c.b16 %v1308, %v1306
        %v1319 = vpack.c.b16 %v1309, %v1307
        %v1320 = vpack.c.b16 %v1310, %v1310
        %v1321 = vpack.c.b16 %v1311, %v1311
        %v1364 = vunpack.c.l.b16 %v1253
        %v1365 = vunpack.c.h.b16 %v1253
        %v1366 = vunpack.c.l.b16 %v1254
        %v1367 = vunpack.c.h.b16 %v1254
        %v1368 = vunpack.c.l.b16 %v1255
        %v1369 = vunpack.c.h.b16 %v1255
        %v1370 = vunpack.c.l.b16 %v1256
        %v1371 = vunpack.c.h.b16 %v1256
        %v1372 = vunpack.c.l.b16 %v1257
        %v1373 = vunpack.c.h.b16 %v1257
        %v1374 = vunpack.c.l.b16 %v1258
        %v1375 = vunpack.c.h.b16 %v1258
        %v1376 = vunpack.c.l.b16 %v1259
        %v1377 = vunpack.c.h.b16 %v1259
        %v1378 = vunpack.c.l.b16 %v1260
        %v1379 = vunpack.c.h.b16 %v1260
        %v1380 = vunpack.c.l.b16 %v1261
        %v1381 = vunpack.c.h.b16 %v1261
        %v1382 = vunpack.c.l.b16 %v1262
        %v1383 = vunpack.c.h.b16 %v1262
        %v1384 = vunpack.c.l.b16 %v1263
        %v1385 = vunpack.c.h.b16 %v1263
        %v1386 = vunpack.c.l.b16 %v1264
        %v1387 = vunpack.c.h.b16 %v1264
        %v1388 = vunpack.c.l.b16 %v1265
        %v1389 = vunpack.c.h.b16 %v1265
        %v1390 = vunpack.c.l.b16 %v1266
        %v1391 = vunpack.c.h.b16 %v1266
        %v1392 = vunpack.c.l.b16 %v1267
        %v1393 = vunpack.c.h.b16 %v1267
        %v1394 = vunpack.c.l.b16 %v1268
        %v1395 = vunpack.c.h.b16 %v1268
        %v1396 = vunpack.c.l.b16 %v1269
        %v1397 = vunpack.c.h.b16 %v1269
        %v1398 = vunpack.c.l.b16 %v1270
        %v1399 = vunpack.c.h.b16 %v1270
        %v1400 = vunpack.c.l.b16 %v1271
        %v1401 = vunpack.c.h.b16 %v1271
        %v1402 = vunpack.c.l.b16 %v1272
        %v1403 = vunpack.c.h.b16 %v1272
        %v1404 = vunpack.c.l.b16 %v1273
        %v1405 = vunpack.c.h.b16 %v1273
        %v1406 = vunpack.c.l.b16 %v1274
        %v1407 = vunpack.c.h.b16 %v1274
        %v1408 = vunpack.c.l.b16 %v1275
        %v1409 = vunpack.c.h.b16 %v1275
        %v1410 = vunpack.c.l.b16 %v1276
        %v1411 = vunpack.c.h.b16 %v1276
        %v1412 = vunpack.c.l.b16 %v1277
        %v1413 = vunpack.c.h.b16 %v1277
        %v1414 = vunpack.c.l.b16 %v1278
        %v1415 = vunpack.c.h.b16 %v1278
        %v1416 = vunpack.c.l.b16 %v1279
        %v1417 = vunpack.c.h.b16 %v1279
        %v1418 = vunpack.c.l.b16 %v1280
        %v1419 = vunpack.c.h.b16 %v1280
        %v1420 = vunpack.c.l.b16 %v1281
        %v1421 = vunpack.c.h.b16 %v1281
        %v1422 = vunpack.c.l.b16 %v1282
        %v1423 = vunpack.c.h.b16 %v1282
        %v1424 = vunpack.c.l.b16 %v1283
        %v1425 = vunpack.c.h.b16 %v1283
        %v1426 = vunpack.c.l.b16 %v1284
        %v1427 = vunpack.c.h.b16 %v1284
        %v1428 = vpack.c.b16 %v1366, %v1364
        %v1429 = vpack.c.b16 %v1367, %v1365
        %v1430 = vpack.c.b16 %v1370, %v1368
        %v1431 = vpack.c.b16 %v1371, %v1369
        %v1432 = vpack.c.b16 %v1374, %v1372
        %v1433 = vpack.c.b16 %v1375, %v1373
        %v1434 = vpack.c.b16 %v1378, %v1376
        %v1435 = vpack.c.b16 %v1379, %v1377
        %v1436 = vpack.c.b16 %v1382, %v1380
        %v1437 = vpack.c.b16 %v1383, %v1381
        %v1438 = vpack.c.b16 %v1386, %v1384
        %v1439 = vpack.c.b16 %v1387, %v1385
        %v1440 = vpack.c.b16 %v1390, %v1388
        %v1441 = vpack.c.b16 %v1391, %v1389
        %v1442 = vpack.c.b16 %v1394, %v1392
        %v1443 = vpack.c.b16 %v1395, %v1393
        %v1444 = vpack.c.b16 %v1398, %v1396
        %v1445 = vpack.c.b16 %v1399, %v1397
        %v1446 = vpack.c.b16 %v1402, %v1400
        %v1447 = vpack.c.b16 %v1403, %v1401
        %v1448 = vpack.c.b16 %v1406, %v1404
        %v1449 = vpack.c.b16 %v1407, %v1405
        %v1450 = vpack.c.b16 %v1410, %v1408
        %v1451 = vpack.c.b16 %v1411, %v1409
        %v1452 = vpack.c.b16 %v1414, %v1412
        %v1453 = vpack.c.b16 %v1415, %v1413
        %v1454 = vpack.c.b16 %v1418, %v1416
        %v1455 = vpack.c.b16 %v1419, %v1417
        %v1456 = vpack.c.b16 %v1422, %v1420
        %v1457 = vpack.c.b16 %v1423, %v1421
        %v1458 = vpack.c.b16 %v1426, %v1424
        %v1459 = vpack.c.b16 %v1427, %v1425
        %1492 = vmatpush.bf16.msra.mxu0 %v1442
        %1493 = vmatpush.bf16.msra.mxu0 %v1440
        %1494 = vmatpush.bf16.msra.mxu0 %v1438
        %1495 = vmatpush.bf16.msra.mxu0 %v1436
        %1496 = vmatpush.bf16.msra.mxu0 %v1434
        %1497 = vmatpush.bf16.msra.mxu0 %v1432
        %1498 = vmatpush.bf16.msra.mxu0 %v1430
        %1499 = vmatpush.bf16.msra.mxu0 %v1428
        %1500 = vmatmul.bf16.gmra.mxu0 %v1312
        %v1501 = vpop.f32.mrf.mxu0
        %v1502 = vadd.f32 0.0, %v1501
        %v1503 = vpop.f32.mrf.mxu0
        %v1504 = vadd.f32 0.0, %v1503
        %1505 = vmatmul.bf16.gmra.mxu0 %v1314
        %v1506 = vpop.f32.mrf.mxu0
        %v1507 = vadd.f32 0.0, %v1506
        %v1508 = vpop.f32.mrf.mxu0
        %v1509 = vadd.f32 0.0, %v1508
        %1510 = vmatmul.bf16.gmra.mxu0 %v1316
        %v1511 = vpop.f32.mrf.mxu0
        %v1512 = vadd.f32 0.0, %v1511
        %v1513 = vpop.f32.mrf.mxu0
        %v1514 = vadd.f32 0.0, %v1513
        %1515 = vmatmul.bf16.gmra.mxu0 %v1318
        %v1516 = vpop.f32.mrf.mxu0
        %v1517 = vadd.f32 0.0, %v1516
        %v1518 = vpop.f32.mrf.mxu0
        %v1519 = vadd.f32 0.0, %v1518
        %1520 = vmatmul.bf16.gmra.mxu0 %v1320
        %v1521 = vpop.f32.mrf.mxu0
        %v1522 = vadd.f32 0.0, %v1521
        %v1523 = vpop.f32.mrf.mxu0
        %1524 = vdwg.mxu0
        %1525 = vmatpush.bf16.msra.mxu0 %v1458
        %1526 = vmatpush.bf16.msra.mxu0 %v1456
        %1527 = vmatpush.bf16.msra.mxu0 %v1454
        %1528 = vmatpush.bf16.msra.mxu0 %v1452
        %1529 = vmatpush.bf16.msra.mxu0 %v1450
        %1530 = vmatpush.bf16.msra.mxu0 %v1448
        %1531 = vmatpush.bf16.msra.mxu0 %v1446
        %1532 = vmatpush.bf16.msra.mxu0 %v1444
        %1533 = vmatmul.bf16.gmra.mxu0 %v1313
        %v1534 = vpop.f32.mrf.mxu0
        %v1535 = vadd.f32 %v1502, %v1534
        %v1536 = vpop.f32.mrf.mxu0
        %v1537 = vadd.f32 %v1504, %v1536
        %1538 = vmatmul.bf16.gmra.mxu0 %v1315
        %v1539 = vpop.f32.mrf.mxu0
        %v1540 = vadd.f32 %v1507, %v1539
        %v1541 = vpop.f32.mrf.mxu0
        %v1542 = vadd.f32 %v1509, %v1541
        %1543 = vmatmul.bf16.gmra.mxu0 %v1317
        %v1544 = vpop.f32.mrf.mxu0
        %v1545 = vadd.f32 %v1512, %v1544
        %v1546 = vpop.f32.mrf.mxu0
        %v1547 = vadd.f32 %v1514, %v1546
        %1548 = vmatmul.bf16.gmra.mxu0 %v1319
        %v1549 = vpop.f32.mrf.mxu0
        %v1550 = vadd.f32 %v1517, %v1549
        %v1551 = vpop.f32.mrf.mxu0
        %v1552 = vadd.f32 %v1519, %v1551
        %1553 = vmatmul.bf16.gmra.mxu0 %v1321
        %v1554 = vpop.f32.mrf.mxu0
        %v1555 = vadd.f32 %v1522, %v1554
        %v1556 = vpop.f32.mrf.mxu0
        %1557 = vdwg.mxu0
        %1558 = vmatpush.bf16.msra.mxu0 %v1443
        %1559 = vmatpush.bf16.msra.mxu0 %v1441
        %1560 = vmatpush.bf16.msra.mxu0 %v1439
        %1561 = vmatpush.bf16.msra.mxu0 %v1437
        %1562 = vmatpush.bf16.msra.mxu0 %v1435
        %1563 = vmatpush.bf16.msra.mxu0 %v1433
        %1564 = vmatpush.bf16.msra.mxu0 %v1431
        %1565 = vmatpush.bf16.msra.mxu0 %v1429
        %1566 = vmatmul.bf16.gmra.mxu0 %v1312
        %v1567 = vpop.f32.mrf.mxu0
        %v1568 = vadd.f32 0.0, %v1567
        %v1569 = vpop.f32.mrf.mxu0
        %v1570 = vadd.f32 0.0, %v1569
        %1571 = vmatmul.bf16.gmra.mxu0 %v1314
        %v1572 = vpop.f32.mrf.mxu0
        %v1573 = vadd.f32 0.0, %v1572
        %v1574 = vpop.f32.mrf.mxu0
        %v1575 = vadd.f32 0.0, %v1574
        %1576 = vmatmul.bf16.gmra.mxu0 %v1316
        %v1577 = vpop.f32.mrf.mxu0
        %v1578 = vadd.f32 0.0, %v1577
        %v1579 = vpop.f32.mrf.mxu0
        %v1580 = vadd.f32 0.0, %v1579
        %1581 = vmatmul.bf16.gmra.mxu0 %v1318
        %v1582 = vpop.f32.mrf.mxu0
        %v1583 = vadd.f32 0.0, %v1582
        %v1584 = vpop.f32.mrf.mxu0
        %v1585 = vadd.f32 0.0, %v1584
        %1586 = vmatmul.bf16.gmra.mxu0 %v1320
        %v1587 = vpop.f32.mrf.mxu0
        %v1588 = vadd.f32 0.0, %v1587
        %v1589 = vpop.f32.mrf.mxu0
        %1590 = vdwg.mxu0
        %1591 = vmatpush.bf16.msra.mxu0 %v1459
        %1592 = vmatpush.bf16.msra.mxu0 %v1457
        %1593 = vmatpush.bf16.msra.mxu0 %v1455
        %1594 = vmatpush.bf16.msra.mxu0 %v1453
        %1595 = vmatpush.bf16.msra.mxu0 %v1451
        %1596 = vmatpush.bf16.msra.mxu0 %v1449
        %1597 = vmatpush.bf16.msra.mxu0 %v1447
        %1598 = vmatpush.bf16.msra.mxu0 %v1445
        %1599 = vmatmul.bf16.gmra.mxu0 %v1313
        %v1600 = vpop.f32.mrf.mxu0
        %v1601 = vadd.f32 %v1568, %v1600
        %v1602 = vpop.f32.mrf.mxu0
        %v1603 = vadd.f32 %v1570, %v1602
        %1604 = vmatmul.bf16.gmra.mxu0 %v1315
        %v1605 = vpop.f32.mrf.mxu0
        %v1606 = vadd.f32 %v1573, %v1605
        %v1607 = vpop.f32.mrf.mxu0
        %v1608 = vadd.f32 %v1575, %v1607
        %1609 = vmatmul.bf16.gmra.mxu0 %v1317
        %v1610 = vpop.f32.mrf.mxu0
        %v1611 = vadd.f32 %v1578, %v1610
        %v1612 = vpop.f32.mrf.mxu0
        %v1613 = vadd.f32 %v1580, %v1612
        %1614 = vmatmul.bf16.gmra.mxu0 %v1319
        %v1615 = vpop.f32.mrf.mxu0
        %v1616 = vadd.f32 %v1583, %v1615
        %v1617 = vpop.f32.mrf.mxu0
        %v1618 = vadd.f32 %v1585, %v1617
        %1619 = vmatmul.bf16.gmra.mxu0 %v1321
        %v1620 = vpop.f32.mrf.mxu0
        %v1621 = vadd.f32 %v1588, %v1620
        %v1622 = vpop.f32.mrf.mxu0
        %1623 = vdwg.mxu0
        %v1624 = vld [vmem:[#allocation2] sm:$0xff]
        %v1625 = vld [vmem:[#allocation2 + $0x8] sm:$0xff]
        %v1626 = vld [vmem:[#allocation2 + $0x10] sm:$0xff]
        %v1627 = vld [vmem:[#allocation2 + $0x18] sm:$0xff]
        %v1628 = vld [vmem:[#allocation2 + $0x20] sm:$0xff]
        %v1629 = vld [vmem:[#allocation2 + $0x28] sm:$0xff]
        %v1630 = vld [vmem:[#allocation2 + $0x30] sm:$0xff]
        %v1631 = vld [vmem:[#allocation2 + $0x38] sm:$0xff]
        %v1632 = vld [vmem:[#allocation2 + $0x40] sm:$0xff]
        %v1633 = vld [vmem:[#allocation2 + $0x48] sm:$0xff]
        %v1634 = vld [vmem:[#allocation2 + $0x50] sm:$0xff]
        %v1635 = vld [vmem:[#allocation2 + $0x58] sm:$0xff]
        %v1636 = vld [vmem:[#allocation2 + $0x60] sm:$0xff]
        %v1637 = vld [vmem:[#allocation2 + $0x68] sm:$0xff]
        %v1638 = vld [vmem:[#allocation2 + $0x70] sm:$0xff]
        %v1639 = vld [vmem:[#allocation2 + $0x78] sm:$0xff]
        %v1640 = vld [vmem:[#allocation2 + $0x80] sm:$0xff]
        %v1641 = vld [vmem:[#allocation2 + $0x88] sm:$0xff]
        %v1642 = vadd.f32 %v1624, %v1535
        %v1643 = vadd.f32 %v1625, %v1601
        %v1644 = vadd.f32 %v1626, %v1537
        %v1645 = vadd.f32 %v1627, %v1603
        %v1646 = vadd.f32 %v1628, %v1540
        %v1647 = vadd.f32 %v1629, %v1606
        %v1648 = vadd.f32 %v1630, %v1542
        %v1649 = vadd.f32 %v1631, %v1608
        %v1650 = vadd.f32 %v1632, %v1545
        %v1651 = vadd.f32 %v1633, %v1611
        %v1652 = vadd.f32 %v1634, %v1547
        %v1653 = vadd.f32 %v1635, %v1613
        %v1654 = vadd.f32 %v1636, %v1550
        %v1655 = vadd.f32 %v1637, %v1616
        %v1656 = vadd.f32 %v1638, %v1552
        %v1657 = vadd.f32 %v1639, %v1618
        %v1658 = vadd.f32 %v1640, %v1555
        %v1659 = vadd.f32 %v1641, %v1621
        %1660 = vst [vmem:[#allocation2] sm:$0xff] %v1642
        %1661 = vst [vmem:[#allocation2 + $0x8] sm:$0xff] %v1643
        %1662 = vst [vmem:[#allocation2 + $0x10] sm:$0xff] %v1644
        %1663 = vst [vmem:[#allocation2 + $0x18] sm:$0xff] %v1645
        %1664 = vst [vmem:[#allocation2 + $0x20] sm:$0xff] %v1646
        %1665 = vst [vmem:[#allocation2 + $0x28] sm:$0xff] %v1647
        %1666 = vst [vmem:[#allocation2 + $0x30] sm:$0xff] %v1648
        %1667 = vst [vmem:[#allocation2 + $0x38] sm:$0xff] %v1649
        %1668 = vst [vmem:[#allocation2 + $0x40] sm:$0xff] %v1650
        %1669 = vst [vmem:[#allocation2 + $0x48] sm:$0xff] %v1651
        %1670 = vst [vmem:[#allocation2 + $0x50] sm:$0xff] %v1652
        %1671 = vst [vmem:[#allocation2 + $0x58] sm:$0xff] %v1653
        %1672 = vst [vmem:[#allocation2 + $0x60] sm:$0xff] %v1654
        %1673 = vst [vmem:[#allocation2 + $0x68] sm:$0xff] %v1655
        %1674 = vst [vmem:[#allocation2 + $0x70] sm:$0xff] %v1656
        %1675 = vst [vmem:[#allocation2 + $0x78] sm:$0xff] %v1657
        %1676 = vst [vmem:[#allocation2 + $0x80] sm:$0xff] %v1658
        %1677 = vst [vmem:[#allocation2 + $0x88] sm:$0xff] %v1659
        %v1678 = vld [vmem:[%s1242] sm:$0xff]
        %v1679 = vld [vmem:[%s1242 + $0x8] sm:$0xff]
        %v1680 = vld [vmem:[%s1242 + $0x10] sm:$0xff]
        %v1681 = vld [vmem:[%s1242 + $0x18] sm:$0xff]
        %v1682 = vld [vmem:[%s1242 + $0x20] sm:$0xff]
        %v1683 = vld [vmem:[%s1242 + $0x28] sm:$0xff]
        %v1684 = vld [vmem:[%s1242 + $0x30] sm:$0xff]
        %v1685 = vld [vmem:[%s1242 + $0x38] sm:$0xff]
        %v1686 = vld [vmem:[%s1242 + $0x40] sm:$0xff]
        %v1687 = vld [vmem:[%s1242 + $0x48] sm:$0x11]
        %s1688 = scalar_lea.vmem %s1, 768
        %v1689 = vld [vmem:[%s1688] sm:$0xff]
        %v1690 = vld [vmem:[%s1688 + $0x8] sm:$0xff]
        %v1691 = vld [vmem:[%s1688 + $0x10] sm:$0xff]
        %v1692 = vld [vmem:[%s1688 + $0x18] sm:$0xff]
        %v1693 = vld [vmem:[%s1688 + $0x20] sm:$0xff]
        %v1694 = vld [vmem:[%s1688 + $0x28] sm:$0xff]
        %v1695 = vld [vmem:[%s1688 + $0x30] sm:$0xff]
        %v1696 = vld [vmem:[%s1688 + $0x38] sm:$0xff]
        %v1697 = vld [vmem:[%s1688 + $0x40] sm:$0xff]
        %v1698 = vld [vmem:[%s1688 + $0x48] sm:$0xff]
        %v1699 = vld [vmem:[%s1688 + $0x50] sm:$0xff]
        %v1700 = vld [vmem:[%s1688 + $0x58] sm:$0xff]
        %v1701 = vld [vmem:[%s1688 + $0x60] sm:$0xff]
        %v1702 = vld [vmem:[%s1688 + $0x68] sm:$0xff]
        %v1703 = vld [vmem:[%s1688 + $0x70] sm:$0xff]
        %v1704 = vld [vmem:[%s1688 + $0x78] sm:$0xff]
        %v1705 = vld [vmem:[%s1688 + $0x80] sm:$0xff]
        %v1706 = vld [vmem:[%s1688 + $0x88] sm:$0xff]
        %v1707 = vld [vmem:[%s1688 + $0x90] sm:$0xff]
        %v1708 = vld [vmem:[%s1688 + $0x98] sm:$0xff]
        %v1709 = vld [vmem:[%s1688 + $0xa0] sm:$0xff]
        %v1710 = vld [vmem:[%s1688 + $0xa8] sm:$0xff]
        %v1711 = vld [vmem:[%s1688 + $0xb0] sm:$0xff]
        %v1712 = vld [vmem:[%s1688 + $0xb8] sm:$0xff]
        %v1713 = vld [vmem:[%s1688 + $0xc0] sm:$0xff]
        %v1714 = vld [vmem:[%s1688 + $0xc8] sm:$0xff]
        %v1715 = vld [vmem:[%s1688 + $0xd0] sm:$0xff]
        %v1716 = vld [vmem:[%s1688 + $0xd8] sm:$0xff]
        %v1717 = vld [vmem:[%s1688 + $0xe0] sm:$0xff]
        %v1718 = vld [vmem:[%s1688 + $0xe8] sm:$0xff]
        %v1719 = vld [vmem:[%s1688 + $0xf0] sm:$0xff]
        %v1720 = vld [vmem:[%s1688 + $0xf8] sm:$0xff]
        %v1731 = vunpack.c.l.b16 %v1678
        %v1732 = vunpack.c.h.b16 %v1678
        %v1733 = vunpack.c.l.b16 %v1679
        %v1734 = vunpack.c.h.b16 %v1679
        %v1735 = vunpack.c.l.b16 %v1680
        %v1736 = vunpack.c.h.b16 %v1680
        %v1737 = vunpack.c.l.b16 %v1681
        %v1738 = vunpack.c.h.b16 %v1681
        %v1739 = vunpack.c.l.b16 %v1682
        %v1740 = vunpack.c.h.b16 %v1682
        %v1741 = vunpack.c.l.b16 %v1683
        %v1742 = vunpack.c.h.b16 %v1683
        %v1743 = vunpack.c.l.b16 %v1684
        %v1744 = vunpack.c.h.b16 %v1684
        %v1745 = vunpack.c.l.b16 %v1685
        %v1746 = vunpack.c.h.b16 %v1685
        %v1747 = vunpack.c.l.b16 %v1686
        %v1748 = vunpack.c.h.b16 %v1686
        %v1749 = vunpack.c.l.b16 %v1687
        %v1750 = vunpack.c.h.b16 %v1687
        %v1751 = vpack.c.b16 %v1733, %v1731
        %v1752 = vpack.c.b16 %v1734, %v1732
        %v1753 = vpack.c.b16 %v1737, %v1735
        %v1754 = vpack.c.b16 %v1738, %v1736
        %v1755 = vpack.c.b16 %v1741, %v1739
        %v1756 = vpack.c.b16 %v1742, %v1740
        %v1757 = vpack.c.b16 %v1745, %v1743
        %v1758 = vpack.c.b16 %v1746, %v1744
        %v1759 = vpack.c.b16 %v1749, %v1747
        %v1760 = vpack.c.b16 %v1750, %v1748
        %v1762 = vshrl.u32 %v1751, 16
        %v1764 = vshll.u32 %v1751, 16
        %v1766 = vrot.slane %v1764, 1
        %v1767 = vor.u32 %v1762, %v1766
        %v1769 = vshll.u32 %v1753, 16
        %v1771 = vrot.slane %v1769, 1
        %v1772 = vsel %vm807, %v1767, %v1771
        %v1774 = vshrl.u32 %v1752, 16
        %v1776 = vshll.u32 %v1752, 16
        %v1778 = vrot.slane %v1776, 1
        %v1779 = vor.u32 %v1774, %v1778
        %v1781 = vshll.u32 %v1754, 16
        %v1783 = vrot.slane %v1781, 1
        %v1784 = vsel %vm807, %v1779, %v1783
        %v1785 = vshrl.u32 %v1753, 16
        %v1787 = vor.u32 %v1785, %v1771
        %v1789 = vshll.u32 %v1755, 16
        %v1791 = vrot.slane %v1789, 1
        %v1792 = vsel %vm807, %v1787, %v1791
        %v1793 = vshrl.u32 %v1754, 16
        %v1795 = vor.u32 %v1793, %v1783
        %v1797 = vshll.u32 %v1756, 16
        %v1799 = vrot.slane %v1797, 1
        %v1800 = vsel %vm807, %v1795, %v1799
        %v1801 = vshrl.u32 %v1755, 16
        %v1803 = vor.u32 %v1801, %v1791
        %v1805 = vshll.u32 %v1757, 16
        %v1807 = vrot.slane %v1805, 1
        %v1808 = vsel %vm807, %v1803, %v1807
        %v1809 = vshrl.u32 %v1756, 16
        %v1811 = vor.u32 %v1809, %v1799
        %v1813 = vshll.u32 %v1758, 16
        %v1815 = vrot.slane %v1813, 1
        %v1816 = vsel %vm807, %v1811, %v1815
        %v1817 = vshrl.u32 %v1757, 16
        %v1819 = vor.u32 %v1817, %v1807
        %v1821 = vshll.u32 %v1759, 16
        %v1823 = vrot.slane %v1821, 1
        %v1824 = vsel %vm807, %v1819, %v1823
        %v1825 = vshrl.u32 %v1758, 16
        %v1827 = vor.u32 %v1825, %v1815
        %v1829 = vshll.u32 %v1760, 16
        %v1831 = vrot.slane %v1829, 1
        %v1832 = vsel %vm807, %v1827, %v1831
        %v1833 = vshrl.u32 %v1759, 16
        %v1835 = vor.u32 %v1833, %v1823
        %v1836 = vshrl.u32 %v1760, 16
        %v1838 = vor.u32 %v1836, %v1831
        %v1881 = vunpack.c.l.b16 %v1689
        %v1882 = vunpack.c.h.b16 %v1689
        %v1883 = vunpack.c.l.b16 %v1690
        %v1884 = vunpack.c.h.b16 %v1690
        %v1885 = vunpack.c.l.b16 %v1691
        %v1886 = vunpack.c.h.b16 %v1691
        %v1887 = vunpack.c.l.b16 %v1692
        %v1888 = vunpack.c.h.b16 %v1692
        %v1889 = vunpack.c.l.b16 %v1693
        %v1890 = vunpack.c.h.b16 %v1693
        %v1891 = vunpack.c.l.b16 %v1694
        %v1892 = vunpack.c.h.b16 %v1694
        %v1893 = vunpack.c.l.b16 %v1695
        %v1894 = vunpack.c.h.b16 %v1695
        %v1895 = vunpack.c.l.b16 %v1696
        %v1896 = vunpack.c.h.b16 %v1696
        %v1897 = vunpack.c.l.b16 %v1697
        %v1898 = vunpack.c.h.b16 %v1697
        %v1899 = vunpack.c.l.b16 %v1698
        %v1900 = vunpack.c.h.b16 %v1698
        %v1901 = vunpack.c.l.b16 %v1699
        %v1902 = vunpack.c.h.b16 %v1699
        %v1903 = vunpack.c.l.b16 %v1700
        %v1904 = vunpack.c.h.b16 %v1700
        %v1905 = vunpack.c.l.b16 %v1701
        %v1906 = vunpack.c.h.b16 %v1701
        %v1907 = vunpack.c.l.b16 %v1702
        %v1908 = vunpack.c.h.b16 %v1702
        %v1909 = vunpack.c.l.b16 %v1703
        %v1910 = vunpack.c.h.b16 %v1703
        %v1911 = vunpack.c.l.b16 %v1704
        %v1912 = vunpack.c.h.b16 %v1704
        %v1913 = vunpack.c.l.b16 %v1705
        %v1914 = vunpack.c.h.b16 %v1705
        %v1915 = vunpack.c.l.b16 %v1706
        %v1916 = vunpack.c.h.b16 %v1706
        %v1917 = vunpack.c.l.b16 %v1707
        %v1918 = vunpack.c.h.b16 %v1707
        %v1919 = vunpack.c.l.b16 %v1708
        %v1920 = vunpack.c.h.b16 %v1708
        %v1921 = vunpack.c.l.b16 %v1709
        %v1922 = vunpack.c.h.b16 %v1709
        %v1923 = vunpack.c.l.b16 %v1710
        %v1924 = vunpack.c.h.b16 %v1710
        %v1925 = vunpack.c.l.b16 %v1711
        %v1926 = vunpack.c.h.b16 %v1711
        %v1927 = vunpack.c.l.b16 %v1712
        %v1928 = vunpack.c.h.b16 %v1712
        %v1929 = vunpack.c.l.b16 %v1713
        %v1930 = vunpack.c.h.b16 %v1713
        %v1931 = vunpack.c.l.b16 %v1714
        %v1932 = vunpack.c.h.b16 %v1714
        %v1933 = vunpack.c.l.b16 %v1715
        %v1934 = vunpack.c.h.b16 %v1715
        %v1935 = vunpack.c.l.b16 %v1716
        %v1936 = vunpack.c.h.b16 %v1716
        %v1937 = vunpack.c.l.b16 %v1717
        %v1938 = vunpack.c.h.b16 %v1717
        %v1939 = vunpack.c.l.b16 %v1718
        %v1940 = vunpack.c.h.b16 %v1718
        %v1941 = vunpack.c.l.b16 %v1719
        %v1942 = vunpack.c.h.b16 %v1719
        %v1943 = vunpack.c.l.b16 %v1720
        %v1944 = vunpack.c.h.b16 %v1720
        %v1945 = vpack.c.b16 %v1883, %v1881
        %v1946 = vpack.c.b16 %v1884, %v1882
        %v1947 = vpack.c.b16 %v1887, %v1885
        %v1948 = vpack.c.b16 %v1888, %v1886
        %v1949 = vpack.c.b16 %v1891, %v1889
        %v1950 = vpack.c.b16 %v1892, %v1890
        %v1951 = vpack.c.b16 %v1895, %v1893
        %v1952 = vpack.c.b16 %v1896, %v1894
        %v1953 = vpack.c.b16 %v1899, %v1897
        %v1954 = vpack.c.b16 %v1900, %v1898
        %v1955 = vpack.c.b16 %v1903, %v1901
        %v1956 = vpack.c.b16 %v1904, %v1902
        %v1957 = vpack.c.b16 %v1907, %v1905
        %v1958 = vpack.c.b16 %v1908, %v1906
        %v1959 = vpack.c.b16 %v1911, %v1909
        %v1960 = vpack.c.b16 %v1912, %v1910
        %v1961 = vpack.c.b16 %v1915, %v1913
        %v1962 = vpack.c.b16 %v1916, %v1914
        %v1963 = vpack.c.b16 %v1919, %v1917
        %v1964 = vpack.c.b16 %v1920, %v1918
        %v1965 = vpack.c.b16 %v1923, %v1921
        %v1966 = vpack.c.b16 %v1924, %v1922
        %v1967 = vpack.c.b16 %v1927, %v1925
        %v1968 = vpack.c.b16 %v1928, %v1926
        %v1969 = vpack.c.b16 %v1931, %v1929
        %v1970 = vpack.c.b16 %v1932, %v1930
        %v1971 = vpack.c.b16 %v1935, %v1933
        %v1972 = vpack.c.b16 %v1936, %v1934
        %v1973 = vpack.c.b16 %v1939, %v1937
        %v1974 = vpack.c.b16 %v1940, %v1938
        %v1975 = vpack.c.b16 %v1943, %v1941
        %v1976 = vpack.c.b16 %v1944, %v1942
        %2009 = vmatpush.bf16.msra.mxu0 %v1959
        %2010 = vmatpush.bf16.msra.mxu0 %v1957
        %2011 = vmatpush.bf16.msra.mxu0 %v1955
        %2012 = vmatpush.bf16.msra.mxu0 %v1953
        %2013 = vmatpush.bf16.msra.mxu0 %v1951
        %2014 = vmatpush.bf16.msra.mxu0 %v1949
        %2015 = vmatpush.bf16.msra.mxu0 %v1947
        %2016 = vmatpush.bf16.msra.mxu0 %v1945
        %2017 = vmatmul.bf16.gmra.mxu0 %v1772
        %v2018 = vpop.f32.mrf.mxu0
        %v2019 = vadd.f32 0.0, %v2018
        %v2020 = vpop.f32.mrf.mxu0
        %v2021 = vadd.f32 0.0, %v2020
        %2022 = vmatmul.bf16.gmra.mxu0 %v1792
        %v2023 = vpop.f32.mrf.mxu0
        %v2024 = vadd.f32 0.0, %v2023
        %v2025 = vpop.f32.mrf.mxu0
        %v2026 = vadd.f32 0.0, %v2025
        %2027 = vmatmul.bf16.gmra.mxu0 %v1808
        %v2028 = vpop.f32.mrf.mxu0
        %v2029 = vadd.f32 0.0, %v2028
        %v2030 = vpop.f32.mrf.mxu0
        %v2031 = vadd.f32 0.0, %v2030
        %2032 = vmatmul.bf16.gmra.mxu0 %v1824
        %v2033 = vpop.f32.mrf.mxu0
        %v2034 = vadd.f32 0.0, %v2033
        %v2035 = vpop.f32.mrf.mxu0
        %v2036 = vadd.f32 0.0, %v2035
        %2037 = vmatmul.bf16.gmra.mxu0 %v1835
        %v2038 = vpop.f32.mrf.mxu0
        %v2039 = vadd.f32 0.0, %v2038
        %v2040 = vpop.f32.mrf.mxu0
        %2041 = vdwg.mxu0
        %2042 = vmatpush.bf16.msra.mxu0 %v1975
        %2043 = vmatpush.bf16.msra.mxu0 %v1973
        %2044 = vmatpush.bf16.msra.mxu0 %v1971
        %2045 = vmatpush.bf16.msra.mxu0 %v1969
        %2046 = vmatpush.bf16.msra.mxu0 %v1967
        %2047 = vmatpush.bf16.msra.mxu0 %v1965
        %2048 = vmatpush.bf16.msra.mxu0 %v1963
        %2049 = vmatpush.bf16.msra.mxu0 %v1961
        %2050 = vmatmul.bf16.gmra.mxu0 %v1784
        %v2051 = vpop.f32.mrf.mxu0
        %v2052 = vadd.f32 %v2019, %v2051
        %v2053 = vpop.f32.mrf.mxu0
        %v2054 = vadd.f32 %v2021, %v2053
        %2055 = vmatmul.bf16.gmra.mxu0 %v1800
        %v2056 = vpop.f32.mrf.mxu0
        %v2057 = vadd.f32 %v2024, %v2056
        %v2058 = vpop.f32.mrf.mxu0
        %v2059 = vadd.f32 %v2026, %v2058
        %2060 = vmatmul.bf16.gmra.mxu0 %v1816
        %v2061 = vpop.f32.mrf.mxu0
        %v2062 = vadd.f32 %v2029, %v2061
        %v2063 = vpop.f32.mrf.mxu0
        %v2064 = vadd.f32 %v2031, %v2063
        %2065 = vmatmul.bf16.gmra.mxu0 %v1832
        %v2066 = vpop.f32.mrf.mxu0
        %v2067 = vadd.f32 %v2034, %v2066
        %v2068 = vpop.f32.mrf.mxu0
        %v2069 = vadd.f32 %v2036, %v2068
        %2070 = vmatmul.bf16.gmra.mxu0 %v1838
        %v2071 = vpop.f32.mrf.mxu0
        %v2072 = vadd.f32 %v2039, %v2071
        %v2073 = vpop.f32.mrf.mxu0
        %2074 = vdwg.mxu0
        %2075 = vmatpush.bf16.msra.mxu0 %v1960
        %2076 = vmatpush.bf16.msra.mxu0 %v1958
        %2077 = vmatpush.bf16.msra.mxu0 %v1956
        %2078 = vmatpush.bf16.msra.mxu0 %v1954
        %2079 = vmatpush.bf16.msra.mxu0 %v1952
        %2080 = vmatpush.bf16.msra.mxu0 %v1950
        %2081 = vmatpush.bf16.msra.mxu0 %v1948
        %2082 = vmatpush.bf16.msra.mxu0 %v1946
        %2083 = vmatmul.bf16.gmra.mxu0 %v1772
        %v2084 = vpop.f32.mrf.mxu0
        %v2085 = vadd.f32 0.0, %v2084
        %v2086 = vpop.f32.mrf.mxu0
        %v2087 = vadd.f32 0.0, %v2086
        %2088 = vmatmul.bf16.gmra.mxu0 %v1792
        %v2089 = vpop.f32.mrf.mxu0
        %v2090 = vadd.f32 0.0, %v2089
        %v2091 = vpop.f32.mrf.mxu0
        %v2092 = vadd.f32 0.0, %v2091
        %2093 = vmatmul.bf16.gmra.mxu0 %v1808
        %v2094 = vpop.f32.mrf.mxu0
        %v2095 = vadd.f32 0.0, %v2094
        %v2096 = vpop.f32.mrf.mxu0
        %v2097 = vadd.f32 0.0, %v2096
        %2098 = vmatmul.bf16.gmra.mxu0 %v1824
        %v2099 = vpop.f32.mrf.mxu0
        %v2100 = vadd.f32 0.0, %v2099
        %v2101 = vpop.f32.mrf.mxu0
        %v2102 = vadd.f32 0.0, %v2101
        %2103 = vmatmul.bf16.gmra.mxu0 %v1835
        %v2104 = vpop.f32.mrf.mxu0
        %v2105 = vadd.f32 0.0, %v2104
        %v2106 = vpop.f32.mrf.mxu0
        %2107 = vdwg.mxu0
        %2108 = vmatpush.bf16.msra.mxu0 %v1976
        %2109 = vmatpush.bf16.msra.mxu0 %v1974
        %2110 = vmatpush.bf16.msra.mxu0 %v1972
        %2111 = vmatpush.bf16.msra.mxu0 %v1970
        %2112 = vmatpush.bf16.msra.mxu0 %v1968
        %2113 = vmatpush.bf16.msra.mxu0 %v1966
        %2114 = vmatpush.bf16.msra.mxu0 %v1964
        %2115 = vmatpush.bf16.msra.mxu0 %v1962
        %2116 = vmatmul.bf16.gmra.mxu0 %v1784
        %v2117 = vpop.f32.mrf.mxu0
        %v2118 = vadd.f32 %v2085, %v2117
        %v2119 = vpop.f32.mrf.mxu0
        %v2120 = vadd.f32 %v2087, %v2119
        %2121 = vmatmul.bf16.gmra.mxu0 %v1800
        %v2122 = vpop.f32.mrf.mxu0
        %v2123 = vadd.f32 %v2090, %v2122
        %v2124 = vpop.f32.mrf.mxu0
        %v2125 = vadd.f32 %v2092, %v2124
        %2126 = vmatmul.bf16.gmra.mxu0 %v1816
        %v2127 = vpop.f32.mrf.mxu0
        %v2128 = vadd.f32 %v2095, %v2127
        %v2129 = vpop.f32.mrf.mxu0
        %v2130 = vadd.f32 %v2097, %v2129
        %2131 = vmatmul.bf16.gmra.mxu0 %v1832
        %v2132 = vpop.f32.mrf.mxu0
        %v2133 = vadd.f32 %v2100, %v2132
        %v2134 = vpop.f32.mrf.mxu0
        %v2135 = vadd.f32 %v2102, %v2134
        %2136 = vmatmul.bf16.gmra.mxu0 %v1838
        %v2137 = vpop.f32.mrf.mxu0
        %v2138 = vadd.f32 %v2105, %v2137
        %v2139 = vpop.f32.mrf.mxu0
        %2140 = vdwg.mxu0
        %v2141 = vld [vmem:[#allocation2] sm:$0xff]
        %v2142 = vld [vmem:[#allocation2 + $0x8] sm:$0xff]
        %v2143 = vld [vmem:[#allocation2 + $0x10] sm:$0xff]
        %v2144 = vld [vmem:[#allocation2 + $0x18] sm:$0xff]
        %v2145 = vld [vmem:[#allocation2 + $0x20] sm:$0xff]
        %v2146 = vld [vmem:[#allocation2 + $0x28] sm:$0xff]
        %v2147 = vld [vmem:[#allocation2 + $0x30] sm:$0xff]
        %v2148 = vld [vmem:[#allocation2 + $0x38] sm:$0xff]
        %v2149 = vld [vmem:[#allocation2 + $0x40] sm:$0xff]
        %v2150 = vld [vmem:[#allocation2 + $0x48] sm:$0xff]
        %v2151 = vld [vmem:[#allocation2 + $0x50] sm:$0xff]
        %v2152 = vld [vmem:[#allocation2 + $0x58] sm:$0xff]
        %v2153 = vld [vmem:[#allocation2 + $0x60] sm:$0xff]
        %v2154 = vld [vmem:[#allocation2 + $0x68] sm:$0xff]
        %v2155 = vld [vmem:[#allocation2 + $0x70] sm:$0xff]
        %v2156 = vld [vmem:[#allocation2 + $0x78] sm:$0xff]
        %v2157 = vld [vmem:[#allocation2 + $0x80] sm:$0xff]
        %v2158 = vld [vmem:[#allocation2 + $0x88] sm:$0xff]
        %v2159 = vadd.f32 %v2141, %v2052
        %v2160 = vadd.f32 %v2142, %v2118
        %v2161 = vadd.f32 %v2143, %v2054
        %v2162 = vadd.f32 %v2144, %v2120
        %v2163 = vadd.f32 %v2145, %v2057
        %v2164 = vadd.f32 %v2146, %v2123
        %v2165 = vadd.f32 %v2147, %v2059
        %v2166 = vadd.f32 %v2148, %v2125
        %v2167 = vadd.f32 %v2149, %v2062
        %v2168 = vadd.f32 %v2150, %v2128
        %v2169 = vadd.f32 %v2151, %v2064
        %v2170 = vadd.f32 %v2152, %v2130
        %v2171 = vadd.f32 %v2153, %v2067
        %v2172 = vadd.f32 %v2154, %v2133
        %v2173 = vadd.f32 %v2155, %v2069
        %v2174 = vadd.f32 %v2156, %v2135
        %v2175 = vadd.f32 %v2157, %v2072
        %v2176 = vadd.f32 %v2158, %v2138
        %2177 = vst [vmem:[#allocation2] sm:$0xff] %v2159
        %2178 = vst [vmem:[#allocation2 + $0x8] sm:$0xff] %v2160
        %2179 = vst [vmem:[#allocation2 + $0x10] sm:$0xff] %v2161
        %2180 = vst [vmem:[#allocation2 + $0x18] sm:$0xff] %v2162
        %2181 = vst [vmem:[#allocation2 + $0x20] sm:$0xff] %v2163
        %2182 = vst [vmem:[#allocation2 + $0x28] sm:$0xff] %v2164
        %2183 = vst [vmem:[#allocation2 + $0x30] sm:$0xff] %v2165
        %2184 = vst [vmem:[#allocation2 + $0x38] sm:$0xff] %v2166
        %2185 = vst [vmem:[#allocation2 + $0x40] sm:$0xff] %v2167
        %2186 = vst [vmem:[#allocation2 + $0x48] sm:$0xff] %v2168
        %2187 = vst [vmem:[#allocation2 + $0x50] sm:$0xff] %v2169
        %2188 = vst [vmem:[#allocation2 + $0x58] sm:$0xff] %v2170
        %2189 = vst [vmem:[#allocation2 + $0x60] sm:$0xff] %v2171
        %2190 = vst [vmem:[#allocation2 + $0x68] sm:$0xff] %v2172
        %2191 = vst [vmem:[#allocation2 + $0x70] sm:$0xff] %v2173
        %2192 = vst [vmem:[#allocation2 + $0x78] sm:$0xff] %v2174
        %2193 = vst [vmem:[#allocation2 + $0x80] sm:$0xff] %v2175
        %2194 = vst [vmem:[#allocation2 + $0x88] sm:$0xff] %v2176
        %v2195 = vld [vmem:[%s302 + $0x8] sm:$0xff]
        %v2196 = vld [vmem:[%s302 + $0x10] sm:$0xff]
        %v2197 = vld [vmem:[%s302 + $0x18] sm:$0xff]
        %v2198 = vld [vmem:[%s302 + $0x20] sm:$0xff]
        %v2199 = vld [vmem:[%s302 + $0x28] sm:$0xff]
        %v2200 = vld [vmem:[%s302 + $0x30] sm:$0xff]
        %v2201 = vld [vmem:[%s302 + $0x38] sm:$0xff]
        %v2202 = vld [vmem:[%s302 + $0x40] sm:$0xff]
        %v2203 = vld [vmem:[%s302 + $0x48] sm:$0xff]
        %v2204 = vld [vmem:[%s302 + $0x50] sm:$0x11]
        %s2205 = scalar_lea.vmem %s1, 1024
        %v2206 = vld [vmem:[%s2205] sm:$0xff]
        %v2207 = vld [vmem:[%s2205 + $0x8] sm:$0xff]
        %v2208 = vld [vmem:[%s2205 + $0x10] sm:$0xff]
        %v2209 = vld [vmem:[%s2205 + $0x18] sm:$0xff]
        %v2210 = vld [vmem:[%s2205 + $0x20] sm:$0xff]
        %v2211 = vld [vmem:[%s2205 + $0x28] sm:$0xff]
        %v2212 = vld [vmem:[%s2205 + $0x30] sm:$0xff]
        %v2213 = vld [vmem:[%s2205 + $0x38] sm:$0xff]
        %v2214 = vld [vmem:[%s2205 + $0x40] sm:$0xff]
        %v2215 = vld [vmem:[%s2205 + $0x48] sm:$0xff]
        %v2216 = vld [vmem:[%s2205 + $0x50] sm:$0xff]
        %v2217 = vld [vmem:[%s2205 + $0x58] sm:$0xff]
        %v2218 = vld [vmem:[%s2205 + $0x60] sm:$0xff]
        %v2219 = vld [vmem:[%s2205 + $0x68] sm:$0xff]
        %v2220 = vld [vmem:[%s2205 + $0x70] sm:$0xff]
        %v2221 = vld [vmem:[%s2205 + $0x78] sm:$0xff]
        %v2222 = vld [vmem:[%s2205 + $0x80] sm:$0xff]
        %v2223 = vld [vmem:[%s2205 + $0x88] sm:$0xff]
        %v2224 = vld [vmem:[%s2205 + $0x90] sm:$0xff]
        %v2225 = vld [vmem:[%s2205 + $0x98] sm:$0xff]
        %v2226 = vld [vmem:[%s2205 + $0xa0] sm:$0xff]
        %v2227 = vld [vmem:[%s2205 + $0xa8] sm:$0xff]
        %v2228 = vld [vmem:[%s2205 + $0xb0] sm:$0xff]
        %v2229 = vld [vmem:[%s2205 + $0xb8] sm:$0xff]
        %v2230 = vld [vmem:[%s2205 + $0xc0] sm:$0xff]
        %v2231 = vld [vmem:[%s2205 + $0xc8] sm:$0xff]
        %v2232 = vld [vmem:[%s2205 + $0xd0] sm:$0xff]
        %v2233 = vld [vmem:[%s2205 + $0xd8] sm:$0xff]
        %v2234 = vld [vmem:[%s2205 + $0xe0] sm:$0xff]
        %v2235 = vld [vmem:[%s2205 + $0xe8] sm:$0xff]
        %v2236 = vld [vmem:[%s2205 + $0xf0] sm:$0xff]
        %v2237 = vld [vmem:[%s2205 + $0xf8] sm:$0xff]
        %v2248 = vunpack.c.l.b16 %v2195
        %v2249 = vunpack.c.h.b16 %v2195
        %v2250 = vunpack.c.l.b16 %v2196
        %v2251 = vunpack.c.h.b16 %v2196
        %v2252 = vunpack.c.l.b16 %v2197
        %v2253 = vunpack.c.h.b16 %v2197
        %v2254 = vunpack.c.l.b16 %v2198
        %v2255 = vunpack.c.h.b16 %v2198
        %v2256 = vunpack.c.l.b16 %v2199
        %v2257 = vunpack.c.h.b16 %v2199
        %v2258 = vunpack.c.l.b16 %v2200
        %v2259 = vunpack.c.h.b16 %v2200
        %v2260 = vunpack.c.l.b16 %v2201
        %v2261 = vunpack.c.h.b16 %v2201
        %v2262 = vunpack.c.l.b16 %v2202
        %v2263 = vunpack.c.h.b16 %v2202
        %v2264 = vunpack.c.l.b16 %v2203
        %v2265 = vunpack.c.h.b16 %v2203
        %v2266 = vunpack.c.l.b16 %v2204
        %v2267 = vunpack.c.h.b16 %v2204
        %v2268 = vpack.c.b16 %v2250, %v2248
        %v2269 = vpack.c.b16 %v2251, %v2249
        %v2270 = vpack.c.b16 %v2254, %v2252
        %v2271 = vpack.c.b16 %v2255, %v2253
        %v2272 = vpack.c.b16 %v2258, %v2256
        %v2273 = vpack.c.b16 %v2259, %v2257
        %v2274 = vpack.c.b16 %v2262, %v2260
        %v2275 = vpack.c.b16 %v2263, %v2261
        %v2276 = vpack.c.b16 %v2266, %v2264
        %v2277 = vpack.c.b16 %v2267, %v2265
        %v2279 = vshrl.u32 %v2268, 16
        %v2281 = vshll.u32 %v2268, 16
        %v2283 = vrot.slane %v2281, 1
        %v2284 = vor.u32 %v2279, %v2283
        %v2286 = vshll.u32 %v2270, 16
        %v2288 = vrot.slane %v2286, 1
        %v2289 = vsel %vm807, %v2284, %v2288
        %v2291 = vshrl.u32 %v2269, 16
        %v2293 = vshll.u32 %v2269, 16
        %v2295 = vrot.slane %v2293, 1
        %v2296 = vor.u32 %v2291, %v2295
        %v2298 = vshll.u32 %v2271, 16
        %v2300 = vrot.slane %v2298, 1
        %v2301 = vsel %vm807, %v2296, %v2300
        %v2302 = vshrl.u32 %v2270, 16
        %v2304 = vor.u32 %v2302, %v2288
        %v2306 = vshll.u32 %v2272, 16
        %v2308 = vrot.slane %v2306, 1
        %v2309 = vsel %vm807, %v2304, %v2308
        %v2310 = vshrl.u32 %v2271, 16
        %v2312 = vor.u32 %v2310, %v2300
        %v2314 = vshll.u32 %v2273, 16
        %v2316 = vrot.slane %v2314, 1
        %v2317 = vsel %vm807, %v2312, %v2316
        %v2318 = vshrl.u32 %v2272, 16
        %v2320 = vor.u32 %v2318, %v2308
        %v2322 = vshll.u32 %v2274, 16
        %v2324 = vrot.slane %v2322, 1
        %v2325 = vsel %vm807, %v2320, %v2324
        %v2326 = vshrl.u32 %v2273, 16
        %v2328 = vor.u32 %v2326, %v2316
        %v2330 = vshll.u32 %v2275, 16
        %v2332 = vrot.slane %v2330, 1
        %v2333 = vsel %vm807, %v2328, %v2332
        %v2334 = vshrl.u32 %v2274, 16
        %v2336 = vor.u32 %v2334, %v2324
        %v2338 = vshll.u32 %v2276, 16
        %v2340 = vrot.slane %v2338, 1
        %v2341 = vsel %vm807, %v2336, %v2340
        %v2342 = vshrl.u32 %v2275, 16
        %v2344 = vor.u32 %v2342, %v2332
        %v2346 = vshll.u32 %v2277, 16
        %v2348 = vrot.slane %v2346, 1
        %v2349 = vsel %vm807, %v2344, %v2348
        %v2350 = vshrl.u32 %v2276, 16
        %v2352 = vor.u32 %v2350, %v2340
        %v2353 = vshrl.u32 %v2277, 16
        %v2355 = vor.u32 %v2353, %v2348
        %v2398 = vunpack.c.l.b16 %v2206
        %v2399 = vunpack.c.h.b16 %v2206
        %v2400 = vunpack.c.l.b16 %v2207
        %v2401 = vunpack.c.h.b16 %v2207
        %v2402 = vunpack.c.l.b16 %v2208
        %v2403 = vunpack.c.h.b16 %v2208
        %v2404 = vunpack.c.l.b16 %v2209
        %v2405 = vunpack.c.h.b16 %v2209
        %v2406 = vunpack.c.l.b16 %v2210
        %v2407 = vunpack.c.h.b16 %v2210
        %v2408 = vunpack.c.l.b16 %v2211
        %v2409 = vunpack.c.h.b16 %v2211
        %v2410 = vunpack.c.l.b16 %v2212
        %v2411 = vunpack.c.h.b16 %v2212
        %v2412 = vunpack.c.l.b16 %v2213
        %v2413 = vunpack.c.h.b16 %v2213
        %v2414 = vunpack.c.l.b16 %v2214
        %v2415 = vunpack.c.h.b16 %v2214
        %v2416 = vunpack.c.l.b16 %v2215
        %v2417 = vunpack.c.h.b16 %v2215
        %v2418 = vunpack.c.l.b16 %v2216
        %v2419 = vunpack.c.h.b16 %v2216
        %v2420 = vunpack.c.l.b16 %v2217
        %v2421 = vunpack.c.h.b16 %v2217
        %v2422 = vunpack.c.l.b16 %v2218
        %v2423 = vunpack.c.h.b16 %v2218
        %v2424 = vunpack.c.l.b16 %v2219
        %v2425 = vunpack.c.h.b16 %v2219
        %v2426 = vunpack.c.l.b16 %v2220
        %v2427 = vunpack.c.h.b16 %v2220
        %v2428 = vunpack.c.l.b16 %v2221
        %v2429 = vunpack.c.h.b16 %v2221
        %v2430 = vunpack.c.l.b16 %v2222
        %v2431 = vunpack.c.h.b16 %v2222
        %v2432 = vunpack.c.l.b16 %v2223
        %v2433 = vunpack.c.h.b16 %v2223
        %v2434 = vunpack.c.l.b16 %v2224
        %v2435 = vunpack.c.h.b16 %v2224
        %v2436 = vunpack.c.l.b16 %v2225
        %v2437 = vunpack.c.h.b16 %v2225
        %v2438 = vunpack.c.l.b16 %v2226
        %v2439 = vunpack.c.h.b16 %v2226
        %v2440 = vunpack.c.l.b16 %v2227
        %v2441 = vunpack.c.h.b16 %v2227
        %v2442 = vunpack.c.l.b16 %v2228
        %v2443 = vunpack.c.h.b16 %v2228
        %v2444 = vunpack.c.l.b16 %v2229
        %v2445 = vunpack.c.h.b16 %v2229
        %v2446 = vunpack.c.l.b16 %v2230
        %v2447 = vunpack.c.h.b16 %v2230
        %v2448 = vunpack.c.l.b16 %v2231
        %v2449 = vunpack.c.h.b16 %v2231
        %v2450 = vunpack.c.l.b16 %v2232
        %v2451 = vunpack.c.h.b16 %v2232
        %v2452 = vunpack.c.l.b16 %v2233
        %v2453 = vunpack.c.h.b16 %v2233
        %v2454 = vunpack.c.l.b16 %v2234
        %v2455 = vunpack.c.h.b16 %v2234
        %v2456 = vunpack.c.l.b16 %v2235
        %v2457 = vunpack.c.h.b16 %v2235
        %v2458 = vunpack.c.l.b16 %v2236
        %v2459 = vunpack.c.h.b16 %v2236
        %v2460 = vunpack.c.l.b16 %v2237
        %v2461 = vunpack.c.h.b16 %v2237
        %v2462 = vpack.c.b16 %v2400, %v2398
        %v2463 = vpack.c.b16 %v2401, %v2399
        %v2464 = vpack.c.b16 %v2404, %v2402
        %v2465 = vpack.c.b16 %v2405, %v2403
        %v2466 = vpack.c.b16 %v2408, %v2406
        %v2467 = vpack.c.b16 %v2409, %v2407
        %v2468 = vpack.c.b16 %v2412, %v2410
        %v2469 = vpack.c.b16 %v2413, %v2411
        %v2470 = vpack.c.b16 %v2416, %v2414
        %v2471 = vpack.c.b16 %v2417, %v2415
        %v2472 = vpack.c.b16 %v2420, %v2418
        %v2473 = vpack.c.b16 %v2421, %v2419
        %v2474 = vpack.c.b16 %v2424, %v2422
        %v2475 = vpack.c.b16 %v2425, %v2423
        %v2476 = vpack.c.b16 %v2428, %v2426
        %v2477 = vpack.c.b16 %v2429, %v2427
        %v2478 = vpack.c.b16 %v2432, %v2430
        %v2479 = vpack.c.b16 %v2433, %v2431
        %v2480 = vpack.c.b16 %v2436, %v2434
        %v2481 = vpack.c.b16 %v2437, %v2435
        %v2482 = vpack.c.b16 %v2440, %v2438
        %v2483 = vpack.c.b16 %v2441, %v2439
        %v2484 = vpack.c.b16 %v2444, %v2442
        %v2485 = vpack.c.b16 %v2445, %v2443
        %v2486 = vpack.c.b16 %v2448, %v2446
        %v2487 = vpack.c.b16 %v2449, %v2447
        %v2488 = vpack.c.b16 %v2452, %v2450
        %v2489 = vpack.c.b16 %v2453, %v2451
        %v2490 = vpack.c.b16 %v2456, %v2454
        %v2491 = vpack.c.b16 %v2457, %v2455
        %v2492 = vpack.c.b16 %v2460, %v2458
        %v2493 = vpack.c.b16 %v2461, %v2459
        %2526 = vmatpush.bf16.msra.mxu0 %v2476
        %2527 = vmatpush.bf16.msra.mxu0 %v2474
        %2528 = vmatpush.bf16.msra.mxu0 %v2472
        %2529 = vmatpush.bf16.msra.mxu0 %v2470
        %2530 = vmatpush.bf16.msra.mxu0 %v2468
        %2531 = vmatpush.bf16.msra.mxu0 %v2466
        %2532 = vmatpush.bf16.msra.mxu0 %v2464
        %2533 = vmatpush.bf16.msra.mxu0 %v2462
        %2534 = vmatmul.bf16.gmra.mxu0 %v2289
        %v2535 = vpop.f32.mrf.mxu0
        %v2536 = vadd.f32 0.0, %v2535
        %v2537 = vpop.f32.mrf.mxu0
        %v2538 = vadd.f32 0.0, %v2537
        %2539 = vmatmul.bf16.gmra.mxu0 %v2309
        %v2540 = vpop.f32.mrf.mxu0
        %v2541 = vadd.f32 0.0, %v2540
        %v2542 = vpop.f32.mrf.mxu0
        %v2543 = vadd.f32 0.0, %v2542
        %2544 = vmatmul.bf16.gmra.mxu0 %v2325
        %v2545 = vpop.f32.mrf.mxu0
        %v2546 = vadd.f32 0.0, %v2545
        %v2547 = vpop.f32.mrf.mxu0
        %v2548 = vadd.f32 0.0, %v2547
        %2549 = vmatmul.bf16.gmra.mxu0 %v2341
        %v2550 = vpop.f32.mrf.mxu0
        %v2551 = vadd.f32 0.0, %v2550
        %v2552 = vpop.f32.mrf.mxu0
        %v2553 = vadd.f32 0.0, %v2552
        %2554 = vmatmul.bf16.gmra.mxu0 %v2352
        %v2555 = vpop.f32.mrf.mxu0
        %v2556 = vadd.f32 0.0, %v2555
        %v2557 = vpop.f32.mrf.mxu0
        %2558 = vdwg.mxu0
        %2559 = vmatpush.bf16.msra.mxu0 %v2492
        %2560 = vmatpush.bf16.msra.mxu0 %v2490
        %2561 = vmatpush.bf16.msra.mxu0 %v2488
        %2562 = vmatpush.bf16.msra.mxu0 %v2486
        %2563 = vmatpush.bf16.msra.mxu0 %v2484
        %2564 = vmatpush.bf16.msra.mxu0 %v2482
        %2565 = vmatpush.bf16.msra.mxu0 %v2480
        %2566 = vmatpush.bf16.msra.mxu0 %v2478
        %2567 = vmatmul.bf16.gmra.mxu0 %v2301
        %v2568 = vpop.f32.mrf.mxu0
        %v2569 = vadd.f32 %v2536, %v2568
        %v2570 = vpop.f32.mrf.mxu0
        %v2571 = vadd.f32 %v2538, %v2570
        %2572 = vmatmul.bf16.gmra.mxu0 %v2317
        %v2573 = vpop.f32.mrf.mxu0
        %v2574 = vadd.f32 %v2541, %v2573
        %v2575 = vpop.f32.mrf.mxu0
        %v2576 = vadd.f32 %v2543, %v2575
        %2577 = vmatmul.bf16.gmra.mxu0 %v2333
        %v2578 = vpop.f32.mrf.mxu0
        %v2579 = vadd.f32 %v2546, %v2578
        %v2580 = vpop.f32.mrf.mxu0
        %v2581 = vadd.f32 %v2548, %v2580
        %2582 = vmatmul.bf16.gmra.mxu0 %v2349
        %v2583 = vpop.f32.mrf.mxu0
        %v2584 = vadd.f32 %v2551, %v2583
        %v2585 = vpop.f32.mrf.mxu0
        %v2586 = vadd.f32 %v2553, %v2585
        %2587 = vmatmul.bf16.gmra.mxu0 %v2355
        %v2588 = vpop.f32.mrf.mxu0
        %v2589 = vadd.f32 %v2556, %v2588
        %v2590 = vpop.f32.mrf.mxu0
        %2591 = vdwg.mxu0
        %2592 = vmatpush.bf16.msra.mxu0 %v2477
        %2593 = vmatpush.bf16.msra.mxu0 %v2475
        %2594 = vmatpush.bf16.msra.mxu0 %v2473
        %2595 = vmatpush.bf16.msra.mxu0 %v2471
        %2596 = vmatpush.bf16.msra.mxu0 %v2469
        %2597 = vmatpush.bf16.msra.mxu0 %v2467
        %2598 = vmatpush.bf16.msra.mxu0 %v2465
        %2599 = vmatpush.bf16.msra.mxu0 %v2463
        %2600 = vmatmul.bf16.gmra.mxu0 %v2289
        %v2601 = vpop.f32.mrf.mxu0
        %v2602 = vadd.f32 0.0, %v2601
        %v2603 = vpop.f32.mrf.mxu0
        %v2604 = vadd.f32 0.0, %v2603
        %2605 = vmatmul.bf16.gmra.mxu0 %v2309
        %v2606 = vpop.f32.mrf.mxu0
        %v2607 = vadd.f32 0.0, %v2606
        %v2608 = vpop.f32.mrf.mxu0
        %v2609 = vadd.f32 0.0, %v2608
        %2610 = vmatmul.bf16.gmra.mxu0 %v2325
        %v2611 = vpop.f32.mrf.mxu0
        %v2612 = vadd.f32 0.0, %v2611
        %v2613 = vpop.f32.mrf.mxu0
        %v2614 = vadd.f32 0.0, %v2613
        %2615 = vmatmul.bf16.gmra.mxu0 %v2341
        %v2616 = vpop.f32.mrf.mxu0
        %v2617 = vadd.f32 0.0, %v2616
        %v2618 = vpop.f32.mrf.mxu0
        %v2619 = vadd.f32 0.0, %v2618
        %2620 = vmatmul.bf16.gmra.mxu0 %v2352
        %v2621 = vpop.f32.mrf.mxu0
        %v2622 = vadd.f32 0.0, %v2621
        %v2623 = vpop.f32.mrf.mxu0
        %2624 = vdwg.mxu0
        %2625 = vmatpush.bf16.msra.mxu0 %v2493
        %2626 = vmatpush.bf16.msra.mxu0 %v2491
        %2627 = vmatpush.bf16.msra.mxu0 %v2489
        %2628 = vmatpush.bf16.msra.mxu0 %v2487
        %2629 = vmatpush.bf16.msra.mxu0 %v2485
        %2630 = vmatpush.bf16.msra.mxu0 %v2483
        %2631 = vmatpush.bf16.msra.mxu0 %v2481
        %2632 = vmatpush.bf16.msra.mxu0 %v2479
        %2633 = vmatmul.bf16.gmra.mxu0 %v2301
        %v2634 = vpop.f32.mrf.mxu0
        %v2635 = vadd.f32 %v2602, %v2634
        %v2636 = vpop.f32.mrf.mxu0
        %v2637 = vadd.f32 %v2604, %v2636
        %2638 = vmatmul.bf16.gmra.mxu0 %v2317
        %v2639 = vpop.f32.mrf.mxu0
        %v2640 = vadd.f32 %v2607, %v2639
        %v2641 = vpop.f32.mrf.mxu0
        %v2642 = vadd.f32 %v2609, %v2641
        %2643 = vmatmul.bf16.gmra.mxu0 %v2333
        %v2644 = vpop.f32.mrf.mxu0
        %v2645 = vadd.f32 %v2612, %v2644
        %v2646 = vpop.f32.mrf.mxu0
        %v2647 = vadd.f32 %v2614, %v2646
        %2648 = vmatmul.bf16.gmra.mxu0 %v2349
        %v2649 = vpop.f32.mrf.mxu0
        %v2650 = vadd.f32 %v2617, %v2649
        %v2651 = vpop.f32.mrf.mxu0
        %v2652 = vadd.f32 %v2619, %v2651
        %2653 = vmatmul.bf16.gmra.mxu0 %v2355
        %v2654 = vpop.f32.mrf.mxu0
        %v2655 = vadd.f32 %v2622, %v2654
        %v2656 = vpop.f32.mrf.mxu0
        %2657 = vdwg.mxu0
        %v2658 = vld [vmem:[#allocation2] sm:$0xff]
        %v2659 = vld [vmem:[#allocation2 + $0x8] sm:$0xff]
        %v2660 = vld [vmem:[#allocation2 + $0x10] sm:$0xff]
        %v2661 = vld [vmem:[#allocation2 + $0x18] sm:$0xff]
        %v2662 = vld [vmem:[#allocation2 + $0x20] sm:$0xff]
        %v2663 = vld [vmem:[#allocation2 + $0x28] sm:$0xff]
        %v2664 = vld [vmem:[#allocation2 + $0x30] sm:$0xff]
        %v2665 = vld [vmem:[#allocation2 + $0x38] sm:$0xff]
        %v2666 = vld [vmem:[#allocation2 + $0x40] sm:$0xff]
        %v2667 = vld [vmem:[#allocation2 + $0x48] sm:$0xff]
        %v2668 = vld [vmem:[#allocation2 + $0x50] sm:$0xff]
        %v2669 = vld [vmem:[#allocation2 + $0x58] sm:$0xff]
        %v2670 = vld [vmem:[#allocation2 + $0x60] sm:$0xff]
        %v2671 = vld [vmem:[#allocation2 + $0x68] sm:$0xff]
        %v2672 = vld [vmem:[#allocation2 + $0x70] sm:$0xff]
        %v2673 = vld [vmem:[#allocation2 + $0x78] sm:$0xff]
        %v2674 = vld [vmem:[#allocation2 + $0x80] sm:$0xff]
        %v2675 = vld [vmem:[#allocation2 + $0x88] sm:$0xff]
        %v2676 = vadd.f32 %v2658, %v2569
        %v2677 = vadd.f32 %v2659, %v2635
        %v2678 = vadd.f32 %v2660, %v2571
        %v2679 = vadd.f32 %v2661, %v2637
        %v2680 = vadd.f32 %v2662, %v2574
        %v2681 = vadd.f32 %v2663, %v2640
        %v2682 = vadd.f32 %v2664, %v2576
        %v2683 = vadd.f32 %v2665, %v2642
        %v2684 = vadd.f32 %v2666, %v2579
        %v2685 = vadd.f32 %v2667, %v2645
        %v2686 = vadd.f32 %v2668, %v2581
        %v2687 = vadd.f32 %v2669, %v2647
        %v2688 = vadd.f32 %v2670, %v2584
        %v2689 = vadd.f32 %v2671, %v2650
        %v2690 = vadd.f32 %v2672, %v2586
        %v2691 = vadd.f32 %v2673, %v2652
        %v2692 = vadd.f32 %v2674, %v2589
        %v2693 = vadd.f32 %v2675, %v2655
        %2694 = vst [vmem:[#allocation2] sm:$0xff] %v2676
        %2695 = vst [vmem:[#allocation2 + $0x8] sm:$0xff] %v2677
        %2696 = vst [vmem:[#allocation2 + $0x10] sm:$0xff] %v2678
        %2697 = vst [vmem:[#allocation2 + $0x18] sm:$0xff] %v2679
        %2698 = vst [vmem:[#allocation2 + $0x20] sm:$0xff] %v2680
        %2699 = vst [vmem:[#allocation2 + $0x28] sm:$0xff] %v2681
        %2700 = vst [vmem:[#allocation2 + $0x30] sm:$0xff] %v2682
        %2701 = vst [vmem:[#allocation2 + $0x38] sm:$0xff] %v2683
        %2702 = vst [vmem:[#allocation2 + $0x40] sm:$0xff] %v2684
        %2703 = vst [vmem:[#allocation2 + $0x48] sm:$0xff] %v2685
        %2704 = vst [vmem:[#allocation2 + $0x50] sm:$0xff] %v2686
        %2705 = vst [vmem:[#allocation2 + $0x58] sm:$0xff] %v2687
        %2706 = vst [vmem:[#allocation2 + $0x60] sm:$0xff] %v2688
        %2707 = vst [vmem:[#allocation2 + $0x68] sm:$0xff] %v2689
        %2708 = vst [vmem:[#allocation2 + $0x70] sm:$0xff] %v2690
        %2709 = vst [vmem:[#allocation2 + $0x78] sm:$0xff] %v2691
        %2710 = vst [vmem:[#allocation2 + $0x80] sm:$0xff] %v2692
        %2711 = vst [vmem:[#allocation2 + $0x88] sm:$0xff] %v2693
        %v2712 = vld [vmem:[%s302 + $0x8] sm:$0xee]
        %v2713 = vld [vmem:[%s302 + $0x10] sm:$0xff]
        %v2714 = vld [vmem:[%s302 + $0x18] sm:$0xff]
        %v2715 = vld [vmem:[%s302 + $0x20] sm:$0xff]
        %v2716 = vld [vmem:[%s302 + $0x28] sm:$0xff]
        %v2717 = vld [vmem:[%s302 + $0x30] sm:$0xff]
        %v2718 = vld [vmem:[%s302 + $0x38] sm:$0xff]
        %v2719 = vld [vmem:[%s302 + $0x40] sm:$0xff]
        %v2720 = vld [vmem:[%s302 + $0x48] sm:$0xff]
        %v2721 = vld [vmem:[%s302 + $0x50] sm:$0x11]
        %s2722 = scalar_lea.vmem %s1, 1280
        %v2723 = vld [vmem:[%s2722] sm:$0xff]
        %v2724 = vld [vmem:[%s2722 + $0x8] sm:$0xff]
        %v2725 = vld [vmem:[%s2722 + $0x10] sm:$0xff]
        %v2726 = vld [vmem:[%s2722 + $0x18] sm:$0xff]
        %v2727 = vld [vmem:[%s2722 + $0x20] sm:$0xff]
        %v2728 = vld [vmem:[%s2722 + $0x28] sm:$0xff]
        %v2729 = vld [vmem:[%s2722 + $0x30] sm:$0xff]
        %v2730 = vld [vmem:[%s2722 + $0x38] sm:$0xff]
        %v2731 = vld [vmem:[%s2722 + $0x40] sm:$0xff]
        %v2732 = vld [vmem:[%s2722 + $0x48] sm:$0xff]
        %v2733 = vld [vmem:[%s2722 + $0x50] sm:$0xff]
        %v2734 = vld [vmem:[%s2722 + $0x58] sm:$0xff]
        %v2735 = vld [vmem:[%s2722 + $0x60] sm:$0xff]
        %v2736 = vld [vmem:[%s2722 + $0x68] sm:$0xff]
        %v2737 = vld [vmem:[%s2722 + $0x70] sm:$0xff]
        %v2738 = vld [vmem:[%s2722 + $0x78] sm:$0xff]
        %v2739 = vld [vmem:[%s2722 + $0x80] sm:$0xff]
        %v2740 = vld [vmem:[%s2722 + $0x88] sm:$0xff]
        %v2741 = vld [vmem:[%s2722 + $0x90] sm:$0xff]
        %v2742 = vld [vmem:[%s2722 + $0x98] sm:$0xff]
        %v2743 = vld [vmem:[%s2722 + $0xa0] sm:$0xff]
        %v2744 = vld [vmem:[%s2722 + $0xa8] sm:$0xff]
        %v2745 = vld [vmem:[%s2722 + $0xb0] sm:$0xff]
        %v2746 = vld [vmem:[%s2722 + $0xb8] sm:$0xff]
        %v2747 = vld [vmem:[%s2722 + $0xc0] sm:$0xff]
        %v2748 = vld [vmem:[%s2722 + $0xc8] sm:$0xff]
        %v2749 = vld [vmem:[%s2722 + $0xd0] sm:$0xff]
        %v2750 = vld [vmem:[%s2722 + $0xd8] sm:$0xff]
        %v2751 = vld [vmem:[%s2722 + $0xe0] sm:$0xff]
        %v2752 = vld [vmem:[%s2722 + $0xe8] sm:$0xff]
        %v2753 = vld [vmem:[%s2722 + $0xf0] sm:$0xff]
        %v2754 = vld [vmem:[%s2722 + $0xf8] sm:$0xff]
        %v2765 = vunpack.c.l.b16 %v2712
        %v2766 = vunpack.c.h.b16 %v2712
        %v2767 = vunpack.c.l.b16 %v2713
        %v2768 = vunpack.c.h.b16 %v2713
        %v2769 = vunpack.c.l.b16 %v2714
        %v2770 = vunpack.c.h.b16 %v2714
        %v2771 = vunpack.c.l.b16 %v2715
        %v2772 = vunpack.c.h.b16 %v2715
        %v2773 = vunpack.c.l.b16 %v2716
        %v2774 = vunpack.c.h.b16 %v2716
        %v2775 = vunpack.c.l.b16 %v2717
        %v2776 = vunpack.c.h.b16 %v2717
        %v2777 = vunpack.c.l.b16 %v2718
        %v2778 = vunpack.c.h.b16 %v2718
        %v2779 = vunpack.c.l.b16 %v2719
        %v2780 = vunpack.c.h.b16 %v2719
        %v2781 = vunpack.c.l.b16 %v2720
        %v2782 = vunpack.c.h.b16 %v2720
        %v2783 = vunpack.c.l.b16 %v2721
        %v2784 = vunpack.c.h.b16 %v2721
        %v2785 = vpack.c.b16 %v2767, %v2765
        %v2786 = vpack.c.b16 %v2768, %v2766
        %v2787 = vpack.c.b16 %v2771, %v2769
        %v2788 = vpack.c.b16 %v2772, %v2770
        %v2789 = vpack.c.b16 %v2775, %v2773
        %v2790 = vpack.c.b16 %v2776, %v2774
        %v2791 = vpack.c.b16 %v2779, %v2777
        %v2792 = vpack.c.b16 %v2780, %v2778
        %v2793 = vpack.c.b16 %v2783, %v2781
        %v2794 = vpack.c.b16 %v2784, %v2782
        %vm2795 = vcmask 1046528
        %v2796 = vrot.slane %v2785, 1
        %v2797 = vrot.slane %v2787, 1
        %v2798 = vsel %vm2795, %v2796, %v2797
        %v2799 = vrot.slane %v2786, 1
        %v2800 = vrot.slane %v2788, 1
        %v2801 = vsel %vm2795, %v2799, %v2800
        %v2802 = vrot.slane %v2789, 1
        %v2803 = vsel %vm2795, %v2797, %v2802
        %v2804 = vrot.slane %v2790, 1
        %v2805 = vsel %vm2795, %v2800, %v2804
        %v2806 = vrot.slane %v2791, 1
        %v2807 = vsel %vm2795, %v2802, %v2806
        %v2808 = vrot.slane %v2792, 1
        %v2809 = vsel %vm2795, %v2804, %v2808
        %v2810 = vrot.slane %v2793, 1
        %v2811 = vsel %vm2795, %v2806, %v2810
        %v2812 = vrot.slane %v2794, 1
        %v2813 = vsel %vm2795, %v2808, %v2812
        %v2856 = vunpack.c.l.b16 %v2723
        %v2857 = vunpack.c.h.b16 %v2723
        %v2858 = vunpack.c.l.b16 %v2724
        %v2859 = vunpack.c.h.b16 %v2724
        %v2860 = vunpack.c.l.b16 %v2725
        %v2861 = vunpack.c.h.b16 %v2725
        %v2862 = vunpack.c.l.b16 %v2726
        %v2863 = vunpack.c.h.b16 %v2726
        %v2864 = vunpack.c.l.b16 %v2727
        %v2865 = vunpack.c.h.b16 %v2727
        %v2866 = vunpack.c.l.b16 %v2728
        %v2867 = vunpack.c.h.b16 %v2728
        %v2868 = vunpack.c.l.b16 %v2729
        %v2869 = vunpack.c.h.b16 %v2729
        %v2870 = vunpack.c.l.b16 %v2730
        %v2871 = vunpack.c.h.b16 %v2730
        %v2872 = vunpack.c.l.b16 %v2731
        %v2873 = vunpack.c.h.b16 %v2731
        %v2874 = vunpack.c.l.b16 %v2732
        %v2875 = vunpack.c.h.b16 %v2732
        %v2876 = vunpack.c.l.b16 %v2733
        %v2877 = vunpack.c.h.b16 %v2733
        %v2878 = vunpack.c.l.b16 %v2734
        %v2879 = vunpack.c.h.b16 %v2734
        %v2880 = vunpack.c.l.b16 %v2735
        %v2881 = vunpack.c.h.b16 %v2735
        %v2882 = vunpack.c.l.b16 %v2736
        %v2883 = vunpack.c.h.b16 %v2736
        %v2884 = vunpack.c.l.b16 %v2737
        %v2885 = vunpack.c.h.b16 %v2737
        %v2886 = vunpack.c.l.b16 %v2738
        %v2887 = vunpack.c.h.b16 %v2738
        %v2888 = vunpack.c.l.b16 %v2739
        %v2889 = vunpack.c.h.b16 %v2739
        %v2890 = vunpack.c.l.b16 %v2740
        %v2891 = vunpack.c.h.b16 %v2740
        %v2892 = vunpack.c.l.b16 %v2741
        %v2893 = vunpack.c.h.b16 %v2741
        %v2894 = vunpack.c.l.b16 %v2742
        %v2895 = vunpack.c.h.b16 %v2742
        %v2896 = vunpack.c.l.b16 %v2743
        %v2897 = vunpack.c.h.b16 %v2743
        %v2898 = vunpack.c.l.b16 %v2744
        %v2899 = vunpack.c.h.b16 %v2744
        %v2900 = vunpack.c.l.b16 %v2745
        %v2901 = vunpack.c.h.b16 %v2745
        %v2902 = vunpack.c.l.b16 %v2746
        %v2903 = vunpack.c.h.b16 %v2746
        %v2904 = vunpack.c.l.b16 %v2747
        %v2905 = vunpack.c.h.b16 %v2747
        %v2906 = vunpack.c.l.b16 %v2748
        %v2907 = vunpack.c.h.b16 %v2748
        %v2908 = vunpack.c.l.b16 %v2749
        %v2909 = vunpack.c.h.b16 %v2749
        %v2910 = vunpack.c.l.b16 %v2750
        %v2911 = vunpack.c.h.b16 %v2750
        %v2912 = vunpack.c.l.b16 %v2751
        %v2913 = vunpack.c.h.b16 %v2751
        %v2914 = vunpack.c.l.b16 %v2752
        %v2915 = vunpack.c.h.b16 %v2752
        %v2916 = vunpack.c.l.b16 %v2753
        %v2917 = vunpack.c.h.b16 %v2753
        %v2918 = vunpack.c.l.b16 %v2754
        %v2919 = vunpack.c.h.b16 %v2754
        %v2920 = vpack.c.b16 %v2858, %v2856
        %v2921 = vpack.c.b16 %v2859, %v2857
        %v2922 = vpack.c.b16 %v2862, %v2860
        %v2923 = vpack.c.b16 %v2863, %v2861
        %v2924 = vpack.c.b16 %v2866, %v2864
        %v2925 = vpack.c.b16 %v2867, %v2865
        %v2926 = vpack.c.b16 %v2870, %v2868
        %v2927 = vpack.c.b16 %v2871, %v2869
        %v2928 = vpack.c.b16 %v2874, %v2872
        %v2929 = vpack.c.b16 %v2875, %v2873
        %v2930 = vpack.c.b16 %v2878, %v2876
        %v2931 = vpack.c.b16 %v2879, %v2877
        %v2932 = vpack.c.b16 %v2882, %v2880
        %v2933 = vpack.c.b16 %v2883, %v2881
        %v2934 = vpack.c.b16 %v2886, %v2884
        %v2935 = vpack.c.b16 %v2887, %v2885
        %v2936 = vpack.c.b16 %v2890, %v2888
        %v2937 = vpack.c.b16 %v2891, %v2889
        %v2938 = vpack.c.b16 %v2894, %v2892
        %v2939 = vpack.c.b16 %v2895, %v2893
        %v2940 = vpack.c.b16 %v2898, %v2896
        %v2941 = vpack.c.b16 %v2899, %v2897
        %v2942 = vpack.c.b16 %v2902, %v2900
        %v2943 = vpack.c.b16 %v2903, %v2901
        %v2944 = vpack.c.b16 %v2906, %v2904
        %v2945 = vpack.c.b16 %v2907, %v2905
        %v2946 = vpack.c.b16 %v2910, %v2908
        %v2947 = vpack.c.b16 %v2911, %v2909
        %v2948 = vpack.c.b16 %v2914, %v2912
        %v2949 = vpack.c.b16 %v2915, %v2913
        %v2950 = vpack.c.b16 %v2918, %v2916
        %v2951 = vpack.c.b16 %v2919, %v2917
        %2984 = vmatpush.bf16.msra.mxu0 %v2934
        %2985 = vmatpush.bf16.msra.mxu0 %v2932
        %2986 = vmatpush.bf16.msra.mxu0 %v2930
        %2987 = vmatpush.bf16.msra.mxu0 %v2928
        %2988 = vmatpush.bf16.msra.mxu0 %v2926
        %2989 = vmatpush.bf16.msra.mxu0 %v2924
        %2990 = vmatpush.bf16.msra.mxu0 %v2922
        %2991 = vmatpush.bf16.msra.mxu0 %v2920
        %2992 = vmatmul.bf16.gmra.mxu0 %v2798
        %v2993 = vpop.f32.mrf.mxu0
        %v2994 = vadd.f32 0.0, %v2993
        %v2995 = vpop.f32.mrf.mxu0
        %v2996 = vadd.f32 0.0, %v2995
        %2997 = vmatmul.bf16.gmra.mxu0 %v2803
        %v2998 = vpop.f32.mrf.mxu0
        %v2999 = vadd.f32 0.0, %v2998
        %v3000 = vpop.f32.mrf.mxu0
        %v3001 = vadd.f32 0.0, %v3000
        %3002 = vmatmul.bf16.gmra.mxu0 %v2807
        %v3003 = vpop.f32.mrf.mxu0
        %v3004 = vadd.f32 0.0, %v3003
        %v3005 = vpop.f32.mrf.mxu0
        %v3006 = vadd.f32 0.0, %v3005
        %3007 = vmatmul.bf16.gmra.mxu0 %v2811
        %v3008 = vpop.f32.mrf.mxu0
        %v3009 = vadd.f32 0.0, %v3008
        %v3010 = vpop.f32.mrf.mxu0
        %v3011 = vadd.f32 0.0, %v3010
        %3012 = vmatmul.bf16.gmra.mxu0 %v2810
        %v3013 = vpop.f32.mrf.mxu0
        %v3014 = vadd.f32 0.0, %v3013
        %v3015 = vpop.f32.mrf.mxu0
        %3016 = vdwg.mxu0
        %3017 = vmatpush.bf16.msra.mxu0 %v2950
        %3018 = vmatpush.bf16.msra.mxu0 %v2948
        %3019 = vmatpush.bf16.msra.mxu0 %v2946
        %3020 = vmatpush.bf16.msra.mxu0 %v2944
        %3021 = vmatpush.bf16.msra.mxu0 %v2942
        %3022 = vmatpush.bf16.msra.mxu0 %v2940
        %3023 = vmatpush.bf16.msra.mxu0 %v2938
        %3024 = vmatpush.bf16.msra.mxu0 %v2936
        %3025 = vmatmul.bf16.gmra.mxu0 %v2801
        %v3026 = vpop.f32.mrf.mxu0
        %v3027 = vadd.f32 %v2994, %v3026
        %v3028 = vpop.f32.mrf.mxu0
        %v3029 = vadd.f32 %v2996, %v3028
        %3030 = vmatmul.bf16.gmra.mxu0 %v2805
        %v3031 = vpop.f32.mrf.mxu0
        %v3032 = vadd.f32 %v2999, %v3031
        %v3033 = vpop.f32.mrf.mxu0
        %v3034 = vadd.f32 %v3001, %v3033
        %3035 = vmatmul.bf16.gmra.mxu0 %v2809
        %v3036 = vpop.f32.mrf.mxu0
        %v3037 = vadd.f32 %v3004, %v3036
        %v3038 = vpop.f32.mrf.mxu0
        %v3039 = vadd.f32 %v3006, %v3038
        %3040 = vmatmul.bf16.gmra.mxu0 %v2813
        %v3041 = vpop.f32.mrf.mxu0
        %v3042 = vadd.f32 %v3009, %v3041
        %v3043 = vpop.f32.mrf.mxu0
        %v3044 = vadd.f32 %v3011, %v3043
        %3045 = vmatmul.bf16.gmra.mxu0 %v2812
        %v3046 = vpop.f32.mrf.mxu0
        %v3047 = vadd.f32 %v3014, %v3046
        %v3048 = vpop.f32.mrf.mxu0
        %3049 = vdwg.mxu0
        %3050 = vmatpush.bf16.msra.mxu0 %v2935
        %3051 = vmatpush.bf16.msra.mxu0 %v2933
        %3052 = vmatpush.bf16.msra.mxu0 %v2931
        %3053 = vmatpush.bf16.msra.mxu0 %v2929
        %3054 = vmatpush.bf16.msra.mxu0 %v2927
        %3055 = vmatpush.bf16.msra.mxu0 %v2925
        %3056 = vmatpush.bf16.msra.mxu0 %v2923
        %3057 = vmatpush.bf16.msra.mxu0 %v2921
        %3058 = vmatmul.bf16.gmra.mxu0 %v2798
        %v3059 = vpop.f32.mrf.mxu0
        %v3060 = vadd.f32 0.0, %v3059
        %v3061 = vpop.f32.mrf.mxu0
        %v3062 = vadd.f32 0.0, %v3061
        %3063 = vmatmul.bf16.gmra.mxu0 %v2803
        %v3064 = vpop.f32.mrf.mxu0
        %v3065 = vadd.f32 0.0, %v3064
        %v3066 = vpop.f32.mrf.mxu0
        %v3067 = vadd.f32 0.0, %v3066
        %3068 = vmatmul.bf16.gmra.mxu0 %v2807
        %v3069 = vpop.f32.mrf.mxu0
        %v3070 = vadd.f32 0.0, %v3069
        %v3071 = vpop.f32.mrf.mxu0
        %v3072 = vadd.f32 0.0, %v3071
        %3073 = vmatmul.bf16.gmra.mxu0 %v2811
        %v3074 = vpop.f32.mrf.mxu0
        %v3075 = vadd.f32 0.0, %v3074
        %v3076 = vpop.f32.mrf.mxu0
        %v3077 = vadd.f32 0.0, %v3076
        %3078 = vmatmul.bf16.gmra.mxu0 %v2810
        %v3079 = vpop.f32.mrf.mxu0
        %v3080 = vadd.f32 0.0, %v3079
        %v3081 = vpop.f32.mrf.mxu0
        %3082 = vdwg.mxu0
        %3083 = vmatpush.bf16.msra.mxu0 %v2951
        %3084 = vmatpush.bf16.msra.mxu0 %v2949
        %3085 = vmatpush.bf16.msra.mxu0 %v2947
        %3086 = vmatpush.bf16.msra.mxu0 %v2945
        %3087 = vmatpush.bf16.msra.mxu0 %v2943
        %3088 = vmatpush.bf16.msra.mxu0 %v2941
        %3089 = vmatpush.bf16.msra.mxu0 %v2939
        %3090 = vmatpush.bf16.msra.mxu0 %v2937
        %3091 = vmatmul.bf16.gmra.mxu0 %v2801
        %v3092 = vpop.f32.mrf.mxu0
        %v3093 = vadd.f32 %v3060, %v3092
        %v3094 = vpop.f32.mrf.mxu0
        %v3095 = vadd.f32 %v3062, %v3094
        %3096 = vmatmul.bf16.gmra.mxu0 %v2805
        %v3097 = vpop.f32.mrf.mxu0
        %v3098 = vadd.f32 %v3065, %v3097
        %v3099 = vpop.f32.mrf.mxu0
        %v3100 = vadd.f32 %v3067, %v3099
        %3101 = vmatmul.bf16.gmra.mxu0 %v2809
        %v3102 = vpop.f32.mrf.mxu0
        %v3103 = vadd.f32 %v3070, %v3102
        %v3104 = vpop.f32.mrf.mxu0
        %v3105 = vadd.f32 %v3072, %v3104
        %3106 = vmatmul.bf16.gmra.mxu0 %v2813
        %v3107 = vpop.f32.mrf.mxu0
        %v3108 = vadd.f32 %v3075, %v3107
        %v3109 = vpop.f32.mrf.mxu0
        %v3110 = vadd.f32 %v3077, %v3109
        %3111 = vmatmul.bf16.gmra.mxu0 %v2812
        %v3112 = vpop.f32.mrf.mxu0
        %v3113 = vadd.f32 %v3080, %v3112
        %v3114 = vpop.f32.mrf.mxu0
        %3115 = vdwg.mxu0
        %v3116 = vld [vmem:[#allocation2] sm:$0xff]
        %v3117 = vld [vmem:[#allocation2 + $0x8] sm:$0xff]
        %v3118 = vld [vmem:[#allocation2 + $0x10] sm:$0xff]
        %v3119 = vld [vmem:[#allocation2 + $0x18] sm:$0xff]
        %v3120 = vld [vmem:[#allocation2 + $0x20] sm:$0xff]
        %v3121 = vld [vmem:[#allocation2 + $0x28] sm:$0xff]
        %v3122 = vld [vmem:[#allocation2 + $0x30] sm:$0xff]
        %v3123 = vld [vmem:[#allocation2 + $0x38] sm:$0xff]
        %v3124 = vld [vmem:[#allocation2 + $0x40] sm:$0xff]
        %v3125 = vld [vmem:[#allocation2 + $0x48] sm:$0xff]
        %v3126 = vld [vmem:[#allocation2 + $0x50] sm:$0xff]
        %v3127 = vld [vmem:[#allocation2 + $0x58] sm:$0xff]
        %v3128 = vld [vmem:[#allocation2 + $0x60] sm:$0xff]
        %v3129 = vld [vmem:[#allocation2 + $0x68] sm:$0xff]
        %v3130 = vld [vmem:[#allocation2 + $0x70] sm:$0xff]
        %v3131 = vld [vmem:[#allocation2 + $0x78] sm:$0xff]
        %v3132 = vld [vmem:[#allocation2 + $0x80] sm:$0xff]
        %v3133 = vld [vmem:[#allocation2 + $0x88] sm:$0xff]
        %v3134 = vadd.f32 %v3116, %v3027
        %v3135 = vadd.f32 %v3117, %v3093
        %v3136 = vadd.f32 %v3118, %v3029
        %v3137 = vadd.f32 %v3119, %v3095
        %v3138 = vadd.f32 %v3120, %v3032
        %v3139 = vadd.f32 %v3121, %v3098
        %v3140 = vadd.f32 %v3122, %v3034
        %v3141 = vadd.f32 %v3123, %v3100
        %v3142 = vadd.f32 %v3124, %v3037
        %v3143 = vadd.f32 %v3125, %v3103
        %v3144 = vadd.f32 %v3126, %v3039
        %v3145 = vadd.f32 %v3127, %v3105
        %v3146 = vadd.f32 %v3128, %v3042
        %v3147 = vadd.f32 %v3129, %v3108
        %v3148 = vadd.f32 %v3130, %v3044
        %v3149 = vadd.f32 %v3131, %v3110
        %v3150 = vadd.f32 %v3132, %v3047
        %v3151 = vadd.f32 %v3133, %v3113
        %3152 = vst [vmem:[#allocation2] sm:$0xff] %v3134
        %3153 = vst [vmem:[#allocation2 + $0x8] sm:$0xff] %v3135
        %3154 = vst [vmem:[#allocation2 + $0x10] sm:$0xff] %v3136
        %3155 = vst [vmem:[#allocation2 + $0x18] sm:$0xff] %v3137
        %3156 = vst [vmem:[#allocation2 + $0x20] sm:$0xff] %v3138
        %3157 = vst [vmem:[#allocation2 + $0x28] sm:$0xff] %v3139
        %3158 = vst [vmem:[#allocation2 + $0x30] sm:$0xff] %v3140
        %3159 = vst [vmem:[#allocation2 + $0x38] sm:$0xff] %v3141
        %3160 = vst [vmem:[#allocation2 + $0x40] sm:$0xff] %v3142
        %3161 = vst [vmem:[#allocation2 + $0x48] sm:$0xff] %v3143
        %3162 = vst [vmem:[#allocation2 + $0x50] sm:$0xff] %v3144
        %3163 = vst [vmem:[#allocation2 + $0x58] sm:$0xff] %v3145
        %3164 = vst [vmem:[#allocation2 + $0x60] sm:$0xff] %v3146
        %3165 = vst [vmem:[#allocation2 + $0x68] sm:$0xff] %v3147
        %3166 = vst [vmem:[#allocation2 + $0x70] sm:$0xff] %v3148
        %3167 = vst [vmem:[#allocation2 + $0x78] sm:$0xff] %v3149
        %3168 = vst [vmem:[#allocation2 + $0x80] sm:$0xff] %v3150
        %3169 = vst [vmem:[#allocation2 + $0x88] sm:$0xff] %v3151
        %v3170 = vld [vmem:[%s2] sm:$0x3]
        %v3171 = vld [vmem:[%s3] sm:$0x3]
        %v3172 = vld [vmem:[#allocation2] sm:$0xff]
        %v3173 = vld [vmem:[#allocation2 + $0x8] sm:$0xff]
        %v3174 = vadd.f32 %v3172, %v3173
        %3175 = vadd.xlane.f32.xlu0 %v3174
        %v3176 = vpop.xlane.xlu0 %3175
        %v3177 = vmul.f32 %v3176, 0.00390625
        %v3178 = vmul.f32 %v3172, %v3172
        %v3179 = vmul.f32 %v3173, %v3173
        %v3180 = vadd.f32 %v3178, %v3179
        %3181 = vadd.xlane.f32.xlu0 %v3180
        %v3182 = vpop.xlane.xlu0 %3181
        %v3183 = vmul.f32 %v3182, 0.00390625
        %v3184 = vmul.f32 %v3177, %v3177
        %v3185 = vsub.f32 %v3183, %v3184
        %v3186 = vmax.f32 %v3185, 0.0
        %v3187 = vadd.f32 %v3186, 1e-05
        %v3188 = vrsqrt.pop %v3187
        %v3189 = vmul.f32 %v3188, %v3187
        %v3190 = vmul.f32 %v3189, %v3188
        %v3191 = vmul.f32 0.5, %v3190
        %v3192 = vsub.f32 1.5, %v3191
        %v3193 = vmul.f32 %v3188, %v3192
        %vm3194 = vweird.f32 %v3187
        %vm3195 = vweird.f32 %v3188
        %vm3196 = vmor %vm3194, %vm3195
        %v3197 = vsel %vm3196, %v3188, %v3193
        %v3198 = vsub.f32 %v3172, %v3177
        %v3199 = vsub.f32 %v3173, %v3177
        %v3200 = vmul.f32 %v3198, %v3197
        %v3201 = vmul.f32 %v3199, %v3197
        %v3203 = vperm.slane %v3170, 0
        %v3204 = vperm.slane %v3170, 1
        %v3207 = vmul.f32 %v3200, %v3203
        %v3208 = vmul.f32 %v3201, %v3204
        %v3210 = vperm.slane %v3171, 0
        %v3211 = vperm.slane %v3171, 1
        %v3214 = vadd.f32 %v3207, %v3210
        %v3215 = vadd.f32 %v3208, %v3211
        %v3216 = vpack.c.bf16 %v3215, %v3214
        %3217 = vst [vmem:[%s324] sm:$0xff] %v3216
        %v3218 = vld [vmem:[#allocation2 + $0x10] sm:$0xfe]
        %v3219 = vld [vmem:[#allocation2 + $0x18] sm:$0xfe]
        %v3220 = vld [vmem:[#allocation2 + $0x20] sm:$0x1]
        %v3221 = vld [vmem:[#allocation2 + $0x28] sm:$0x1]
        %vm3222 = vcmask 1047553
        %v3223 = vsel %vm3222, %v3218, 0.0
        %v3224 = vsel %vm3222, %v3219, 0.0
        %v3225 = vadd.f32 %v3223, %v3224
        %3226 = vadd.xlane.f32.xlu0 %v3225
        %v3227 = vpop.xlane.xlu0 %3226
        %vm3228 = vcmask 1040384
        %v3229 = vsel %vm3228, %v3220, 0.0
        %v3230 = vsel %vm3228, %v3221, 0.0
        %v3231 = vadd.f32 %v3229, %v3230
        %3232 = vadd.xlane.f32.xlu0 %v3231
        %v3233 = vpop.xlane.xlu0 %3232
        %v3234 = vmul.f32 %v3227, 0.00390625
        %v3235 = vmul.f32 %v3233, 0.00390625
        %v3236 = vmul.f32 %v3218, %v3218
        %v3237 = vmul.f32 %v3219, %v3219
        %v3238 = vmul.f32 %v3220, %v3220
        %v3239 = vmul.f32 %v3221, %v3221
        %v3240 = vsel %vm3222, %v3236, 0.0
        %v3241 = vsel %vm3222, %v3237, 0.0
        %v3242 = vadd.f32 %v3240, %v3241
        %3243 = vadd.xlane.f32.xlu0 %v3242
        %v3244 = vpop.xlane.xlu0 %3243
        %v3245 = vsel %vm3228, %v3238, 0.0
        %v3246 = vsel %vm3228, %v3239, 0.0
        %v3247 = vadd.f32 %v3245, %v3246
        %3248 = vadd.xlane.f32.xlu0 %v3247
        %v3249 = vpop.xlane.xlu0 %3248
        %v3250 = vmul.f32 %v3244, 0.00390625
        %v3251 = vmul.f32 %v3249, 0.00390625
        %v3252 = vmul.f32 %v3234, %v3234
        %v3253 = vmul.f32 %v3235, %v3235
        %v3254 = vsub.f32 %v3250, %v3252
        %v3255 = vsub.f32 %v3251, %v3253
        %v3256 = vmax.f32 %v3254, 0.0
        %v3257 = vmax.f32 %v3255, 0.0
        %v3258 = vadd.f32 %v3256, 1e-05
        %v3259 = vadd.f32 %v3257, 1e-05
        %v3260 = vrsqrt.pop %v3258
        %v3261 = vmul.f32 %v3260, %v3258
        %v3262 = vmul.f32 %v3261, %v3260
        %v3263 = vmul.f32 0.5, %v3262
        %v3264 = vsub.f32 1.5, %v3263
        %v3265 = vmul.f32 %v3260, %v3264
        %vm3266 = vweird.f32 %v3258
        %vm3267 = vweird.f32 %v3260
        %vm3268 = vmor %vm3266, %vm3267
        %v3269 = vsel %vm3268, %v3260, %v3265
        %v3270 = vrsqrt.pop %v3259
        %v3271 = vmul.f32 %v3270, %v3259
        %v3272 = vmul.f32 %v3271, %v3270
        %v3273 = vmul.f32 0.5, %v3272
        %v3274 = vsub.f32 1.5, %v3273
        %v3275 = vmul.f32 %v3270, %v3274
        %vm3276 = vweird.f32 %v3259
        %vm3277 = vweird.f32 %v3270
        %vm3278 = vmor %vm3276, %vm3277
        %v3279 = vsel %vm3278, %v3270, %v3275
        %v3280 = vsub.f32 %v3218, %v3234
        %v3281 = vsub.f32 %v3219, %v3234
        %v3282 = vsub.f32 %v3220, %v3235
        %v3283 = vsub.f32 %v3221, %v3235
        %v3284 = vmul.f32 %v3280, %v3269
        %v3285 = vmul.f32 %v3281, %v3269
        %v3286 = vmul.f32 %v3282, %v3279
        %v3287 = vmul.f32 %v3283, %v3279
        %v3288 = vmul.f32 %v3284, %v3203
        %v3289 = vmul.f32 %v3285, %v3204
        %v3290 = vmul.f32 %v3286, %v3203
        %v3291 = vmul.f32 %v3287, %v3204
        %v3292 = vadd.f32 %v3288, %v3210
        %v3293 = vadd.f32 %v3289, %v3211
        %v3294 = vadd.f32 %v3290, %v3210
        %v3295 = vadd.f32 %v3291, %v3211
        %v3296 = vpack.c.bf16 %v3293, %v3292
        %v3297 = vpack.c.bf16 %v3295, %v3294
        %vm3298 = vsmask.f32 3328
        %vm3299 = vsmask.f32 7440
        %vm3300 = vmor %vm3298, %vm3299
        %v3302 = vshrl.u32 %v3296, 16
        %v3304 = vrot.slane %v3302, 4
        %v3305 = vshll.u32 %v3296, 16
        %v3307 = vrot.slane %v3305, 5
        %v3308 = vor.u32 %v3304, %v3307
        %v3309 = vrot.slane %v3308, 4
        %v3311 = vshll.u32 %v3297, 16
        %v3313 = vrot.slane %v3311, 5
        %v3314 = vsel %vm3300, %v3309, %v3313
        %3316 = vst [vmem:[%s324 + $0x8] sm:$0xff] %v3314
        %v3317 = vld [vmem:[#allocation2 + $0x20] sm:$0xfc]
        %v3318 = vld [vmem:[#allocation2 + $0x28] sm:$0xfc]
        %v3319 = vld [vmem:[#allocation2 + $0x30] sm:$0x3]
        %v3320 = vld [vmem:[#allocation2 + $0x38] sm:$0x3]
        %vm3321 = vcmask 1047554
        %v3322 = vsel %vm3321, %v3317, 0.0
        %v3323 = vsel %vm3321, %v3318, 0.0
        %v3324 = vadd.f32 %v3322, %v3323
        %3325 = vadd.xlane.f32.xlu0 %v3324
        %v3326 = vpop.xlane.xlu0 %3325
        %vm3327 = vcmask 1041408
        %v3328 = vsel %vm3327, %v3319, 0.0
        %v3329 = vsel %vm3327, %v3320, 0.0
        %v3330 = vadd.f32 %v3328, %v3329
        %3331 = vadd.xlane.f32.xlu0 %v3330
        %v3332 = vpop.xlane.xlu0 %3331
        %v3333 = vmul.f32 %v3326, 0.00390625
        %v3334 = vmul.f32 %v3332, 0.00390625
        %v3335 = vmul.f32 %v3317, %v3317
        %v3336 = vmul.f32 %v3318, %v3318
        %v3337 = vmul.f32 %v3319, %v3319
        %v3338 = vmul.f32 %v3320, %v3320
        %v3339 = vsel %vm3321, %v3335, 0.0
        %v3340 = vsel %vm3321, %v3336, 0.0
        %v3341 = vadd.f32 %v3339, %v3340
        %3342 = vadd.xlane.f32.xlu0 %v3341
        %v3343 = vpop.xlane.xlu0 %3342
        %v3344 = vsel %vm3327, %v3337, 0.0
        %v3345 = vsel %vm3327, %v3338, 0.0
        %v3346 = vadd.f32 %v3344, %v3345
        %3347 = vadd.xlane.f32.xlu0 %v3346
        %v3348 = vpop.xlane.xlu0 %3347
        %v3349 = vmul.f32 %v3343, 0.00390625
        %v3350 = vmul.f32 %v3348, 0.00390625
        %v3351 = vmul.f32 %v3333, %v3333
        %v3352 = vmul.f32 %v3334, %v3334
        %v3353 = vsub.f32 %v3349, %v3351
        %v3354 = vsub.f32 %v3350, %v3352
        %v3355 = vmax.f32 %v3353, 0.0
        %v3356 = vmax.f32 %v3354, 0.0
        %v3357 = vadd.f32 %v3355, 1e-05
        %v3358 = vadd.f32 %v3356, 1e-05
        %v3359 = vrsqrt.pop %v3357
        %v3360 = vmul.f32 %v3359, %v3357
        %v3361 = vmul.f32 %v3360, %v3359
        %v3362 = vmul.f32 0.5, %v3361
        %v3363 = vsub.f32 1.5, %v3362
        %v3364 = vmul.f32 %v3359, %v3363
        %vm3365 = vweird.f32 %v3357
        %vm3366 = vweird.f32 %v3359
        %vm3367 = vmor %vm3365, %vm3366
        %v3368 = vsel %vm3367, %v3359, %v3364
        %v3369 = vrsqrt.pop %v3358
        %v3370 = vmul.f32 %v3369, %v3358
        %v3371 = vmul.f32 %v3370, %v3369
        %v3372 = vmul.f32 0.5, %v3371
        %v3373 = vsub.f32 1.5, %v3372
        %v3374 = vmul.f32 %v3369, %v3373
        %vm3375 = vweird.f32 %v3358
        %vm3376 = vweird.f32 %v3369
        %vm3377 = vmor %vm3375, %vm3376
        %v3378 = vsel %vm3377, %v3369, %v3374
        %v3379 = vsub.f32 %v3317, %v3333
        %v3380 = vsub.f32 %v3318, %v3333
        %v3381 = vsub.f32 %v3319, %v3334
        %v3382 = vsub.f32 %v3320, %v3334
        %v3383 = vmul.f32 %v3379, %v3368
        %v3384 = vmul.f32 %v3380, %v3368
        %v3385 = vmul.f32 %v3381, %v3378
        %v3386 = vmul.f32 %v3382, %v3378
        %v3387 = vmul.f32 %v3383, %v3203
        %v3388 = vmul.f32 %v3384, %v3204
        %v3389 = vmul.f32 %v3385, %v3203
        %v3390 = vmul.f32 %v3386, %v3204
        %v3391 = vadd.f32 %v3387, %v3210
        %v3392 = vadd.f32 %v3388, %v3211
        %v3393 = vadd.f32 %v3389, %v3210
        %v3394 = vadd.f32 %v3390, %v3211
        %v3395 = vpack.c.bf16 %v3392, %v3391
        %v3396 = vpack.c.bf16 %v3394, %v3393
        %vm3399 = vcmask 1042432
        %vm3400 = vcmask 1046532
        %vm3401 = vmor %vm3399, %vm3400
        %v3402 = vrot.slane %v3395, 5
        %v3403 = vrot.slane %v3402, 4
        %v3404 = vrot.slane %v3396, 5
        %v3405 = vsel %vm3401, %v3403, %v3404
        %3407 = vst [vmem:[%s324 + $0x10] sm:$0xff] %v3405
        %v3408 = vld [vmem:[#allocation2 + $0x30] sm:$0xf8]
        %v3409 = vld [vmem:[#allocation2 + $0x38] sm:$0xf8]
        %v3410 = vld [vmem:[#allocation2 + $0x40] sm:$0x7]
        %v3411 = vld [vmem:[#allocation2 + $0x48] sm:$0x7]
        %vm3412 = vcmask 1047555
        %v3413 = vsel %vm3412, %v3408, 0.0
        %v3414 = vsel %vm3412, %v3409, 0.0
        %v3415 = vadd.f32 %v3413, %v3414
        %3416 = vadd.xlane.f32.xlu0 %v3415
        %v3417 = vpop.xlane.xlu0 %3416
        %vm3418 = vcmask 1042432
        %v3419 = vsel %vm3418, %v3410, 0.0
        %v3420 = vsel %vm3418, %v3411, 0.0
        %v3421 = vadd.f32 %v3419, %v3420
        %3422 = vadd.xlane.f32.xlu0 %v3421
        %v3423 = vpop.xlane.xlu0 %3422
        %v3424 = vmul.f32 %v3417, 0.00390625
        %v3425 = vmul.f32 %v3423, 0.00390625
        %v3426 = vmul.f32 %v3408, %v3408
        %v3427 = vmul.f32 %v3409, %v3409
        %v3428 = vmul.f32 %v3410, %v3410
        %v3429 = vmul.f32 %v3411, %v3411
        %v3430 = vsel %vm3412, %v3426, 0.0
        %v3431 = vsel %vm3412, %v3427, 0.0
        %v3432 = vadd.f32 %v3430, %v3431
        %3433 = vadd.xlane.f32.xlu0 %v3432
        %v3434 = vpop.xlane.xlu0 %3433
        %v3435 = vsel %vm3418, %v3428, 0.0
        %v3436 = vsel %vm3418, %v3429, 0.0
        %v3437 = vadd.f32 %v3435, %v3436
        %3438 = vadd.xlane.f32.xlu0 %v3437
        %v3439 = vpop.xlane.xlu0 %3438
        %v3440 = vmul.f32 %v3434, 0.00390625
        %v3441 = vmul.f32 %v3439, 0.00390625
        %v3442 = vmul.f32 %v3424, %v3424
        %v3443 = vmul.f32 %v3425, %v3425
        %v3444 = vsub.f32 %v3440, %v3442
        %v3445 = vsub.f32 %v3441, %v3443
        %v3446 = vmax.f32 %v3444, 0.0
        %v3447 = vmax.f32 %v3445, 0.0
        %v3448 = vadd.f32 %v3446, 1e-05
        %v3449 = vadd.f32 %v3447, 1e-05
        %v3450 = vrsqrt.pop %v3448
        %v3451 = vmul.f32 %v3450, %v3448
        %v3452 = vmul.f32 %v3451, %v3450
        %v3453 = vmul.f32 0.5, %v3452
        %v3454 = vsub.f32 1.5, %v3453
        %v3455 = vmul.f32 %v3450, %v3454
        %vm3456 = vweird.f32 %v3448
        %vm3457 = vweird.f32 %v3450
        %vm3458 = vmor %vm3456, %vm3457
        %v3459 = vsel %vm3458, %v3450, %v3455
        %v3460 = vrsqrt.pop %v3449
        %v3461 = vmul.f32 %v3460, %v3449
        %v3462 = vmul.f32 %v3461, %v3460
        %v3463 = vmul.f32 0.5, %v3462
        %v3464 = vsub.f32 1.5, %v3463
        %v3465 = vmul.f32 %v3460, %v3464
        %vm3466 = vweird.f32 %v3449
        %vm3467 = vweird.f32 %v3460
        %vm3468 = vmor %vm3466, %vm3467
        %v3469 = vsel %vm3468, %v3460, %v3465
        %v3470 = vsub.f32 %v3408, %v3424
        %v3471 = vsub.f32 %v3409, %v3424
        %v3472 = vsub.f32 %v3410, %v3425
        %v3473 = vsub.f32 %v3411, %v3425
        %v3474 = vmul.f32 %v3470, %v3459
        %v3475 = vmul.f32 %v3471, %v3459
        %v3476 = vmul.f32 %v3472, %v3469
        %v3477 = vmul.f32 %v3473, %v3469
        %v3478 = vmul.f32 %v3474, %v3203
        %v3479 = vmul.f32 %v3475, %v3204
        %v3480 = vmul.f32 %v3476, %v3203
        %v3481 = vmul.f32 %v3477, %v3204
        %v3482 = vadd.f32 %v3478, %v3210
        %v3483 = vadd.f32 %v3479, %v3211
        %v3484 = vadd.f32 %v3480, %v3210
        %v3485 = vadd.f32 %v3481, %v3211
        %v3486 = vpack.c.bf16 %v3483, %v3482
        %v3487 = vpack.c.bf16 %v3485, %v3484
        %vm3488 = vsmask.f32 2304
        %vm3489 = vsmask.f32 6416
        %vm3490 = vmor %vm3488, %vm3489
        %v3492 = vshrl.u32 %v3486, 16
        %v3494 = vrot.slane %v3492, 5
        %v3495 = vshll.u32 %v3486, 16
        %v3497 = vrot.slane %v3495, 6
        %v3498 = vor.u32 %v3494, %v3497
        %v3499 = vrot.slane %v3498, 4
        %v3501 = vshrl.u32 %v3487, 16
        %v3503 = vrot.slane %v3501, 5
        %v3504 = vshll.u32 %v3487, 16
        %v3506 = vrot.slane %v3504, 6
        %v3507 = vor.u32 %v3503, %v3506
        %v3508 = vsel %vm3490, %v3499, %v3507
        %3510 = vst [vmem:[%s324 + $0x18] sm:$0xff] %v3508
        %v3511 = vld [vmem:[#allocation2 + $0x40] sm:$0xf0]
        %v3512 = vld [vmem:[#allocation2 + $0x48] sm:$0xf0]
        %v3513 = vld [vmem:[#allocation2 + $0x50] sm:$0xf]
        %v3514 = vld [vmem:[#allocation2 + $0x58] sm:$0xf]
        %vm3515 = vcmask 1047556
        %v3516 = vsel %vm3515, %v3511, 0.0
        %v3517 = vsel %vm3515, %v3512, 0.0
        %v3518 = vadd.f32 %v3516, %v3517
        %3519 = vadd.xlane.f32.xlu0 %v3518
        %v3520 = vpop.xlane.xlu0 %3519
        %vm3521 = vcmask 1043456
        %v3522 = vsel %vm3521, %v3513, 0.0
        %v3523 = vsel %vm3521, %v3514, 0.0
        %v3524 = vadd.f32 %v3522, %v3523
        %3525 = vadd.xlane.f32.xlu0 %v3524
        %v3526 = vpop.xlane.xlu0 %3525
        %v3527 = vmul.f32 %v3520, 0.00390625
        %v3528 = vmul.f32 %v3526, 0.00390625
        %v3529 = vmul.f32 %v3511, %v3511
        %v3530 = vmul.f32 %v3512, %v3512
        %v3531 = vmul.f32 %v3513, %v3513
        %v3532 = vmul.f32 %v3514, %v3514
        %v3533 = vsel %vm3515, %v3529, 0.0
        %v3534 = vsel %vm3515, %v3530, 0.0
        %v3535 = vadd.f32 %v3533, %v3534
        %3536 = vadd.xlane.f32.xlu0 %v3535
        %v3537 = vpop.xlane.xlu0 %3536
        %v3538 = vsel %vm3521, %v3531, 0.0
        %v3539 = vsel %vm3521, %v3532, 0.0
        %v3540 = vadd.f32 %v3538, %v3539
        %3541 = vadd.xlane.f32.xlu0 %v3540
        %v3542 = vpop.xlane.xlu0 %3541
        %v3543 = vmul.f32 %v3537, 0.00390625
        %v3544 = vmul.f32 %v3542, 0.00390625
        %v3545 = vmul.f32 %v3527, %v3527
        %v3546 = vmul.f32 %v3528, %v3528
        %v3547 = vsub.f32 %v3543, %v3545
        %v3548 = vsub.f32 %v3544, %v3546
        %v3549 = vmax.f32 %v3547, 0.0
        %v3550 = vmax.f32 %v3548, 0.0
        %v3551 = vadd.f32 %v3549, 1e-05
        %v3552 = vadd.f32 %v3550, 1e-05
        %v3553 = vrsqrt.pop %v3551
        %v3554 = vmul.f32 %v3553, %v3551
        %v3555 = vmul.f32 %v3554, %v3553
        %v3556 = vmul.f32 0.5, %v3555
        %v3557 = vsub.f32 1.5, %v3556
        %v3558 = vmul.f32 %v3553, %v3557
        %vm3559 = vweird.f32 %v3551
        %vm3560 = vweird.f32 %v3553
        %vm3561 = vmor %vm3559, %vm3560
        %v3562 = vsel %vm3561, %v3553, %v3558
        %v3563 = vrsqrt.pop %v3552
        %v3564 = vmul.f32 %v3563, %v3552
        %v3565 = vmul.f32 %v3564, %v3563
        %v3566 = vmul.f32 0.5, %v3565
        %v3567 = vsub.f32 1.5, %v3566
        %v3568 = vmul.f32 %v3563, %v3567
        %vm3569 = vweird.f32 %v3552
        %vm3570 = vweird.f32 %v3563
        %vm3571 = vmor %vm3569, %vm3570
        %v3572 = vsel %vm3571, %v3563, %v3568
        %v3573 = vsub.f32 %v3511, %v3527
        %v3574 = vsub.f32 %v3512, %v3527
        %v3575 = vsub.f32 %v3513, %v3528
        %v3576 = vsub.f32 %v3514, %v3528
        %v3577 = vmul.f32 %v3573, %v3562
        %v3578 = vmul.f32 %v3574, %v3562
        %v3579 = vmul.f32 %v3575, %v3572
        %v3580 = vmul.f32 %v3576, %v3572
        %v3581 = vmul.f32 %v3577, %v3203
        %v3582 = vmul.f32 %v3578, %v3204
        %v3583 = vmul.f32 %v3579, %v3203
        %v3584 = vmul.f32 %v3580, %v3204
        %v3585 = vadd.f32 %v3581, %v3210
        %v3586 = vadd.f32 %v3582, %v3211
        %v3587 = vadd.f32 %v3583, %v3210
        %v3588 = vadd.f32 %v3584, %v3211
        %v3589 = vpack.c.bf16 %v3586, %v3585
        %v3590 = vpack.c.bf16 %v3588, %v3587
        %vm3593 = vcmask 1041408
        %vm3594 = vcmask 1045508
        %vm3595 = vmor %vm3593, %vm3594
        %v3596 = vrot.slane %v3589, 6
        %v3597 = vrot.slane %v3596, 4
        %v3598 = vrot.slane %v3590, 6
        %v3599 = vsel %vm3595, %v3597, %v3598
        %3601 = vst [vmem:[%s324 + $0x20] sm:$0xff] %v3599
        %v3602 = vld [vmem:[#allocation2 + $0x50] sm:$0xe0]
        %v3603 = vld [vmem:[#allocation2 + $0x58] sm:$0xe0]
        %v3604 = vld [vmem:[#allocation2 + $0x60] sm:$0x1f]
        %v3605 = vld [vmem:[#allocation2 + $0x68] sm:$0x1f]
        %vm3606 = vcmask 1047557
        %v3607 = vsel %vm3606, %v3602, 0.0
        %v3608 = vsel %vm3606, %v3603, 0.0
        %v3609 = vadd.f32 %v3607, %v3608
        %3610 = vadd.xlane.f32.xlu0 %v3609
        %v3611 = vpop.xlane.xlu0 %3610
        %vm3612 = vcmask 1044480
        %v3613 = vsel %vm3612, %v3604, 0.0
        %v3614 = vsel %vm3612, %v3605, 0.0
        %v3615 = vadd.f32 %v3613, %v3614
        %3616 = vadd.xlane.f32.xlu0 %v3615
        %v3617 = vpop.xlane.xlu0 %3616
        %v3618 = vmul.f32 %v3611, 0.00390625
        %v3619 = vmul.f32 %v3617, 0.00390625
        %v3620 = vmul.f32 %v3602, %v3602
        %v3621 = vmul.f32 %v3603, %v3603
        %v3622 = vmul.f32 %v3604, %v3604
        %v3623 = vmul.f32 %v3605, %v3605
        %v3624 = vsel %vm3606, %v3620, 0.0
        %v3625 = vsel %vm3606, %v3621, 0.0
        %v3626 = vadd.f32 %v3624, %v3625
        %3627 = vadd.xlane.f32.xlu0 %v3626
        %v3628 = vpop.xlane.xlu0 %3627
        %v3629 = vsel %vm3612, %v3622, 0.0
        %v3630 = vsel %vm3612, %v3623, 0.0
        %v3631 = vadd.f32 %v3629, %v3630
        %3632 = vadd.xlane.f32.xlu0 %v3631
        %v3633 = vpop.xlane.xlu0 %3632
        %v3634 = vmul.f32 %v3628, 0.00390625
        %v3635 = vmul.f32 %v3633, 0.00390625
        %v3636 = vmul.f32 %v3618, %v3618
        %v3637 = vmul.f32 %v3619, %v3619
        %v3638 = vsub.f32 %v3634, %v3636
        %v3639 = vsub.f32 %v3635, %v3637
        %v3640 = vmax.f32 %v3638, 0.0
        %v3641 = vmax.f32 %v3639, 0.0
        %v3642 = vadd.f32 %v3640, 1e-05
        %v3643 = vadd.f32 %v3641, 1e-05
        %v3644 = vrsqrt.pop %v3642
        %v3645 = vmul.f32 %v3644, %v3642
        %v3646 = vmul.f32 %v3645, %v3644
        %v3647 = vmul.f32 0.5, %v3646
        %v3648 = vsub.f32 1.5, %v3647
        %v3649 = vmul.f32 %v3644, %v3648
        %vm3650 = vweird.f32 %v3642
        %vm3651 = vweird.f32 %v3644
        %vm3652 = vmor %vm3650, %vm3651
        %v3653 = vsel %vm3652, %v3644, %v3649
        %v3654 = vrsqrt.pop %v3643
        %v3655 = vmul.f32 %v3654, %v3643
        %v3656 = vmul.f32 %v3655, %v3654
        %v3657 = vmul.f32 0.5, %v3656
        %v3658 = vsub.f32 1.5, %v3657
        %v3659 = vmul.f32 %v3654, %v3658
        %vm3660 = vweird.f32 %v3643
        %vm3661 = vweird.f32 %v3654
        %vm3662 = vmor %vm3660, %vm3661
        %v3663 = vsel %vm3662, %v3654, %v3659
        %v3664 = vsub.f32 %v3602, %v3618
        %v3665 = vsub.f32 %v3603, %v3618
        %v3666 = vsub.f32 %v3604, %v3619
        %v3667 = vsub.f32 %v3605, %v3619
        %v3668 = vmul.f32 %v3664, %v3653
        %v3669 = vmul.f32 %v3665, %v3653
        %v3670 = vmul.f32 %v3666, %v3663
        %v3671 = vmul.f32 %v3667, %v3663
        %v3672 = vmul.f32 %v3668, %v3203
        %v3673 = vmul.f32 %v3669, %v3204
        %v3674 = vmul.f32 %v3670, %v3203
        %v3675 = vmul.f32 %v3671, %v3204
        %v3676 = vadd.f32 %v3672, %v3210
        %v3677 = vadd.f32 %v3673, %v3211
        %v3678 = vadd.f32 %v3674, %v3210
        %v3679 = vadd.f32 %v3675, %v3211
        %v3680 = vpack.c.bf16 %v3677, %v3676
        %v3681 = vpack.c.bf16 %v3679, %v3678
        %vm3682 = vsmask.f32 1280
        %vm3683 = vsmask.f32 5392
        %vm3684 = vmor %vm3682, %vm3683
        %v3686 = vshrl.u32 %v3680, 16
        %v3688 = vrot.slane %v3686, 6
        %v3689 = vshll.u32 %v3680, 16
        %v3691 = vrot.slane %v3689, 7
        %v3692 = vor.u32 %v3688, %v3691
        %v3693 = vrot.slane %v3692, 4
        %v3695 = vshrl.u32 %v3681, 16
        %v3697 = vrot.slane %v3695, 6
        %v3698 = vshll.u32 %v3681, 16
        %v3700 = vrot.slane %v3698, 7
        %v3701 = vor.u32 %v3697, %v3700
        %v3702 = vsel %vm3684, %v3693, %v3701
        %3704 = vst [vmem:[%s324 + $0x28] sm:$0xff] %v3702
        %v3705 = vld [vmem:[#allocation2 + $0x60] sm:$0xc0]
        %v3706 = vld [vmem:[#allocation2 + $0x68] sm:$0xc0]
        %v3707 = vld [vmem:[#allocation2 + $0x70] sm:$0x3f]
        %v3708 = vld [vmem:[#allocation2 + $0x78] sm:$0x3f]
        %vm3709 = vcmask 1047558
        %v3710 = vsel %vm3709, %v3705, 0.0
        %v3711 = vsel %vm3709, %v3706, 0.0
        %v3712 = vadd.f32 %v3710, %v3711
        %3713 = vadd.xlane.f32.xlu0 %v3712
        %v3714 = vpop.xlane.xlu0 %3713
        %vm3715 = vcmask 1045504
        %v3716 = vsel %vm3715, %v3707, 0.0
        %v3717 = vsel %vm3715, %v3708, 0.0
        %v3718 = vadd.f32 %v3716, %v3717
        %3719 = vadd.xlane.f32.xlu0 %v3718
        %v3720 = vpop.xlane.xlu0 %3719
        %v3721 = vmul.f32 %v3714, 0.00390625
        %v3722 = vmul.f32 %v3720, 0.00390625
        %v3723 = vmul.f32 %v3705, %v3705
        %v3724 = vmul.f32 %v3706, %v3706
        %v3725 = vmul.f32 %v3707, %v3707
        %v3726 = vmul.f32 %v3708, %v3708
        %v3727 = vsel %vm3709, %v3723, 0.0
        %v3728 = vsel %vm3709, %v3724, 0.0
        %v3729 = vadd.f32 %v3727, %v3728
        %3730 = vadd.xlane.f32.xlu0 %v3729
        %v3731 = vpop.xlane.xlu0 %3730
        %v3732 = vsel %vm3715, %v3725, 0.0
        %v3733 = vsel %vm3715, %v3726, 0.0
        %v3734 = vadd.f32 %v3732, %v3733
        %3735 = vadd.xlane.f32.xlu0 %v3734
        %v3736 = vpop.xlane.xlu0 %3735
        %v3737 = vmul.f32 %v3731, 0.00390625
        %v3738 = vmul.f32 %v3736, 0.00390625
        %v3739 = vmul.f32 %v3721, %v3721
        %v3740 = vmul.f32 %v3722, %v3722
        %v3741 = vsub.f32 %v3737, %v3739
        %v3742 = vsub.f32 %v3738, %v3740
        %v3743 = vmax.f32 %v3741, 0.0
        %v3744 = vmax.f32 %v3742, 0.0
        %v3745 = vadd.f32 %v3743, 1e-05
        %v3746 = vadd.f32 %v3744, 1e-05
        %v3747 = vrsqrt.pop %v3745
        %v3748 = vmul.f32 %v3747, %v3745
        %v3749 = vmul.f32 %v3748, %v3747
        %v3750 = vmul.f32 0.5, %v3749
        %v3751 = vsub.f32 1.5, %v3750
        %v3752 = vmul.f32 %v3747, %v3751
        %vm3753 = vweird.f32 %v3745
        %vm3754 = vweird.f32 %v3747
        %vm3755 = vmor %vm3753, %vm3754
        %v3756 = vsel %vm3755, %v3747, %v3752
        %v3757 = vrsqrt.pop %v3746
        %v3758 = vmul.f32 %v3757, %v3746
        %v3759 = vmul.f32 %v3758, %v3757
        %v3760 = vmul.f32 0.5, %v3759
        %v3761 = vsub.f32 1.5, %v3760
        %v3762 = vmul.f32 %v3757, %v3761
        %vm3763 = vweird.f32 %v3746
        %vm3764 = vweird.f32 %v3757
        %vm3765 = vmor %vm3763, %vm3764
        %v3766 = vsel %vm3765, %v3757, %v3762
        %v3767 = vsub.f32 %v3705, %v3721
        %v3768 = vsub.f32 %v3706, %v3721
        %v3769 = vsub.f32 %v3707, %v3722
        %v3770 = vsub.f32 %v3708, %v3722
        %v3771 = vmul.f32 %v3767, %v3756
        %v3772 = vmul.f32 %v3768, %v3756
        %v3773 = vmul.f32 %v3769, %v3766
        %v3774 = vmul.f32 %v3770, %v3766
        %v3775 = vmul.f32 %v3771, %v3203
        %v3776 = vmul.f32 %v3772, %v3204
        %v3777 = vmul.f32 %v3773, %v3203
        %v3778 = vmul.f32 %v3774, %v3204
        %v3779 = vadd.f32 %v3775, %v3210
        %v3780 = vadd.f32 %v3776, %v3211
        %v3781 = vadd.f32 %v3777, %v3210
        %v3782 = vadd.f32 %v3778, %v3211
        %v3783 = vpack.c.bf16 %v3780, %v3779
        %v3784 = vpack.c.bf16 %v3782, %v3781
        %vm3787 = vcmask 1040384
        %vm3788 = vcmask 1044484
        %vm3789 = vmor %vm3787, %vm3788
        %v3790 = vrot.slane %v3783, 7
        %v3791 = vrot.slane %v3790, 4
        %v3792 = vrot.slane %v3784, 7
        %v3793 = vsel %vm3789, %v3791, %v3792
        %3795 = vst [vmem:[%s324 + $0x30] sm:$0xff] %v3793
        %v3796 = vld [vmem:[#allocation2 + $0x70] sm:$0x80]
        %v3797 = vld [vmem:[#allocation2 + $0x78] sm:$0x80]
        %v3798 = vld [vmem:[#allocation2 + $0x80] sm:$0x7f]
        %v3799 = vld [vmem:[#allocation2 + $0x88] sm:$0x7f]
        %vm3800 = vcmask 1047559
        %v3801 = vsel %vm3800, %v3796, 0.0
        %v3802 = vsel %vm3800, %v3797, 0.0
        %v3803 = vadd.f32 %v3801, %v3802
        %3804 = vadd.xlane.f32.xlu0 %v3803
        %v3805 = vpop.xlane.xlu0 %3804
        %vm3806 = vcmask 1046528
        %v3807 = vsel %vm3806, %v3798, 0.0
        %v3808 = vsel %vm3806, %v3799, 0.0
        %v3809 = vadd.f32 %v3807, %v3808
        %3810 = vadd.xlane.f32.xlu0 %v3809
        %v3811 = vpop.xlane.xlu0 %3810
        %v3812 = vmul.f32 %v3805, 0.00390625
        %v3813 = vmul.f32 %v3811, 0.00390625
        %v3814 = vmul.f32 %v3796, %v3796
        %v3815 = vmul.f32 %v3797, %v3797
        %v3816 = vmul.f32 %v3798, %v3798
        %v3817 = vmul.f32 %v3799, %v3799
        %v3818 = vsel %vm3800, %v3814, 0.0
        %v3819 = vsel %vm3800, %v3815, 0.0
        %v3820 = vadd.f32 %v3818, %v3819
        %3821 = vadd.xlane.f32.xlu0 %v3820
        %v3822 = vpop.xlane.xlu0 %3821
        %v3823 = vsel %vm3806, %v3816, 0.0
        %v3824 = vsel %vm3806, %v3817, 0.0
        %v3825 = vadd.f32 %v3823, %v3824
        %3826 = vadd.xlane.f32.xlu0 %v3825
        %v3827 = vpop.xlane.xlu0 %3826
        %v3828 = vmul.f32 %v3822, 0.00390625
        %v3829 = vmul.f32 %v3827, 0.00390625
        %v3830 = vmul.f32 %v3812, %v3812
        %v3831 = vmul.f32 %v3813, %v3813
        %v3832 = vsub.f32 %v3828, %v3830
        %v3833 = vsub.f32 %v3829, %v3831
        %v3834 = vmax.f32 %v3832, 0.0
        %v3835 = vmax.f32 %v3833, 0.0
        %v3836 = vadd.f32 %v3834, 1e-05
        %v3837 = vadd.f32 %v3835, 1e-05
        %v3838 = vrsqrt.pop %v3836
        %v3839 = vmul.f32 %v3838, %v3836
        %v3840 = vmul.f32 %v3839, %v3838
        %v3841 = vmul.f32 0.5, %v3840
        %v3842 = vsub.f32 1.5, %v3841
        %v3843 = vmul.f32 %v3838, %v3842
        %vm3844 = vweird.f32 %v3836
        %vm3845 = vweird.f32 %v3838
        %vm3846 = vmor %vm3844, %vm3845
        %v3847 = vsel %vm3846, %v3838, %v3843
        %v3848 = vrsqrt.pop %v3837
        %v3849 = vmul.f32 %v3848, %v3837
        %v3850 = vmul.f32 %v3849, %v3848
        %v3851 = vmul.f32 0.5, %v3850
        %v3852 = vsub.f32 1.5, %v3851
        %v3853 = vmul.f32 %v3848, %v3852
        %vm3854 = vweird.f32 %v3837
        %vm3855 = vweird.f32 %v3848
        %vm3856 = vmor %vm3854, %vm3855
        %v3857 = vsel %vm3856, %v3848, %v3853
        %v3858 = vsub.f32 %v3796, %v3812
        %v3859 = vsub.f32 %v3797, %v3812
        %v3860 = vsub.f32 %v3798, %v3813
        %v3861 = vsub.f32 %v3799, %v3813
        %v3862 = vmul.f32 %v3858, %v3847
        %v3863 = vmul.f32 %v3859, %v3847
        %v3864 = vmul.f32 %v3860, %v3857
        %v3865 = vmul.f32 %v3861, %v3857
        %v3866 = vmul.f32 %v3862, %v3203
        %v3867 = vmul.f32 %v3863, %v3204
        %v3868 = vmul.f32 %v3864, %v3203
        %v3869 = vmul.f32 %v3865, %v3204
        %v3870 = vadd.f32 %v3866, %v3210
        %v3871 = vadd.f32 %v3867, %v3211
        %v3872 = vadd.f32 %v3868, %v3210
        %v3873 = vadd.f32 %v3869, %v3211
        %v3874 = vpack.c.bf16 %v3871, %v3870
        %v3875 = vpack.c.bf16 %v3873, %v3872
        %vm3876 = vsmask.f32 256
        %vm3877 = vsmask.f32 4368
        %vm3878 = vmor %vm3876, %vm3877
        %v3880 = vshrl.u32 %v3874, 16
        %v3882 = vrot.slane %v3880, 7
        %v3883 = vrot.slane %v3882, 4
        %v3885 = vshrl.u32 %v3875, 16
        %v3887 = vrot.slane %v3885, 7
        %v3888 = vshll.u32 %v3875, 16
        %v3890 = vor.u32 %v3887, %v3888
        %v3891 = vsel %vm3878, %v3883, %v3890
        %3893 = vst [vmem:[%s324 + $0x38] sm:$0xff] %v3891
        %s3894 = sand.u32 %s115, 1
        %s3895 = scalar_lea.sflag [#allocation5], %s3894
        %s3896 = sand.u32 %s115, 1
        %s3897 = smul.addr %s3896, 64
        %s3898 = scalar_lea.vmem [#allocation4], %s3897
        // Predicated region
        $region75: #{conv_downsampler.1} parent=69 // pred_check
          %p3899 = pneg %p125
        $region76: #{conv_downsampler.1} parent=69 // pred_check_branch
          %3901 = sbr.rel (%p3899) target = $region78
        $region77: #{conv_downsampler.1} parent=69 // pred_region
          %3903 = vsyncadd %s3895, 0
          %s3904 = smul.addr %s18, 16
          %s3905 = smul.addr %s3904, 4
          %s3906 = scalar_lea.hbm %s4, %s3905
          %s3907 = sshll.u32 %s3898, 4
          %s3908 = int_to_ptr.vmem [resolvable:$true] %s3907
          %s3909 = sshll.u32 %s3906, 4
          %s3910 = int_to_ptr.hbm [resolvable:$true] %s3909
          %3915 = dma.vmem_to_hbm [thread:$0]  %s3908, 1024, %s3910, %s3895, 128, 128, 8
        $region78: #{conv_downsampler.1} parent=69 // pred_fallthru
          _
      $region70: #{conv_downsampler.1} parent=5 // pred_fallthru
        _
      %p3916 = scmp.le.s32.totalorder 2, %s13
      // Predicated region
      $region79: #{conv_downsampler.1} parent=5 // pred_check
        %p3917 = pneg %p3916
      $region80: #{conv_downsampler.1} parent=5 // pred_check_branch
        %3919 = sbr.rel (%p3917) target = $region82
      $region81: #{conv_downsampler.1} parent=5 // pred_region
        %s3920 = ssub.s32 %s13, 2
        // Predicated region
        $region83: #{conv_downsampler.1} parent=81 // pred_check
          %p3921 = pneg %p131
        $region84: #{conv_downsampler.1} parent=81 // pred_check_branch
          %3923 = sbr.rel (%p3921) target = $region86
        $region85: #{conv_downsampler.1} parent=81 // pred_region
          %s3924 = sand.u32 %s116, 1
          %s3925 = scalar_lea.sflag [#allocation5], %s3924
          %s3926 = sand.u32 %s116, 1
          %s3927 = smul.addr %s3926, 64
          %s3928 = scalar_lea.vmem [#allocation4], %s3927
          %3930 = dma.done %s3925, 1024
        $region86: #{conv_downsampler.1} parent=81 // pred_fallthru
          _
      $region82: #{conv_downsampler.1} parent=5 // pred_fallthru
        _
    $region6: #{conv_downsampler.1} parent=1 // loop_footer
      %s17 = sadd.s32 1, %s13
    $region7: #{conv_downsampler.1} parent=1 // loop_footer_branch
      %12 = sbr.rel target = $region3
    $region8: #{conv_downsampler.1} parent=1 // loop_exit
      _
    %3931 = vsyncpa [#allocation5], 1
    %s3932 = scalar_lea.sflag [#allocation5], 1
    %3933 = vsyncpa %s3932, 1

</llo_original>
